<compile_context>
chip_gen: v7x
topology: tpu7x:2x2x1
jax: 0.10.0
libtpu: 0.0.40
codegen_flags: <defaults>
</compile_context>

<pallas_src>
import math

import jax
import jax.numpy as jnp
from jax.experimental import pallas as pl
from jax.experimental.pallas import tpu as pltpu

NUM_LAYERS = 3  # bottom + 1 middle + top (the module's default num_layers=3)


# ---------------------------------------------------------------------------
# Pallas kernel: one grid step == one timestep of the full 3-layer HM-LSTM.
# ---------------------------------------------------------------------------
def _hmlstm_seq_kernel(x_ref, m_ref, w0_ref, b0_ref, w1_ref, b1_ref,
                       w2_ref, b2_ref,
                       hseq_ref, hfin_ref, cfin_ref, zfin_ref):
    H = hfin_ref.shape[2]
    t = pl.program_id(0)
    sig = jax.nn.sigmoid

    # t == 0: zero-initialize the carried (VMEM-resident) recurrent state.
    @pl.when(t == 0)
    def _():
        hfin_ref[...] = jnp.zeros_like(hfin_ref)
        cfin_ref[...] = jnp.zeros_like(cfin_ref)
        zfin_ref[...] = jnp.zeros_like(zfin_ref)

    xb = x_ref[0]                      # (B, In)  bottom-layer input at step t
    m = m_ref[0]                       # (B, 1)   time/length mask (1 = valid step)
    h0, h1, h2 = hfin_ref[0], hfin_ref[1], hfin_ref[2]   # previous hidden states
    c0, c1, c2 = cfin_ref[0], cfin_ref[1], cfin_ref[2]   # previous cell states
    z0, z1 = zfin_ref[0], zfin_ref[1]  # (B, 1)   previous boundary variables

    # ---------------- layer 0: BottomHMLSTMCell ----------------
    # z scaling applied to the (B,H) top input BEFORE the fused matmul
    # (exact: z is binary), one matmul instead of three.
    xcat = jnp.concatenate([h0, xb, z0 * h1], axis=1)                 # (B, 2H+In)
    g = jnp.dot(xcat, w0_ref[...], preferred_element_type=jnp.float32) + b0_ref[...]
    f_, i_, o_, gg = g[:, 0:H], g[:, H:2 * H], g[:, 2 * H:3 * H], g[:, 3 * H:4 * H]
    zpre = g[:, 4 * H:4 * H + 1]
    c0c = (1.0 - z0) * sig(f_) * c0 + sig(i_) * jnp.tanh(gg)
    h0c = sig(o_) * jnp.tanh(c0c)
    # TODO(synk): st_hard_sigmoid source not provided; forward modeled as
    # clamp(0.5*z + 0.5, 0, 1) binarized at 0.5, i.e. (z > 0).
    z0c = (zpre > 0.0).astype(jnp.float32)
    # TODO(synk): mask_time source not provided; modeled as keep-new while t < length.
    h0n = m * h0c + (1.0 - m) * h0
    c0n = m * c0c + (1.0 - m) * c0
    z0n = m * z0c + (1.0 - m) * z0

    # ---------------- layer 1: HMLSTMCell (middle) ----------------
    xcat = jnp.concatenate([h1, z0n * h0n, z1 * h2], axis=1)          # (B, 3H)
    g = jnp.dot(xcat, w1_ref[...], preferred_element_type=jnp.float32) + b1_ref[...]
    f_, i_, o_, gg = g[:, 0:H], g[:, H:2 * H], g[:, 2 * H:3 * H], g[:, 3 * H:4 * H]
    zpre = g[:, 4 * H:4 * H + 1]
    c1l = (1.0 - z1) * sig(f_) * c1 + sig(i_) * jnp.tanh(gg)
    h1l = sig(o_) * jnp.tanh(c1l)
    mk = jnp.minimum(z0n + z1, 1.0)            # clamp(z_lm1 + z_tm1, max=1)
    c1c = mk * c1l + (1.0 - mk) * c1
    h1c = mk * h1l + (1.0 - mk) * h1
    z1c = (zpre > 0.0).astype(jnp.float32)
    h1n = m * h1c + (1.0 - m) * h1
    c1n = m * c1c + (1.0 - m) * c1
    z1n = m * z1c + (1.0 - m) * z1

    # ---------------- layer 2: TopHMLSTMCell ----------------
    xcat = jnp.concatenate([h2, h1n], axis=1)                         # (B, 2H)
    g = jnp.dot(xcat, w2_ref[...], preferred_element_type=jnp.float32) + b2_ref[...]
    f_, i_, o_, gg = g[:, 0:H], g[:, H:2 * H], g[:, 2 * H:3 * H], g[:, 3 * H:4 * H]
    c2l = sig(f_) * c2 + sig(i_) * jnp.tanh(gg)
    h2l = sig(o_) * jnp.tanh(c2l)
    c2c = z1n * c2l + (1.0 - z1n) * c2
    h2c = z1n * h2l + (1.0 - z1n) * h2
    h2n = m * h2c + (1.0 - m) * h2
    c2n = m * c2c + (1.0 - m) * c2

    # ---------------- write back carried state ----------------
    hfin_ref[0] = h0n
    hfin_ref[1] = h1n
    hfin_ref[2] = h2n
    cfin_ref[0] = c0n
    cfin_ref[1] = c1n
    cfin_ref[2] = c2n
    zfin_ref[0] = z0n
    zfin_ref[1] = z1n

    # Lane-dense (B, 4H) = (B, 128) per-step hidden-state slab: [h0 | h1 | h2 | pad].
    hseq_ref[0] = jnp.concatenate([h0n, h1n, h2n, h2n], axis=1)


# ---------------------------------------------------------------------------
# Wrapper: weight fusion, batch padding, pallas_call, output gating.
# ---------------------------------------------------------------------------
def hmlstm_forward(x, params, length=None):
    """x: (T, B, input_size), time-major (batch_first=False).

    Returns (output (T, B, H), (h_final (L,B,H), c_final (L,B,H), z_final (L-1,B))).
    """
    T, B, In = x.shape
    H = params["w_hh_0"].shape[0]
    L = NUM_LAYERS
    G = 4 * H + 1

    # --- pad the batch (sublane) dimension to a multiple of 8 ---
    Bp = max(8, -(-B // 8) * 8)
    pad = Bp - B
    xp = jnp.pad(x.astype(jnp.float32), ((0, 0), (0, pad), (0, 0)))

    if length is None:
        length_arr = jnp.full((B,), T, dtype=jnp.int32)
    else:
        length_arr = jnp.asarray(length, dtype=jnp.int32)
    lp = jnp.pad(length_arr, (0, pad), constant_values=T)
    tmask = (jnp.arange(T)[:, None] < lp[None, :]).astype(jnp.float32)[:, :, None]  # (T,Bp,1)

    # --- fuse per-layer weights along the contraction axis (order must match
    #     the in-kernel x_cat concatenation order) ---
    W0 = jnp.concatenate([params["w_hh_0"], params["w_bh_0"], params["w_th_0"]],
                         axis=0).astype(jnp.float32)                  # (2H+In, 4H+1)
    W1 = jnp.concatenate([params["w_hh_1"], params["w_bh_1"], params["w_th_1"]],
                         axis=0).astype(jnp.float32)                  # (3H, 4H+1)
    W2 = jnp.concatenate([params["w_hh_2"], params["w_ih_2"]],
                         axis=0).astype(jnp.float32)                  # (2H, 4H)
    b0 = params["b_0"].reshape(1, G).astype(jnp.float32)
    b1 = params["b_1"].reshape(1, G).astype(jnp.float32)
    b2 = params["b_2"].reshape(1, 4 * H).astype(jnp.float32)

    const_spec = lambda shape: pl.BlockSpec(shape, lambda t, _s=shape: (0,) * len(_s))
    step_spec = lambda shape: pl.BlockSpec(shape, lambda t: (t, 0, 0))

    hseq, hfin, cfin, zfin = pl.pallas_call(
        _hmlstm_seq_kernel,
        grid=(T,),
        in_specs=[
            step_spec((1, Bp, In)),       # x[t]
            step_spec((1, Bp, 1)),        # time mask[t]
            const_spec(W0.shape),         # layer-0 fused weights (resident)
            const_spec(b0.shape),
            const_spec(W1.shape),         # layer-1 fused weights (resident)
            const_spec(b1.shape),
            const_spec(W2.shape),         # layer-2 fused weights (resident)
            const_spec(b2.shape),
        ],
        out_specs=(
            step_spec((1, Bp, 4 * H)),                        # packed per-step h slab
            pl.BlockSpec((L, Bp, H), lambda t: (0, 0, 0)),     # carried / final h
            pl.BlockSpec((L, Bp, H), lambda t: (0, 0, 0)),     # carried / final c
            pl.BlockSpec((L - 1, Bp, 1), lambda t: (0, 0, 0)), # carried / final z
        ),
        out_shape=(
            jax.ShapeDtypeStruct((T, Bp, 4 * H), jnp.float32),
            jax.ShapeDtypeStruct((L, Bp, H), jnp.float32),
            jax.ShapeDtypeStruct((L, Bp, H), jnp.float32),
            jax.ShapeDtypeStruct((L - 1, Bp, 1), jnp.float32),
        ),
        compiler_params=pltpu.CompilerParams(
            dimension_semantics=("arbitrary",)),   # recurrent carry over time
    )(xp, tmask, W0, b0, W1, b1, W2, b2)

    # --- unpack the lane-dense slab, drop batch padding ---
    Ht_seq = jnp.transpose(
        hseq[:, :B, :L * H].reshape(T, B, L, H), (0, 2, 1, 3))        # (T, L, B, H)

    # --- per-timestep output projection + gating (exact torch .view semantics) ---
    w_out, b_out = params["w_out"], params["b_out"]
    w_gate, b_gate = params["w_gate"], params["b_gate"]
    Ht_hat = Ht_seq.reshape(T, L * B, H) @ w_out.T + b_out            # (T, L*B, H)
    gate = jax.nn.sigmoid(Ht_seq.reshape(T, B, L * H) @ w_gate.T + b_gate)  # (T, B, L)
    gated = gate.reshape(T, B * L, 1) * Ht_hat
    output = jnp.sum(gated.reshape(T, L, B, H), axis=1)               # (T, B, H)

    h_final = hfin[:, :B]
    c_final = cfin[:, :B]
    z_final = zfin[:, :B, 0]
    return output, (h_final, c_final, z_final)


# ---------------------------------------------------------------------------
# Pure-JAX reference mirroring the PyTorch forward (per-timestep, per-layer).
# ---------------------------------------------------------------------------
def _st_hard_sigmoid(z, slope=0.5):
    hard = jnp.clip(slope * z + 0.5, 0.0, 1.0)
    return (hard > 0.5).astype(jnp.float32)


def _mask_time(t, length, new_list, old_list):
    m = (t < length).astype(jnp.float32)
    out = []
    for n, o in zip(new_list, old_list):
        mm = m.reshape((-1,) + (1,) * (n.ndim - 1))
        out.append(mm * n + (1.0 - mm) * o)
    return out


def _ref_bottom_cell(xb, xt, h0, c0, z_tm1, w_bh, w_hh, w_th, b):
    H = h0.shape[1]
    gates = (h0 @ w_hh + b[None, :]) + xb @ w_bh + z_tm1[:, None] * (xt @ w_th)
    f, i, o, g, z = (gates[:, :H], gates[:, H:2 * H], gates[:, 2 * H:3 * H],
                     gates[:, 3 * H:4 * H], gates[:, 4 * H:])
    c1 = (1 - z_tm1)[:, None] * jax.nn.sigmoid(f) * c0 + jax.nn.sigmoid(i) * jnp.tanh(g)
    h1 = jax.nn.sigmoid(o) * jnp.tanh(c1)
    return h1, c1, _st_hard_sigmoid(z).reshape(-1)


def _ref_middle_cell(xb, xt, h0, c0, z_tm1, z_lm1, w_bh, w_hh, w_th, b):
    H = h0.shape[1]
    gates = (h0 @ w_hh + b[None, :]) + z_lm1[:, None] * (xb @ w_bh) \
        + z_tm1[:, None] * (xt @ w_th)
    f, i, o, g, z = (gates[:, :H], gates[:, H:2 * H], gates[:, 2 * H:3 * H],
                     gates[:, 3 * H:4 * H], gates[:, 4 * H:])
    c1 = (1 - z_tm1)[:, None] * jax.nn.sigmoid(f) * c0 + jax.nn.sigmoid(i) * jnp.tanh(g)
    h1 = jax.nn.sigmoid(o) * jnp.tanh(c1)
    mask = jnp.minimum(z_lm1 + z_tm1, 1.0)
    c1 = mask[:, None] * c1 + (1 - mask)[:, None] * c0
    h1 = mask[:, None] * h1 + (1 - mask)[:, None] * h0
    return h1, c1, _st_hard_sigmoid(z).reshape(-1)


def _ref_top_cell(x, h0, c0, z_lm1, w_ih, w_hh, b):
    H = h0.shape[1]
    gates = (h0 @ w_hh + b[None, :]) + x @ w_ih
    f, i, o, g = (gates[:, :H], gates[:, H:2 * H],
                  gates[:, 2 * H:3 * H], gates[:, 3 * H:4 * H])
    c1 = jax.nn.sigmoid(f) * c0 + jax.nn.sigmoid(i) * jnp.tanh(g)
    h1 = jax.nn.sigmoid(o) * jnp.tanh(c1)
    c1 = z_lm1[:, None] * c1 + (1 - z_lm1)[:, None] * c0
    h1 = z_lm1[:, None] * h1 + (1 - z_lm1)[:, None] * h0
    return h1, c1


def hmlstm_reference(x, params, length=None):
    T, B, _ = x.shape
    H = params["w_hh_0"].shape[0]
    L = NUM_LAYERS
    if length is None:
        length = jnp.full((B,), T, jnp.int32)
    else:
        length = jnp.asarray(length, jnp.int32)
    Ht = [jnp.zeros((B, H), jnp.float32) for _ in range(L)]
    C = [jnp.zeros((B, H), jnp.float32) for _ in range(L)]
    Z = [jnp.zeros((B,), jnp.float32) for _ in range(L - 1)]
    outs = []
    for t in range(T):
        h, c, z = _ref_bottom_cell(x[t], Ht[1], Ht[0], C[0], Z[0],
                                   params["w_bh_0"], params["w_hh_0"],
                                   params["w_th_0"], params["b_0"])
        h, c, z = _mask_time(t, length, [h, c, z], [Ht[0], C[0], Z[0]])
        Ht[0], C[0], Z[0] = h, c, z

        h, c, z = _ref_middle_cell(Ht[0], Ht[2], Ht[1], C[1], Z[1], Z[0],
                                   params["w_bh_1"], params["w_hh_1"],
                                   params["w_th_1"], params["b_1"])
        h, c, z = _mask_time(t, length, [h, c, z], [Ht[1], C[1], Z[1]])
        Ht[1], C[1], Z[1] = h, c, z

        h, c = _ref_top_cell(Ht[1], Ht[2], C[2], Z[1],
                             params["w_ih_2"], params["w_hh_2"], params["b_2"])
        h, c = _mask_time(t, length, [h, c], [Ht[2], C[2]])
        Ht[2], C[2] = h, c

        Ht_ = jnp.stack(Ht)                                           # (L, B, H)
        Ht_hat = Ht_.reshape(-1, H) @ params["w_out"].T + params["b_out"]
        g = jax.nn.sigmoid(Ht_.reshape(B, -1) @ params["w_gate"].T + params["b_gate"])
        gated = g.reshape(-1, 1) * Ht_hat
        outs.append(jnp.sum(gated.reshape(L, B, H), axis=0))
    return jnp.stack(outs, 0), (jnp.stack(Ht), jnp.stack(C), jnp.stack(Z))


# ---------------------------------------------------------------------------
if __name__ == "__main__":
    # Full-f32 matmuls everywhere so the kernel/reference comparison is tight.
    jax.config.update("jax_default_matmul_precision", "highest")

    T, B, In, H, L = 8, 2, 16, 32, NUM_LAYERS
    G = 4 * H + 1

    key = jax.random.PRNGKey(0)
    ks = iter(jax.random.split(key, 16))
    stdv = 1.0 / math.sqrt(H)
    u = lambda k, shape: jax.random.uniform(k, shape, jnp.float32, -stdv, stdv)

    params = {
        "w_bh_0": u(next(ks), (In, G)),
        "w_hh_0": u(next(ks), (H, G)),
        "w_th_0": u(next(ks), (H, G)),
        "b_0": jnp.zeros((G,), jnp.float32),
        "w_bh_1": u(next(ks), (H, G)),
        "w_hh_1": u(next(ks), (H, G)),
        "w_th_1": u(next(ks), (H, G)),
        "b_1": jnp.zeros((G,), jnp.float32),
        "w_ih_2": u(next(ks), (H, 4 * H)),
        "w_hh_2": u(next(ks), (H, 4 * H)),
        "b_2": jnp.zeros((4 * H,), jnp.float32),
        "w_out": u(next(ks), (H, H)),     # torch Linear(H, H).weight: (out, in)
        "b_out": u(next(ks), (H,)),
        "w_gate": u(next(ks), (L, L * H)),
        "b_gate": u(next(ks), (L,)),
    }
    x = jax.random.normal(next(ks), (T, B, In), jnp.float32)
    length = jnp.array([T, T - 2], jnp.int32)

    out, (h_f, c_f, z_f) = hmlstm_forward(x, params, length=length)
    jax.block_until_ready((out, h_f, c_f, z_f))

    out_r, (h_r, c_r, z_r) = hmlstm_reference(x, params, length=length)

    assert out.shape == (T, B, H)
    assert h_f.shape == (L, B, H) and c_f.shape == (L, B, H) and z_f.shape == (L - 1, B)
    assert jnp.allclose(out, out_r, atol=1e-4, rtol=1e-4), \
        float(jnp.max(jnp.abs(out - out_r)))
    assert jnp.allclose(h_f, h_r, atol=1e-4, rtol=1e-4), \
        float(jnp.max(jnp.abs(h_f - h_r)))
    assert jnp.allclose(c_f, c_r, atol=1e-4, rtol=1e-4), \
        float(jnp.max(jnp.abs(c_f - c_r)))
    assert jnp.allclose(z_f, z_r)

    print("KERNEL_OK")
</pallas_src>

<mosaic_0001>
module attributes {stable_mosaic.version = 11 : i64} {
  func.func @_hmlstm_seq_kernel(%arg0: i32, %arg1: memref<1x8x16xf32, #tpu.memory_space<vmem>>, %arg2: memref<1x8x1xf32, #tpu.memory_space<vmem>>, %arg3: memref<80x129xf32, #tpu.memory_space<vmem>>, %arg4: memref<1x129xf32, #tpu.memory_space<vmem>>, %arg5: memref<96x129xf32, #tpu.memory_space<vmem>>, %arg6: memref<1x129xf32, #tpu.memory_space<vmem>>, %arg7: memref<64x128xf32, #tpu.memory_space<vmem>>, %arg8: memref<1x128xf32, #tpu.memory_space<vmem>>, %arg9: memref<1x8x128xf32, #tpu.memory_space<vmem>>, %arg10: memref<3x8x32xf32, #tpu.memory_space<vmem>>, %arg11: memref<3x8x32xf32, #tpu.memory_space<vmem>>, %arg12: memref<2x8x1xf32, #tpu.memory_space<vmem>>) attributes {dimension_semantics = [#tpu.dimension_semantics<arbitrary>], iteration_bounds = array<i64: 8>, scalar_prefetch = 0 : i64, scratch_operands = 0 : i64, tpu.core_type = #tpu.core_type<tc>, window_params = [{transform_indices = @transform_0, window_bounds = array<i64: 1, 8, 16>}, {transform_indices = @transform_1, window_bounds = array<i64: 1, 8, 1>}, {pipeline_mode = #tpu.pipeline_mode<synchronous>, transform_indices = @transform_2, window_bounds = array<i64: 80, 129>}, {pipeline_mode = #tpu.pipeline_mode<synchronous>, transform_indices = @transform_3, window_bounds = array<i64: 1, 129>}, {pipeline_mode = #tpu.pipeline_mode<synchronous>, transform_indices = @transform_4, window_bounds = array<i64: 96, 129>}, {pipeline_mode = #tpu.pipeline_mode<synchronous>, transform_indices = @transform_5, window_bounds = array<i64: 1, 129>}, {pipeline_mode = #tpu.pipeline_mode<synchronous>, transform_indices = @transform_6, window_bounds = array<i64: 64, 128>}, {pipeline_mode = #tpu.pipeline_mode<synchronous>, transform_indices = @transform_7, window_bounds = array<i64: 1, 128>}, {transform_indices = @transform_8, window_bounds = array<i64: 1, 8, 128>}, {pipeline_mode = #tpu.pipeline_mode<synchronous>, transform_indices = @transform_9, window_bounds = array<i64: 3, 8, 32>}, {pipeline_mode = #tpu.pipeline_mode<synchronous>, transform_indices = @transform_10, window_bounds = array<i64: 3, 8, 32>}, {pipeline_mode = #tpu.pipeline_mode<synchronous>, transform_indices = @transform_11, window_bounds = array<i64: 2, 8, 1>}]} {
    %c0_i32 = arith.constant 0 : i32
    %0 = arith.cmpi eq, %arg0, %c0_i32 : i32
    %1 = arith.extui %0 : i1 to i32
    %c0_i32_0 = arith.constant 0 : i32
    %2 = arith.cmpi ne, %1, %c0_i32_0 : i32
    scf.if %2 {
      %cst_95 = arith.constant 0.000000e+00 : f32
      %251 = vector.broadcast %cst_95 : f32 to vector<3x8x32xf32>
      %c0_96 = arith.constant 0 : index
      %c0_97 = arith.constant 0 : index
      %c0_98 = arith.constant 0 : index
      %252 = vector.load %arg10[%c0_96, %c0_97, %c0_98] : memref<3x8x32xf32, #tpu.memory_space<vmem>>, vector<3x8x32xf32>
      tpu.vector_store %arg10[%c0_96, %c0_97, %c0_98], %251 {strides = array<i32>} : memref<3x8x32xf32, #tpu.memory_space<vmem>>, vector<3x8x32xf32>,
      %cst_99 = arith.constant 0.000000e+00 : f32
      %253 = vector.broadcast %cst_99 : f32 to vector<3x8x32xf32>
      %c0_100 = arith.constant 0 : index
      %c0_101 = arith.constant 0 : index
      %c0_102 = arith.constant 0 : index
      %254 = vector.load %arg11[%c0_100, %c0_101, %c0_102] : memref<3x8x32xf32, #tpu.memory_space<vmem>>, vector<3x8x32xf32>
      tpu.vector_store %arg11[%c0_100, %c0_101, %c0_102], %253 {strides = array<i32>} : memref<3x8x32xf32, #tpu.memory_space<vmem>>, vector<3x8x32xf32>,
      %cst_103 = arith.constant 0.000000e+00 : f32
      %255 = vector.broadcast %cst_103 : f32 to vector<2x8x1xf32>
      %c0_104 = arith.constant 0 : index
      %c0_105 = arith.constant 0 : index
      %c0_106 = arith.constant 0 : index
      %256 = vector.load %arg12[%c0_104, %c0_105, %c0_106] : memref<2x8x1xf32, #tpu.memory_space<vmem>>, vector<2x8x1xf32>
      tpu.vector_store %arg12[%c0_104, %c0_105, %c0_106], %255 {strides = array<i32>} : memref<2x8x1xf32, #tpu.memory_space<vmem>>, vector<2x8x1xf32>,
    } else {
    }
    %c0 = arith.constant 0 : index
    %c0_1 = arith.constant 0 : index
    %c0_2 = arith.constant 0 : index
    %3 = vector.load %arg1[%c0, %c0_1, %c0_2] : memref<1x8x16xf32, #tpu.memory_space<vmem>>, vector<1x8x16xf32>
    %4 = vector.shape_cast %3 : vector<1x8x16xf32> to vector<8x16xf32>
    %c0_3 = arith.constant 0 : index
    %c0_4 = arith.constant 0 : index
    %c0_5 = arith.constant 0 : index
    %5 = vector.load %arg2[%c0_3, %c0_4, %c0_5] : memref<1x8x1xf32, #tpu.memory_space<vmem>>, vector<1x8x1xf32>
    %6 = vector.shape_cast %5 : vector<1x8x1xf32> to vector<8x1xf32>
    %c0_6 = arith.constant 0 : index
    %c0_7 = arith.constant 0 : index
    %c0_8 = arith.constant 0 : index
    %7 = vector.load %arg10[%c0_6, %c0_7, %c0_8] : memref<3x8x32xf32, #tpu.memory_space<vmem>>, vector<1x8x32xf32>
    %8 = vector.shape_cast %7 : vector<1x8x32xf32> to vector<8x32xf32>
    %c1 = arith.constant 1 : index
    %c0_9 = arith.constant 0 : index
    %c0_10 = arith.constant 0 : index
    %9 = vector.load %arg10[%c1, %c0_9, %c0_10] : memref<3x8x32xf32, #tpu.memory_space<vmem>>, vector<1x8x32xf32>
    %10 = vector.shape_cast %9 : vector<1x8x32xf32> to vector<8x32xf32>
    %c2 = arith.constant 2 : index
    %c0_11 = arith.constant 0 : index
    %c0_12 = arith.constant 0 : index
    %11 = vector.load %arg10[%c2, %c0_11, %c0_12] : memref<3x8x32xf32, #tpu.memory_space<vmem>>, vector<1x8x32xf32>
    %12 = vector.shape_cast %11 : vector<1x8x32xf32> to vector<8x32xf32>
    %c0_13 = arith.constant 0 : index
    %c0_14 = arith.constant 0 : index
    %c0_15 = arith.constant 0 : index
    %13 = vector.load %arg11[%c0_13, %c0_14, %c0_15] : memref<3x8x32xf32, #tpu.memory_space<vmem>>, vector<1x8x32xf32>
    %14 = vector.shape_cast %13 : vector<1x8x32xf32> to vector<8x32xf32>
    %c1_16 = arith.constant 1 : index
    %c0_17 = arith.constant 0 : index
    %c0_18 = arith.constant 0 : index
    %15 = vector.load %arg11[%c1_16, %c0_17, %c0_18] : memref<3x8x32xf32, #tpu.memory_space<vmem>>, vector<1x8x32xf32>
    %16 = vector.shape_cast %15 : vector<1x8x32xf32> to vector<8x32xf32>
    %c2_19 = arith.constant 2 : index
    %c0_20 = arith.constant 0 : index
    %c0_21 = arith.constant 0 : index
    %17 = vector.load %arg11[%c2_19, %c0_20, %c0_21] : memref<3x8x32xf32, #tpu.memory_space<vmem>>, vector<1x8x32xf32>
    %18 = vector.shape_cast %17 : vector<1x8x32xf32> to vector<8x32xf32>
    %c0_22 = arith.constant 0 : index
    %c0_23 = arith.constant 0 : index
    %c0_24 = arith.constant 0 : index
    %19 = vector.load %arg12[%c0_22, %c0_23, %c0_24] : memref<2x8x1xf32, #tpu.memory_space<vmem>>, vector<1x8x1xf32>
    %20 = vector.shape_cast %19 : vector<1x8x1xf32> to vector<8x1xf32>
    %c1_25 = arith.constant 1 : index
    %c0_26 = arith.constant 0 : index
    %c0_27 = arith.constant 0 : index
    %21 = vector.load %arg12[%c1_25, %c0_26, %c0_27] : memref<2x8x1xf32, #tpu.memory_space<vmem>>, vector<1x8x1xf32>
    %22 = vector.shape_cast %21 : vector<1x8x1xf32> to vector<8x1xf32>
    %23 = vector.broadcast %20 : vector<8x1xf32> to vector<8x32xf32>
    %24 = arith.mulf %23, %10 : vector<8x32xf32>
    %25 = tpu.concatenate %8, %4, %24 in 1 : vector<8x32xf32>, vector<8x16xf32>, vector<8x32xf32> -> vector<8x80xf32>
    %c0_28 = arith.constant 0 : index
    %c0_29 = arith.constant 0 : index
    %26 = vector.load %arg3[%c0_28, %c0_29] : memref<80x129xf32, #tpu.memory_space<vmem>>, vector<80x129xf32>
    %cst = arith.constant dense<0.000000e+00> : vector<8x129xf32>
    %27 = tpu.matmul %25, %26, %cst {dimension_numbers = #tpu.dot_dimension_numbers<[1], [0], [0], [1], [0, 0, 1, 1], [], []>, precision = #tpu.contract_precision<fp32>} : vector<8x80xf32>, vector<80x129xf32>, vector<8x129xf32> -> vector<8x129xf32>
    %c0_30 = arith.constant 0 : index
    %c0_31 = arith.constant 0 : index
    %28 = vector.load %arg4[%c0_30, %c0_31] : memref<1x129xf32, #tpu.memory_space<vmem>>, vector<1x129xf32>
    %29 = vector.broadcast %28 : vector<1x129xf32> to vector<8x129xf32>
    %30 = arith.addf %27, %29 : vector<8x129xf32>
    %31 = vector.extract_strided_slice %30 {offsets = [0, 0], sizes = [8, 32], strides = [1, 1]} : vector<8x129xf32> to vector<8x32xf32>
    %32 = vector.extract_strided_slice %30 {offsets = [0, 32], sizes = [8, 32], strides = [1, 1]} : vector<8x129xf32> to vector<8x32xf32>
    %33 = vector.extract_strided_slice %30 {offsets = [0, 64], sizes = [8, 32], strides = [1, 1]} : vector<8x129xf32> to vector<8x32xf32>
    %34 = vector.extract_strided_slice %30 {offsets = [0, 96], sizes = [8, 32], strides = [1, 1]} : vector<8x129xf32> to vector<8x32xf32>
    %35 = vector.extract_strided_slice %30 {offsets = [0, 128], sizes = [8, 1], strides = [1, 1]} : vector<8x129xf32> to vector<8x1xf32>
    %cst_32 = arith.constant 1.000000e+00 : f32
    %36 = vector.broadcast %cst_32 : f32 to vector<8x1xf32>
    %37 = arith.subf %36, %20 : vector<8x1xf32>
    %38 = arith.negf %31 : vector<8x32xf32>
    %39 = math.exp %38 : vector<8x32xf32>
    %cst_33 = arith.constant 1.000000e+00 : f32
    %40 = vector.broadcast %cst_33 : f32 to vector<8x32xf32>
    %41 = arith.addf %40, %39 : vector<8x32xf32>
    %42 = arith.divf %40, %41 : vector<8x32xf32>
    %43 = vector.broadcast %37 : vector<8x1xf32> to vector<8x32xf32>
    %44 = arith.mulf %43, %42 : vector<8x32xf32>
    %45 = arith.mulf %44, %14 : vector<8x32xf32>
    %46 = arith.negf %32 : vector<8x32xf32>
    %47 = math.exp %46 : vector<8x32xf32>
    %cst_34 = arith.constant 1.000000e+00 : f32
    %48 = vector.broadcast %cst_34 : f32 to vector<8x32xf32>
    %49 = arith.addf %48, %47 : vector<8x32xf32>
    %50 = arith.divf %48, %49 : vector<8x32xf32>
    %51 = math.tanh %34 : vector<8x32xf32>
    %52 = arith.mulf %50, %51 : vector<8x32xf32>
    %53 = arith.addf %45, %52 : vector<8x32xf32>
    %54 = arith.negf %33 : vector<8x32xf32>
    %55 = math.exp %54 : vector<8x32xf32>
    %cst_35 = arith.constant 1.000000e+00 : f32
    %56 = vector.broadcast %cst_35 : f32 to vector<8x32xf32>
    %57 = arith.addf %56, %55 : vector<8x32xf32>
    %58 = arith.divf %56, %57 : vector<8x32xf32>
    %59 = math.tanh %53 : vector<8x32xf32>
    %60 = arith.mulf %58, %59 : vector<8x32xf32>
    %cst_36 = arith.constant 0.000000e+00 : f32
    %61 = vector.broadcast %cst_36 : f32 to vector<8x1xf32>
    %62 = arith.cmpf ogt, %35, %61 : vector<8x1xf32>
    %63 = arith.extui %62 : vector<8x1xi1> to vector<8x1xi32>
    %64 = arith.sitofp %63 : vector<8x1xi32> to vector<8x1xf32>
    %65 = vector.broadcast %6 : vector<8x1xf32> to vector<8x32xf32>
    %66 = arith.mulf %65, %60 : vector<8x32xf32>
    %cst_37 = arith.constant 1.000000e+00 : f32
    %67 = vector.broadcast %cst_37 : f32 to vector<8x1xf32>
    %68 = arith.subf %67, %6 : vector<8x1xf32>
    %69 = vector.broadcast %68 : vector<8x1xf32> to vector<8x32xf32>
    %70 = arith.mulf %69, %8 : vector<8x32xf32>
    %71 = arith.addf %66, %70 : vector<8x32xf32>
    %72 = vector.broadcast %6 : vector<8x1xf32> to vector<8x32xf32>
    %73 = arith.mulf %72, %53 : vector<8x32xf32>
    %cst_38 = arith.constant 1.000000e+00 : f32
    %74 = vector.broadcast %cst_38 : f32 to vector<8x1xf32>
    %75 = arith.subf %74, %6 : vector<8x1xf32>
    %76 = vector.broadcast %75 : vector<8x1xf32> to vector<8x32xf32>
    %77 = arith.mulf %76, %14 : vector<8x32xf32>
    %78 = arith.addf %73, %77 : vector<8x32xf32>
    %79 = arith.mulf %6, %64 : vector<8x1xf32>
    %cst_39 = arith.constant 1.000000e+00 : f32
    %80 = vector.broadcast %cst_39 : f32 to vector<8x1xf32>
    %81 = arith.subf %80, %6 : vector<8x1xf32>
    %82 = arith.mulf %81, %20 : vector<8x1xf32>
    %83 = arith.addf %79, %82 : vector<8x1xf32>
    %84 = vector.broadcast %83 : vector<8x1xf32> to vector<8x32xf32>
    %85 = arith.mulf %84, %71 : vector<8x32xf32>
    %86 = vector.broadcast %22 : vector<8x1xf32> to vector<8x32xf32>
    %87 = arith.mulf %86, %12 : vector<8x32xf32>
    %88 = tpu.concatenate %10, %85, %87 in 1 : vector<8x32xf32>, vector<8x32xf32>, vector<8x32xf32> -> vector<8x96xf32>
    %c0_40 = arith.constant 0 : index
    %c0_41 = arith.constant 0 : index
    %89 = vector.load %arg5[%c0_40, %c0_41] : memref<96x129xf32, #tpu.memory_space<vmem>>, vector<96x129xf32>
    %cst_42 = arith.constant dense<0.000000e+00> : vector<8x129xf32>
    %90 = tpu.matmul %88, %89, %cst_42 {dimension_numbers = #tpu.dot_dimension_numbers<[1], [0], [0], [1], [0, 0, 1, 1], [], []>, precision = #tpu.contract_precision<fp32>} : vector<8x96xf32>, vector<96x129xf32>, vector<8x129xf32> -> vector<8x129xf32>
    %c0_43 = arith.constant 0 : index
    %c0_44 = arith.constant 0 : index
    %91 = vector.load %arg6[%c0_43, %c0_44] : memref<1x129xf32, #tpu.memory_space<vmem>>, vector<1x129xf32>
    %92 = vector.broadcast %91 : vector<1x129xf32> to vector<8x129xf32>
    %93 = arith.addf %90, %92 : vector<8x129xf32>
    %94 = vector.extract_strided_slice %93 {offsets = [0, 0], sizes = [8, 32], strides = [1, 1]} : vector<8x129xf32> to vector<8x32xf32>
    %95 = vector.extract_strided_slice %93 {offsets = [0, 32], sizes = [8, 32], strides = [1, 1]} : vector<8x129xf32> to vector<8x32xf32>
    %96 = vector.extract_strided_slice %93 {offsets = [0, 64], sizes = [8, 32], strides = [1, 1]} : vector<8x129xf32> to vector<8x32xf32>
    %97 = vector.extract_strided_slice %93 {offsets = [0, 96], sizes = [8, 32], strides = [1, 1]} : vector<8x129xf32> to vector<8x32xf32>
    %98 = vector.extract_strided_slice %93 {offsets = [0, 128], sizes = [8, 1], strides = [1, 1]} : vector<8x129xf32> to vector<8x1xf32>
    %cst_45 = arith.constant 1.000000e+00 : f32
    %99 = vector.broadcast %cst_45 : f32 to vector<8x1xf32>
    %100 = arith.subf %99, %22 : vector<8x1xf32>
    %101 = arith.negf %94 : vector<8x32xf32>
    %102 = math.exp %101 : vector<8x32xf32>
    %cst_46 = arith.constant 1.000000e+00 : f32
    %103 = vector.broadcast %cst_46 : f32 to vector<8x32xf32>
    %104 = arith.addf %103, %102 : vector<8x32xf32>
    %105 = arith.divf %103, %104 : vector<8x32xf32>
    %106 = vector.broadcast %100 : vector<8x1xf32> to vector<8x32xf32>
    %107 = arith.mulf %106, %105 : vector<8x32xf32>
    %108 = arith.mulf %107, %16 : vector<8x32xf32>
    %109 = arith.negf %95 : vector<8x32xf32>
    %110 = math.exp %109 : vector<8x32xf32>
    %cst_47 = arith.constant 1.000000e+00 : f32
    %111 = vector.broadcast %cst_47 : f32 to vector<8x32xf32>
    %112 = arith.addf %111, %110 : vector<8x32xf32>
    %113 = arith.divf %111, %112 : vector<8x32xf32>
    %114 = math.tanh %97 : vector<8x32xf32>
    %115 = arith.mulf %113, %114 : vector<8x32xf32>
    %116 = arith.addf %108, %115 : vector<8x32xf32>
    %117 = arith.negf %96 : vector<8x32xf32>
    %118 = math.exp %117 : vector<8x32xf32>
    %cst_48 = arith.constant 1.000000e+00 : f32
    %119 = vector.broadcast %cst_48 : f32 to vector<8x32xf32>
    %120 = arith.addf %119, %118 : vector<8x32xf32>
    %121 = arith.divf %119, %120 : vector<8x32xf32>
    %122 = math.tanh %116 : vector<8x32xf32>
    %123 = arith.mulf %121, %122 : vector<8x32xf32>
    %124 = arith.addf %83, %22 : vector<8x1xf32>
    %cst_49 = arith.constant 1.000000e+00 : f32
    %125 = vector.broadcast %cst_49 : f32 to vector<8x1xf32>
    %126 = arith.minimumf %124, %125 : vector<8x1xf32>
    %127 = vector.broadcast %126 : vector<8x1xf32> to vector<8x32xf32>
    %128 = arith.mulf %127, %116 : vector<8x32xf32>
    %cst_50 = arith.constant 1.000000e+00 : f32
    %129 = vector.broadcast %cst_50 : f32 to vector<8x1xf32>
    %130 = arith.subf %129, %126 : vector<8x1xf32>
    %131 = vector.broadcast %130 : vector<8x1xf32> to vector<8x32xf32>
    %132 = arith.mulf %131, %16 : vector<8x32xf32>
    %133 = arith.addf %128, %132 : vector<8x32xf32>
    %134 = vector.broadcast %126 : vector<8x1xf32> to vector<8x32xf32>
    %135 = arith.mulf %134, %123 : vector<8x32xf32>
    %cst_51 = arith.constant 1.000000e+00 : f32
    %136 = vector.broadcast %cst_51 : f32 to vector<8x1xf32>
    %137 = arith.subf %136, %126 : vector<8x1xf32>
    %138 = vector.broadcast %137 : vector<8x1xf32> to vector<8x32xf32>
    %139 = arith.mulf %138, %10 : vector<8x32xf32>
    %140 = arith.addf %135, %139 : vector<8x32xf32>
    %cst_52 = arith.constant 0.000000e+00 : f32
    %141 = vector.broadcast %cst_52 : f32 to vector<8x1xf32>
    %142 = arith.cmpf ogt, %98, %141 : vector<8x1xf32>
    %143 = arith.extui %142 : vector<8x1xi1> to vector<8x1xi32>
    %144 = arith.sitofp %143 : vector<8x1xi32> to vector<8x1xf32>
    %145 = vector.broadcast %6 : vector<8x1xf32> to vector<8x32xf32>
    %146 = arith.mulf %145, %140 : vector<8x32xf32>
    %cst_53 = arith.constant 1.000000e+00 : f32
    %147 = vector.broadcast %cst_53 : f32 to vector<8x1xf32>
    %148 = arith.subf %147, %6 : vector<8x1xf32>
    %149 = vector.broadcast %148 : vector<8x1xf32> to vector<8x32xf32>
    %150 = arith.mulf %149, %10 : vector<8x32xf32>
    %151 = arith.addf %146, %150 : vector<8x32xf32>
    %152 = vector.broadcast %6 : vector<8x1xf32> to vector<8x32xf32>
    %153 = arith.mulf %152, %133 : vector<8x32xf32>
    %cst_54 = arith.constant 1.000000e+00 : f32
    %154 = vector.broadcast %cst_54 : f32 to vector<8x1xf32>
    %155 = arith.subf %154, %6 : vector<8x1xf32>
    %156 = vector.broadcast %155 : vector<8x1xf32> to vector<8x32xf32>
    %157 = arith.mulf %156, %16 : vector<8x32xf32>
    %158 = arith.addf %153, %157 : vector<8x32xf32>
    %159 = arith.mulf %6, %144 : vector<8x1xf32>
    %cst_55 = arith.constant 1.000000e+00 : f32
    %160 = vector.broadcast %cst_55 : f32 to vector<8x1xf32>
    %161 = arith.subf %160, %6 : vector<8x1xf32>
    %162 = arith.mulf %161, %22 : vector<8x1xf32>
    %163 = arith.addf %159, %162 : vector<8x1xf32>
    %164 = tpu.concatenate %12, %151 in 1 : vector<8x32xf32>, vector<8x32xf32> -> vector<8x64xf32>
    %c0_56 = arith.constant 0 : index
    %c0_57 = arith.constant 0 : index
    %165 = vector.load %arg7[%c0_56, %c0_57] : memref<64x128xf32, #tpu.memory_space<vmem>>, vector<64x128xf32>
    %cst_58 = arith.constant dense<0.000000e+00> : vector<8x128xf32>
    %166 = tpu.matmul %164, %165, %cst_58 {dimension_numbers = #tpu.dot_dimension_numbers<[1], [0], [0], [1], [0, 0, 1, 1], [], []>, precision = #tpu.contract_precision<fp32>} : vector<8x64xf32>, vector<64x128xf32>, vector<8x128xf32> -> vector<8x128xf32>
    %c0_59 = arith.constant 0 : index
    %c0_60 = arith.constant 0 : index
    %167 = vector.load %arg8[%c0_59, %c0_60] : memref<1x128xf32, #tpu.memory_space<vmem>>, vector<1x128xf32>
    %168 = vector.broadcast %167 : vector<1x128xf32> to vector<8x128xf32>
    %169 = arith.addf %166, %168 : vector<8x128xf32>
    %170 = vector.extract_strided_slice %169 {offsets = [0, 0], sizes = [8, 32], strides = [1, 1]} : vector<8x128xf32> to vector<8x32xf32>
    %171 = vector.extract_strided_slice %169 {offsets = [0, 32], sizes = [8, 32], strides = [1, 1]} : vector<8x128xf32> to vector<8x32xf32>
    %172 = vector.extract_strided_slice %169 {offsets = [0, 64], sizes = [8, 32], strides = [1, 1]} : vector<8x128xf32> to vector<8x32xf32>
    %173 = vector.extract_strided_slice %169 {offsets = [0, 96], sizes = [8, 32], strides = [1, 1]} : vector<8x128xf32> to vector<8x32xf32>
    %174 = arith.negf %170 : vector<8x32xf32>
    %175 = math.exp %174 : vector<8x32xf32>
    %cst_61 = arith.constant 1.000000e+00 : f32
    %176 = vector.broadcast %cst_61 : f32 to vector<8x32xf32>
    %177 = arith.addf %176, %175 : vector<8x32xf32>
    %178 = arith.divf %176, %177 : vector<8x32xf32>
    %179 = arith.mulf %178, %18 : vector<8x32xf32>
    %180 = arith.negf %171 : vector<8x32xf32>
    %181 = math.exp %180 : vector<8x32xf32>
    %cst_62 = arith.constant 1.000000e+00 : f32
    %182 = vector.broadcast %cst_62 : f32 to vector<8x32xf32>
    %183 = arith.addf %182, %181 : vector<8x32xf32>
    %184 = arith.divf %182, %183 : vector<8x32xf32>
    %185 = math.tanh %173 : vector<8x32xf32>
    %186 = arith.mulf %184, %185 : vector<8x32xf32>
    %187 = arith.addf %179, %186 : vector<8x32xf32>
    %188 = arith.negf %172 : vector<8x32xf32>
    %189 = math.exp %188 : vector<8x32xf32>
    %cst_63 = arith.constant 1.000000e+00 : f32
    %190 = vector.broadcast %cst_63 : f32 to vector<8x32xf32>
    %191 = arith.addf %190, %189 : vector<8x32xf32>
    %192 = arith.divf %190, %191 : vector<8x32xf32>
    %193 = math.tanh %187 : vector<8x32xf32>
    %194 = arith.mulf %192, %193 : vector<8x32xf32>
    %195 = vector.broadcast %163 : vector<8x1xf32> to vector<8x32xf32>
    %196 = arith.mulf %195, %187 : vector<8x32xf32>
    %cst_64 = arith.constant 1.000000e+00 : f32
    %197 = vector.broadcast %cst_64 : f32 to vector<8x1xf32>
    %198 = arith.subf %197, %163 : vector<8x1xf32>
    %199 = vector.broadcast %198 : vector<8x1xf32> to vector<8x32xf32>
    %200 = arith.mulf %199, %18 : vector<8x32xf32>
    %201 = arith.addf %196, %200 : vector<8x32xf32>
    %202 = vector.broadcast %163 : vector<8x1xf32> to vector<8x32xf32>
    %203 = arith.mulf %202, %194 : vector<8x32xf32>
    %cst_65 = arith.constant 1.000000e+00 : f32
    %204 = vector.broadcast %cst_65 : f32 to vector<8x1xf32>
    %205 = arith.subf %204, %163 : vector<8x1xf32>
    %206 = vector.broadcast %205 : vector<8x1xf32> to vector<8x32xf32>
    %207 = arith.mulf %206, %12 : vector<8x32xf32>
    %208 = arith.addf %203, %207 : vector<8x32xf32>
    %209 = vector.broadcast %6 : vector<8x1xf32> to vector<8x32xf32>
    %210 = arith.mulf %209, %208 : vector<8x32xf32>
    %cst_66 = arith.constant 1.000000e+00 : f32
    %211 = vector.broadcast %cst_66 : f32 to vector<8x1xf32>
    %212 = arith.subf %211, %6 : vector<8x1xf32>
    %213 = vector.broadcast %212 : vector<8x1xf32> to vector<8x32xf32>
    %214 = arith.mulf %213, %12 : vector<8x32xf32>
    %215 = arith.addf %210, %214 : vector<8x32xf32>
    %216 = vector.broadcast %6 : vector<8x1xf32> to vector<8x32xf32>
    %217 = arith.mulf %216, %201 : vector<8x32xf32>
    %cst_67 = arith.constant 1.000000e+00 : f32
    %218 = vector.broadcast %cst_67 : f32 to vector<8x1xf32>
    %219 = arith.subf %218, %6 : vector<8x1xf32>
    %220 = vector.broadcast %219 : vector<8x1xf32> to vector<8x32xf32>
    %221 = arith.mulf %220, %18 : vector<8x32xf32>
    %222 = arith.addf %217, %221 : vector<8x32xf32>
    %c0_68 = arith.constant 0 : index
    %c0_69 = arith.constant 0 : index
    %c0_70 = arith.constant 0 : index
    %223 = vector.load %arg10[%c0_68, %c0_69, %c0_70] : memref<3x8x32xf32, #tpu.memory_space<vmem>>, vector<1x8x32xf32>
    %224 = vector.shape_cast %223 : vector<1x8x32xf32> to vector<8x32xf32>
    %225 = vector.shape_cast %71 : vector<8x32xf32> to vector<1x8x32xf32>
    tpu.vector_store %arg10[%c0_68, %c0_69, %c0_70], %225 {strides = array<i32>} : memref<3x8x32xf32, #tpu.memory_space<vmem>>, vector<1x8x32xf32>,
    %c1_71 = arith.constant 1 : index
    %c0_72 = arith.constant 0 : index
    %c0_73 = arith.constant 0 : index
    %226 = vector.load %arg10[%c1_71, %c0_72, %c0_73] : memref<3x8x32xf32, #tpu.memory_space<vmem>>, vector<1x8x32xf32>
    %227 = vector.shape_cast %226 : vector<1x8x32xf32> to vector<8x32xf32>
    %228 = vector.shape_cast %151 : vector<8x32xf32> to vector<1x8x32xf32>
    tpu.vector_store %arg10[%c1_71, %c0_72, %c0_73], %228 {strides = array<i32>} : memref<3x8x32xf32, #tpu.memory_space<vmem>>, vector<1x8x32xf32>,
    %c2_74 = arith.constant 2 : index
    %c0_75 = arith.constant 0 : index
    %c0_76 = arith.constant 0 : index
    %229 = vector.load %arg10[%c2_74, %c0_75, %c0_76] : memref<3x8x32xf32, #tpu.memory_space<vmem>>, vector<1x8x32xf32>
    %230 = vector.shape_cast %229 : vector<1x8x32xf32> to vector<8x32xf32>
    %231 = vector.shape_cast %215 : vector<8x32xf32> to vector<1x8x32xf32>
    tpu.vector_store %arg10[%c2_74, %c0_75, %c0_76], %231 {strides = array<i32>} : memref<3x8x32xf32, #tpu.memory_space<vmem>>, vector<1x8x32xf32>,
    %c0_77 = arith.constant 0 : index
    %c0_78 = arith.constant 0 : index
    %c0_79 = arith.constant 0 : index
    %232 = vector.load %arg11[%c0_77, %c0_78, %c0_79] : memref<3x8x32xf32, #tpu.memory_space<vmem>>, vector<1x8x32xf32>
    %233 = vector.shape_cast %232 : vector<1x8x32xf32> to vector<8x32xf32>
    %234 = vector.shape_cast %78 : vector<8x32xf32> to vector<1x8x32xf32>
    tpu.vector_store %arg11[%c0_77, %c0_78, %c0_79], %234 {strides = array<i32>} : memref<3x8x32xf32, #tpu.memory_space<vmem>>, vector<1x8x32xf32>,
    %c1_80 = arith.constant 1 : index
    %c0_81 = arith.constant 0 : index
    %c0_82 = arith.constant 0 : index
    %235 = vector.load %arg11[%c1_80, %c0_81, %c0_82] : memref<3x8x32xf32, #tpu.memory_space<vmem>>, vector<1x8x32xf32>
    %236 = vector.shape_cast %235 : vector<1x8x32xf32> to vector<8x32xf32>
    %237 = vector.shape_cast %158 : vector<8x32xf32> to vector<1x8x32xf32>
    tpu.vector_store %arg11[%c1_80, %c0_81, %c0_82], %237 {strides = array<i32>} : memref<3x8x32xf32, #tpu.memory_space<vmem>>, vector<1x8x32xf32>,
    %c2_83 = arith.constant 2 : index
    %c0_84 = arith.constant 0 : index
    %c0_85 = arith.constant 0 : index
    %238 = vector.load %arg11[%c2_83, %c0_84, %c0_85] : memref<3x8x32xf32, #tpu.memory_space<vmem>>, vector<1x8x32xf32>
    %239 = vector.shape_cast %238 : vector<1x8x32xf32> to vector<8x32xf32>
    %240 = vector.shape_cast %222 : vector<8x32xf32> to vector<1x8x32xf32>
    tpu.vector_store %arg11[%c2_83, %c0_84, %c0_85], %240 {strides = array<i32>} : memref<3x8x32xf32, #tpu.memory_space<vmem>>, vector<1x8x32xf32>,
    %c0_86 = arith.constant 0 : index
    %c0_87 = arith.constant 0 : index
    %c0_88 = arith.constant 0 : index
    %241 = vector.load %arg12[%c0_86, %c0_87, %c0_88] : memref<2x8x1xf32, #tpu.memory_space<vmem>>, vector<1x8x1xf32>
    %242 = vector.shape_cast %241 : vector<1x8x1xf32> to vector<8x1xf32>
    %243 = vector.shape_cast %83 : vector<8x1xf32> to vector<1x8x1xf32>
    tpu.vector_store %arg12[%c0_86, %c0_87, %c0_88], %243 {strides = array<i32>} : memref<2x8x1xf32, #tpu.memory_space<vmem>>, vector<1x8x1xf32>,
    %c1_89 = arith.constant 1 : index
    %c0_90 = arith.constant 0 : index
    %c0_91 = arith.constant 0 : index
    %244 = vector.load %arg12[%c1_89, %c0_90, %c0_91] : memref<2x8x1xf32, #tpu.memory_space<vmem>>, vector<1x8x1xf32>
    %245 = vector.shape_cast %244 : vector<1x8x1xf32> to vector<8x1xf32>
    %246 = vector.shape_cast %163 : vector<8x1xf32> to vector<1x8x1xf32>
    tpu.vector_store %arg12[%c1_89, %c0_90, %c0_91], %246 {strides = array<i32>} : memref<2x8x1xf32, #tpu.memory_space<vmem>>, vector<1x8x1xf32>,
    %247 = tpu.concatenate %71, %151, %215, %215 in 1 : vector<8x32xf32>, vector<8x32xf32>, vector<8x32xf32>, vector<8x32xf32> -> vector<8x128xf32>
    %c0_92 = arith.constant 0 : index
    %c0_93 = arith.constant 0 : index
    %c0_94 = arith.constant 0 : index
    %248 = vector.load %arg9[%c0_92, %c0_93, %c0_94] : memref<1x8x128xf32, #tpu.memory_space<vmem>>, vector<1x8x128xf32>
    %249 = vector.shape_cast %248 : vector<1x8x128xf32> to vector<8x128xf32>
    %250 = vector.shape_cast %247 : vector<8x128xf32> to vector<1x8x128xf32>
    tpu.vector_store %arg9[%c0_92, %c0_93, %c0_94], %250 {strides = array<i32>} : memref<1x8x128xf32, #tpu.memory_space<vmem>>, vector<1x8x128xf32>,
    return
  }
  func.func @transform_0(%arg0: i32) -> (i32, i32, i32) {
    %c0_i32 = arith.constant 0 : i32
    %c0_i32_0 = arith.constant 0 : i32
    %c0_i32_1 = arith.constant 0 : i32
    return %arg0, %c0_i32, %c0_i32_0 : i32, i32, i32
  }
  func.func @transform_1(%arg0: i32) -> (i32, i32, i32) {
    %c0_i32 = arith.constant 0 : i32
    %c0_i32_0 = arith.constant 0 : i32
    %c0_i32_1 = arith.constant 0 : i32
    return %arg0, %c0_i32, %c0_i32_0 : i32, i32, i32
  }
  func.func @transform_2(%arg0: i32) -> (i32, i32) {
    %c0_i32 = arith.constant 0 : i32
    %c0_i32_0 = arith.constant 0 : i32
    %c0_i32_1 = arith.constant 0 : i32
    return %c0_i32, %c0_i32_0 : i32, i32
  }
  func.func @transform_3(%arg0: i32) -> (i32, i32) {
    %c0_i32 = arith.constant 0 : i32
    %c0_i32_0 = arith.constant 0 : i32
    %c0_i32_1 = arith.constant 0 : i32
    return %c0_i32, %c0_i32_0 : i32, i32
  }
  func.func @transform_4(%arg0: i32) -> (i32, i32) {
    %c0_i32 = arith.constant 0 : i32
    %c0_i32_0 = arith.constant 0 : i32
    %c0_i32_1 = arith.constant 0 : i32
    return %c0_i32, %c0_i32_0 : i32, i32
  }
  func.func @transform_5(%arg0: i32) -> (i32, i32) {
    %c0_i32 = arith.constant 0 : i32
    %c0_i32_0 = arith.constant 0 : i32
    %c0_i32_1 = arith.constant 0 : i32
    return %c0_i32, %c0_i32_0 : i32, i32
  }
  func.func @transform_6(%arg0: i32) -> (i32, i32) {
    %c0_i32 = arith.constant 0 : i32
    %c0_i32_0 = arith.constant 0 : i32
    %c0_i32_1 = arith.constant 0 : i32
    return %c0_i32, %c0_i32_0 : i32, i32
  }
  func.func @transform_7(%arg0: i32) -> (i32, i32) {
    %c0_i32 = arith.constant 0 : i32
    %c0_i32_0 = arith.constant 0 : i32
    %c0_i32_1 = arith.constant 0 : i32
    return %c0_i32, %c0_i32_0 : i32, i32
  }
  func.func @transform_8(%arg0: i32) -> (i32, i32, i32) {
    %c0_i32 = arith.constant 0 : i32
    %c0_i32_0 = arith.constant 0 : i32
    %c0_i32_1 = arith.constant 0 : i32
    return %arg0, %c0_i32, %c0_i32_0 : i32, i32, i32
  }
  func.func @transform_9(%arg0: i32) -> (i32, i32, i32) {
    %c0_i32 = arith.constant 0 : i32
    %c0_i32_0 = arith.constant 0 : i32
    %c0_i32_1 = arith.constant 0 : i32
    %c0_i32_2 = arith.constant 0 : i32
    return %c0_i32, %c0_i32_0, %c0_i32_1 : i32, i32, i32
  }
  func.func @transform_10(%arg0: i32) -> (i32, i32, i32) {
    %c0_i32 = arith.constant 0 : i32
    %c0_i32_0 = arith.constant 0 : i32
    %c0_i32_1 = arith.constant 0 : i32
    %c0_i32_2 = arith.constant 0 : i32
    return %c0_i32, %c0_i32_0, %c0_i32_1 : i32, i32, i32
  }
  func.func @transform_11(%arg0: i32) -> (i32, i32, i32) {
    %c0_i32 = arith.constant 0 : i32
    %c0_i32_0 = arith.constant 0 : i32
    %c0_i32_1 = arith.constant 0 : i32
    %c0_i32_2 = arith.constant 0 : i32
    return %c0_i32, %c0_i32_0, %c0_i32_1 : i32, i32, i32
  }
}

</mosaic_0001>

<llo_original>
// kernel: tpu_custom_call.1
$region0: #{tpu_custom_call.1}
  #allocation0 [shape = 'u32[]', space=smem, size = 0x4, offset = 0x4, fixed_abs, tag = 'smem constant byte address 0x4 - core index']
  #allocation1 [shape = 'u32[144,128]{1,0:T(1,128)}', space=vmem, size = 0x12000, scoped, tag = 'internal scratch']
  %s0 = inlined_call_operand.vmem [shape: f32[8,8,16], index: 0, kind: input, shape index: {}]
  %s1 = inlined_call_operand.vmem [shape: f32[8,8,1], index: 1, kind: input, shape index: {}]
  %s2 = inlined_call_operand.vmem [shape: f32[80,129], index: 2, kind: input, shape index: {}]
  %s3 = inlined_call_operand.vmem [shape: f32[1,129], index: 3, kind: input, shape index: {}]
  %s4 = inlined_call_operand.vmem [shape: f32[96,129], index: 4, kind: input, shape index: {}]
  %s5 = inlined_call_operand.vmem [shape: f32[1,129], index: 5, kind: input, shape index: {}]
  %s6 = inlined_call_operand.vmem [shape: f32[64,128], index: 6, kind: input, shape index: {}]
  %s7 = inlined_call_operand.vmem [shape: f32[1,128], index: 7, kind: input, shape index: {}]
  %s8 = inlined_call_operand.hbm [shape: f32[8,8,128], index: 8, kind: output, shape index: {0}]
  %s9 = inlined_call_operand.hbm [shape: f32[3,8,32], index: 9, kind: output, shape index: {1}]
  %s10 = inlined_call_operand.hbm [shape: f32[3,8,32], index: 10, kind: output, shape index: {2}]
  %s11 = inlined_call_operand.vmem [shape: f32[2,8,1], index: 11, kind: output, shape index: {3}]
  %12 = xla_tuple %s8, %s9, %s10, %s11
  %s13 = sld [smem:[#allocation0]]
  $region93: #{tpu_custom_call.1} parent=0
    _
  %s15 = ssub.s32 1, %s13
  %s16 = scalar_select 0, %s15, %s13
  $region1: #{tpu_custom_call.1} parent=0
    #allocation2 [shape = 'u8[8192]{0}', space=vmem, size = 0x2000, scoped, tag = 'output window, operand 0']
    #allocation3 [shape = 's32[2]{0}', space=sflag, size = 0x8, scoped, tag = 'scoped memory for tpu_custom_call.1']
    #allocation4 [shape = 'u8[12288]{0}', space=vmem, size = 0x3000, scoped, tag = 'output window, operand 1, single buffered']
    #allocation5 [shape = 's32[1]{0}', space=sflag, size = 0x4, scoped, tag = 'scoped memory for tpu_custom_call.1']
    #allocation6 [shape = 'u8[12288]{0}', space=vmem, size = 0x3000, scoped, tag = 'output window, operand 2, single buffered']
    %17 = vsyncpa [#allocation3], 0
    %s18 = scalar_lea.sflag [#allocation3], 1
    %19 = vsyncpa %s18, 0
    %20 = vsyncpa [#allocation5], 0
    loop: start=0, step=1, limit=10
    $region2: #{tpu_custom_call.1} parent=1 // loop_pre_header
      _
    $region3: #{tpu_custom_call.1} parent=1 // loop_header
      %s22 = sphi 0, %s26
      %p23 = scmp.ge.s32.totalorder %s22, 10
      %s32 = sphi 0, %s34
      %s35 = sphi 0, %s32
      %s36 = sphi 0, %s35
      %s52 = sphi 0, %s36
      %s58 = sphi 0, %s60
      %s61 = sphi 0, %s58
      %s62 = sphi 0, %s61
      %s78 = sphi 0, %s62
      %s82 = sphi 0, %s82
      %s84 = sphi 0, %s82
      %s85 = sphi 0, %s84
      %s99 = sphi 0, %s85
      %s103 = sphi 0, %s103
      %s105 = sphi 0, %s103
      %s106 = sphi 0, %s105
      %s120 = sphi 0, %s106
      %s124 = sphi 0, %s124
      %s126 = sphi 0, %s124
      %s127 = sphi 0, %s126
      %s141 = sphi 0, %s127
      %s145 = sphi 0, %s145
      %s147 = sphi 0, %s145
      %s148 = sphi 0, %s147
      %s162 = sphi 0, %s148
      %s166 = sphi 0, %s166
      %s168 = sphi 0, %s166
      %s169 = sphi 0, %s168
      %s183 = sphi 0, %s169
      %s187 = sphi 0, %s187
      %s189 = sphi 0, %s187
      %s190 = sphi 0, %s189
      %s204 = sphi 0, %s190
      %s210 = sphi 0, %s212
      %s213 = sphi 0, %s210
      %s214 = sphi 0, %s213
      %s230 = sphi 0, %s214
      %s234 = sphi 0, %s234
      %s236 = sphi 0, %s234
      %s237 = sphi 0, %s236
      %s251 = sphi 0, %s237
      %s255 = sphi 0, %s255
      %s257 = sphi 0, %s255
      %s258 = sphi 0, %s257
      %s272 = sphi 0, %s258
      %s276 = sphi 0, %s276
      %s278 = sphi 0, %s276
      %s279 = sphi 0, %s278
      %s293 = sphi 0, %s279
    $region4: #{tpu_custom_call.1} parent=1 // loop_header_branch
      %25 = sbr.rel (%p23) target = $region8
    $region5: #{tpu_custom_call.1} parent=1 // loop_body
      %s27 = ssub.s32 %s22, 1
      %s28 = ssub.s32 %s22, 2
      %s29 = sadd.s32 %s22, 1
      %s30 = ssub.s32 %s22, %s29
      %p31 = scmp.eq.s32.totalorder %s30, 0
      %s33 = sadd.s32 %s32, 1
      %s34 = scalar_select %p31, %s32, %s33
      %p37 = pneg %p31
      %p38 = scmp.eq.s32.totalorder %s22, 7
      %p39 = por %p37, %p38
      %p40 = scmp.ne.s32.totalorder %s32, %s35
      %p41 = scmp.eq.s32.totalorder %s22, 0
      %p42 = por %p40, %p41
      %p43 = scmp.ne.s32.totalorder %s32, %s35
      %p44 = scmp.eq.s32.totalorder %s27, 7
      %p45 = por %p43, %p44
      %p46 = scmp.ne.s32.totalorder %s35, %s36
      %p47 = scmp.eq.s32.totalorder %s27, 0
      %p48 = por %p46, %p47
      %p49 = scmp.ne.s32.totalorder %s35, %s36
      %p50 = scmp.eq.s32.totalorder %s28, 7
      %p51 = por %p49, %p50
      %p53 = scmp.ne.s32.totalorder %s36, %s52
      %p54 = scmp.eq.s32.totalorder %s28, 0
      %p55 = por %p53, %p54
      %s56 = ssub.s32 %s22, %s29
      %p57 = scmp.eq.s32.totalorder %s56, 0
      %s59 = sadd.s32 %s58, 1
      %s60 = scalar_select %p57, %s58, %s59
      %p63 = pneg %p57
      %p64 = scmp.eq.s32.totalorder %s22, 7
      %p65 = por %p63, %p64
      %p66 = scmp.ne.s32.totalorder %s58, %s61
      %p67 = scmp.eq.s32.totalorder %s22, 0
      %p68 = por %p66, %p67
      %p69 = scmp.ne.s32.totalorder %s58, %s61
      %p70 = scmp.eq.s32.totalorder %s27, 7
      %p71 = por %p69, %p70
      %p72 = scmp.ne.s32.totalorder %s61, %s62
      %p73 = scmp.eq.s32.totalorder %s27, 0
      %p74 = por %p72, %p73
      %p75 = scmp.ne.s32.totalorder %s61, %s62
      %p76 = scmp.eq.s32.totalorder %s28, 7
      %p77 = por %p75, %p76
      %p79 = scmp.ne.s32.totalorder %s62, %s78
      %p80 = scmp.eq.s32.totalorder %s28, 0
      %p81 = por %p79, %p80
      %s83 = sadd.s32 %s82, 1
      %p86 = scmp.eq.s32.totalorder %s22, 7
      %p87 = scmp.ne.s32.totalorder %s82, %s84
      %p88 = scmp.eq.s32.totalorder %s22, 0
      %p89 = por %p87, %p88
      %p90 = scmp.ne.s32.totalorder %s82, %s84
      %p91 = scmp.eq.s32.totalorder %s27, 7
      %p92 = por %p90, %p91
      %p93 = scmp.ne.s32.totalorder %s84, %s85
      %p94 = scmp.eq.s32.totalorder %s27, 0
      %p95 = por %p93, %p94
      %p96 = scmp.ne.s32.totalorder %s84, %s85
      %p97 = scmp.eq.s32.totalorder %s28, 7
      %p98 = por %p96, %p97
      %p100 = scmp.ne.s32.totalorder %s85, %s99
      %p101 = scmp.eq.s32.totalorder %s28, 0
      %p102 = por %p100, %p101
      %s104 = sadd.s32 %s103, 1
      %p107 = scmp.eq.s32.totalorder %s22, 7
      %p108 = scmp.ne.s32.totalorder %s103, %s105
      %p109 = scmp.eq.s32.totalorder %s22, 0
      %p110 = por %p108, %p109
      %p111 = scmp.ne.s32.totalorder %s103, %s105
      %p112 = scmp.eq.s32.totalorder %s27, 7
      %p113 = por %p111, %p112
      %p114 = scmp.ne.s32.totalorder %s105, %s106
      %p115 = scmp.eq.s32.totalorder %s27, 0
      %p116 = por %p114, %p115
      %p117 = scmp.ne.s32.totalorder %s105, %s106
      %p118 = scmp.eq.s32.totalorder %s28, 7
      %p119 = por %p117, %p118
      %p121 = scmp.ne.s32.totalorder %s106, %s120
      %p122 = scmp.eq.s32.totalorder %s28, 0
      %p123 = por %p121, %p122
      %s125 = sadd.s32 %s124, 1
      %p128 = scmp.eq.s32.totalorder %s22, 7
      %p129 = scmp.ne.s32.totalorder %s124, %s126
      %p130 = scmp.eq.s32.totalorder %s22, 0
      %p131 = por %p129, %p130
      %p132 = scmp.ne.s32.totalorder %s124, %s126
      %p133 = scmp.eq.s32.totalorder %s27, 7
      %p134 = por %p132, %p133
      %p135 = scmp.ne.s32.totalorder %s126, %s127
      %p136 = scmp.eq.s32.totalorder %s27, 0
      %p137 = por %p135, %p136
      %p138 = scmp.ne.s32.totalorder %s126, %s127
      %p139 = scmp.eq.s32.totalorder %s28, 7
      %p140 = por %p138, %p139
      %p142 = scmp.ne.s32.totalorder %s127, %s141
      %p143 = scmp.eq.s32.totalorder %s28, 0
      %p144 = por %p142, %p143
      %s146 = sadd.s32 %s145, 1
      %p149 = scmp.eq.s32.totalorder %s22, 7
      %p150 = scmp.ne.s32.totalorder %s145, %s147
      %p151 = scmp.eq.s32.totalorder %s22, 0
      %p152 = por %p150, %p151
      %p153 = scmp.ne.s32.totalorder %s145, %s147
      %p154 = scmp.eq.s32.totalorder %s27, 7
      %p155 = por %p153, %p154
      %p156 = scmp.ne.s32.totalorder %s147, %s148
      %p157 = scmp.eq.s32.totalorder %s27, 0
      %p158 = por %p156, %p157
      %p159 = scmp.ne.s32.totalorder %s147, %s148
      %p160 = scmp.eq.s32.totalorder %s28, 7
      %p161 = por %p159, %p160
      %p163 = scmp.ne.s32.totalorder %s148, %s162
      %p164 = scmp.eq.s32.totalorder %s28, 0
      %p165 = por %p163, %p164
      %s167 = sadd.s32 %s166, 1
      %p170 = scmp.eq.s32.totalorder %s22, 7
      %p171 = scmp.ne.s32.totalorder %s166, %s168
      %p172 = scmp.eq.s32.totalorder %s22, 0
      %p173 = por %p171, %p172
      %p174 = scmp.ne.s32.totalorder %s166, %s168
      %p175 = scmp.eq.s32.totalorder %s27, 7
      %p176 = por %p174, %p175
      %p177 = scmp.ne.s32.totalorder %s168, %s169
      %p178 = scmp.eq.s32.totalorder %s27, 0
      %p179 = por %p177, %p178
      %p180 = scmp.ne.s32.totalorder %s168, %s169
      %p181 = scmp.eq.s32.totalorder %s28, 7
      %p182 = por %p180, %p181
      %p184 = scmp.ne.s32.totalorder %s169, %s183
      %p185 = scmp.eq.s32.totalorder %s28, 0
      %p186 = por %p184, %p185
      %s188 = sadd.s32 %s187, 1
      %p191 = scmp.eq.s32.totalorder %s22, 7
      %p192 = scmp.ne.s32.totalorder %s187, %s189
      %p193 = scmp.eq.s32.totalorder %s22, 0
      %p194 = por %p192, %p193
      %p195 = scmp.ne.s32.totalorder %s187, %s189
      %p196 = scmp.eq.s32.totalorder %s27, 7
      %p197 = por %p195, %p196
      %p198 = scmp.ne.s32.totalorder %s189, %s190
      %p199 = scmp.eq.s32.totalorder %s27, 0
      %p200 = por %p198, %p199
      %p201 = scmp.ne.s32.totalorder %s189, %s190
      %p202 = scmp.eq.s32.totalorder %s28, 7
      %p203 = por %p201, %p202
      %p205 = scmp.ne.s32.totalorder %s190, %s204
      %p206 = scmp.eq.s32.totalorder %s28, 0
      %p207 = por %p205, %p206
      %s208 = ssub.s32 %s22, %s29
      %p209 = scmp.eq.s32.totalorder %s208, 0
      %s211 = sadd.s32 %s210, 1
      %s212 = scalar_select %p209, %s210, %s211
      %p215 = pneg %p209
      %p216 = scmp.eq.s32.totalorder %s22, 7
      %p217 = por %p215, %p216
      %p218 = scmp.ne.s32.totalorder %s210, %s213
      %p219 = scmp.eq.s32.totalorder %s22, 0
      %p220 = por %p218, %p219
      %p221 = scmp.ne.s32.totalorder %s210, %s213
      %p222 = scmp.eq.s32.totalorder %s27, 7
      %p223 = por %p221, %p222
      %p224 = scmp.ne.s32.totalorder %s213, %s214
      %p225 = scmp.eq.s32.totalorder %s27, 0
      %p226 = por %p224, %p225
      %p227 = scmp.ne.s32.totalorder %s213, %s214
      %p228 = scmp.eq.s32.totalorder %s28, 7
      %p229 = por %p227, %p228
      %p231 = scmp.ne.s32.totalorder %s214, %s230
      %p232 = scmp.eq.s32.totalorder %s28, 0
      %p233 = por %p231, %p232
      %s235 = sadd.s32 %s234, 1
      %p238 = scmp.eq.s32.totalorder %s22, 7
      %p239 = scmp.ne.s32.totalorder %s234, %s236
      %p240 = scmp.eq.s32.totalorder %s22, 0
      %p241 = por %p239, %p240
      %p242 = scmp.ne.s32.totalorder %s234, %s236
      %p243 = scmp.eq.s32.totalorder %s27, 7
      %p244 = por %p242, %p243
      %p245 = scmp.ne.s32.totalorder %s236, %s237
      %p246 = scmp.eq.s32.totalorder %s27, 0
      %p247 = por %p245, %p246
      %p248 = scmp.ne.s32.totalorder %s236, %s237
      %p249 = scmp.eq.s32.totalorder %s28, 7
      %p250 = por %p248, %p249
      %p252 = scmp.ne.s32.totalorder %s237, %s251
      %p253 = scmp.eq.s32.totalorder %s28, 0
      %p254 = por %p252, %p253
      %s256 = sadd.s32 %s255, 1
      %p259 = scmp.eq.s32.totalorder %s22, 7
      %p260 = scmp.ne.s32.totalorder %s255, %s257
      %p261 = scmp.eq.s32.totalorder %s22, 0
      %p262 = por %p260, %p261
      %p263 = scmp.ne.s32.totalorder %s255, %s257
      %p264 = scmp.eq.s32.totalorder %s27, 7
      %p265 = por %p263, %p264
      %p266 = scmp.ne.s32.totalorder %s257, %s258
      %p267 = scmp.eq.s32.totalorder %s27, 0
      %p268 = por %p266, %p267
      %p269 = scmp.ne.s32.totalorder %s257, %s258
      %p270 = scmp.eq.s32.totalorder %s28, 7
      %p271 = por %p269, %p270
      %p273 = scmp.ne.s32.totalorder %s258, %s272
      %p274 = scmp.eq.s32.totalorder %s28, 0
      %p275 = por %p273, %p274
      %s277 = sadd.s32 %s276, 1
      %p280 = scmp.eq.s32.totalorder %s22, 7
      %p281 = scmp.ne.s32.totalorder %s276, %s278
      %p282 = scmp.eq.s32.totalorder %s22, 0
      %p283 = por %p281, %p282
      %p284 = scmp.ne.s32.totalorder %s276, %s278
      %p285 = scmp.eq.s32.totalorder %s27, 7
      %p286 = por %p284, %p285
      %p287 = scmp.ne.s32.totalorder %s278, %s279
      %p288 = scmp.eq.s32.totalorder %s27, 0
      %p289 = por %p287, %p288
      %p290 = scmp.ne.s32.totalorder %s278, %s279
      %p291 = scmp.eq.s32.totalorder %s28, 7
      %p292 = por %p290, %p291
      %p294 = scmp.ne.s32.totalorder %s279, %s293
      %p295 = scmp.eq.s32.totalorder %s28, 0
      %p296 = por %p294, %p295
      %p297 = scmp.le.s32.totalorder 1, %s22
      %p298 = scmp.lt.s32.totalorder %s22, 9
      %p299 = pnand %p297, %p298
      %p300 = pneg %p299
      // Predicated region
      $region9: #{tpu_custom_call.1} parent=5 // pred_check
        _
      $region10: #{tpu_custom_call.1} parent=5 // pred_check_branch
        %302 = sbr.rel (%p299) target = $region12
      $region11: #{tpu_custom_call.1} parent=5 // pred_region
        %s303 = ssub.s32 %s22, 1
        // Predicated region
        $region13: #{tpu_custom_call.1} parent=11 // pred_check
          %p304 = pneg %p95
        $region14: #{tpu_custom_call.1} parent=11 // pred_check_branch
          %306 = sbr.rel (%p304) target = $region16
        $region15: #{tpu_custom_call.1} parent=11 // pred_region
          _
        $region16: #{tpu_custom_call.1} parent=11 // pred_fallthru
          _
        // Predicated region
        $region17: #{tpu_custom_call.1} parent=11 // pred_check
          %p307 = pneg %p116
        $region18: #{tpu_custom_call.1} parent=11 // pred_check_branch
          %309 = sbr.rel (%p307) target = $region20
        $region19: #{tpu_custom_call.1} parent=11 // pred_region
          _
        $region20: #{tpu_custom_call.1} parent=11 // pred_fallthru
          _
        // Predicated region
        $region21: #{tpu_custom_call.1} parent=11 // pred_check
          %p310 = pneg %p137
        $region22: #{tpu_custom_call.1} parent=11 // pred_check_branch
          %312 = sbr.rel (%p310) target = $region24
        $region23: #{tpu_custom_call.1} parent=11 // pred_region
          _
        $region24: #{tpu_custom_call.1} parent=11 // pred_fallthru
          _
        // Predicated region
        $region25: #{tpu_custom_call.1} parent=11 // pred_check
          %p313 = pneg %p158
        $region26: #{tpu_custom_call.1} parent=11 // pred_check_branch
          %315 = sbr.rel (%p313) target = $region28
        $region27: #{tpu_custom_call.1} parent=11 // pred_region
          _
        $region28: #{tpu_custom_call.1} parent=11 // pred_fallthru
          _
        // Predicated region
        $region29: #{tpu_custom_call.1} parent=11 // pred_check
          %p316 = pneg %p179
        $region30: #{tpu_custom_call.1} parent=11 // pred_check_branch
          %318 = sbr.rel (%p316) target = $region32
        $region31: #{tpu_custom_call.1} parent=11 // pred_region
          _
        $region32: #{tpu_custom_call.1} parent=11 // pred_fallthru
          _
        // Predicated region
        $region33: #{tpu_custom_call.1} parent=11 // pred_check
          %p319 = pneg %p200
        $region34: #{tpu_custom_call.1} parent=11 // pred_check_branch
          %321 = sbr.rel (%p319) target = $region36
        $region35: #{tpu_custom_call.1} parent=11 // pred_region
          _
        $region36: #{tpu_custom_call.1} parent=11 // pred_fallthru
          _
      $region12: #{tpu_custom_call.1} parent=5 // pred_fallthru
        _
      %p322 = scmp.lt.s32.totalorder %s22, 8
      // Predicated region
      $region37: #{tpu_custom_call.1} parent=5 // pred_check
        %p323 = pneg %p322
      $region38: #{tpu_custom_call.1} parent=5 // pred_check_branch
        %325 = sbr.rel (%p323) target = $region40
      $region39: #{tpu_custom_call.1} parent=5 // pred_region
        // Predicated region
        $region41: #{tpu_custom_call.1} parent=39 // pred_check
          %p326 = pneg %p42
        $region42: #{tpu_custom_call.1} parent=39 // pred_check_branch
          %328 = sbr.rel (%p326) target = $region44
        $region43: #{tpu_custom_call.1} parent=39 // pred_region
          %p329 = scmp.lt.s32.totalorder %s22, 7
          %s330 = scalar_select %p329, %s22, 7
          %s331 = smul.addr %s330, 8
          %s332 = scalar_lea.vmem %s0, %s331
        $region44: #{tpu_custom_call.1} parent=39 // pred_fallthru
          _
        // Predicated region
        $region45: #{tpu_custom_call.1} parent=39 // pred_check
          %p333 = pneg %p68
        $region46: #{tpu_custom_call.1} parent=39 // pred_check_branch
          %335 = sbr.rel (%p333) target = $region48
        $region47: #{tpu_custom_call.1} parent=39 // pred_region
          %p336 = scmp.lt.s32.totalorder %s22, 7
          %s337 = scalar_select %p336, %s22, 7
          %s338 = smul.addr %s337, 8
          %s339 = scalar_lea.vmem %s1, %s338
        $region48: #{tpu_custom_call.1} parent=39 // pred_fallthru
          _
      $region40: #{tpu_custom_call.1} parent=5 // pred_fallthru
        _
      %p340 = scmp.le.s32.totalorder 1, %s22
      %p341 = scmp.lt.s32.totalorder %s22, 9
      %p342 = pnand %p340, %p341
      %p343 = pneg %p342
      // Predicated region
      $region49: #{tpu_custom_call.1} parent=5 // pred_check
        _
      $region50: #{tpu_custom_call.1} parent=5 // pred_check_branch
        %345 = sbr.rel (%p342) target = $region52
      $region51: #{tpu_custom_call.1} parent=5 // pred_region
        %s346 = ssub.s32 %s22, 1
        %p347 = scmp.lt.s32.totalorder %s27, 7
        %s348 = scalar_select %p347, %s27, 7
        %s349 = smul.addr %s348, 8
        %s350 = scalar_lea.vmem %s0, %s349
        %p351 = pneg %p48
        %p352 = pneg %p45
        %p353 = scmp.lt.s32.totalorder %s27, 7
        %s354 = scalar_select %p353, %s27, 7
        %s355 = smul.addr %s354, 8
        %s356 = scalar_lea.vmem %s1, %s355
        %p357 = pneg %p74
        %p358 = pneg %p71
        %p359 = pneg %p95
        %p360 = pneg %p92
        %p361 = pneg %p116
        %p362 = pneg %p113
        %p363 = pneg %p137
        %p364 = pneg %p134
        %p365 = pneg %p158
        %p366 = pneg %p155
        %p367 = pneg %p179
        %p368 = pneg %p176
        %p369 = pneg %p200
        %p370 = pneg %p197
        %p371 = pneg %p226
        %p372 = pneg %p223
        %s373 = sand.u32 %s213, 1
        %s374 = scalar_lea.sflag [#allocation3], %s373
        %s375 = sand.u32 %s213, 1
        %s376 = smul.addr %s375, 8
        %s377 = scalar_lea.vmem [#allocation2], %s376
        %p378 = pneg %p247
        %p379 = pneg %p244
        %p380 = pneg %p268
        %p381 = pneg %p265
        %p382 = pneg %p289
        %p383 = pneg %p286
        %p384 = scmp.lt.s32.totalorder %s27, 7
        %s385 = scalar_select %p384, %s27, 7
        %s386 = smul.addr %s385, 8
        %s387 = scalar_lea.vmem %s0, %s386
        %p388 = scmp.lt.s32.totalorder %s27, 7
        %s389 = scalar_select %p388, %s27, 7
        %s390 = smul.addr %s389, 8
        %s391 = scalar_lea.vmem %s1, %s390
        %p392 = scmp.eq.s32.totalorder %s27, 0
        // Predicated region
        $region53: #{tpu_custom_call.1} parent=51 // pred_check
          %p393 = pneg %p392
        $region54: #{tpu_custom_call.1} parent=51 // pred_check_branch
          %395 = sbr.rel (%p393) target = $region56
        $region55: #{tpu_custom_call.1} parent=51 // pred_region
          %vm396 = vcmask 261120
          %397 = vst.msk [vmem:[#allocation4] sm:$0xff] %vm396, 0.0
          %398 = vst.msk [vmem:[#allocation4 + $0x8] sm:$0xff] %vm396, 0.0
          %399 = vst.msk [vmem:[#allocation4 + $0x10] sm:$0xff] %vm396, 0.0
          %400 = vst.msk [vmem:[#allocation6] sm:$0xff] %vm396, 0.0
          %401 = vst.msk [vmem:[#allocation6 + $0x8] sm:$0xff] %vm396, 0.0
          %402 = vst.msk [vmem:[#allocation6 + $0x10] sm:$0xff] %vm396, 0.0
          %vm403 = vcmask 7168
          %404 = vst.msk [vmem:[%s11] sm:$0xff] %vm403, 0.0
          %405 = vst.msk [vmem:[%s11 + $0x8] sm:$0xff] %vm403, 0.0
        $region56: #{tpu_custom_call.1} parent=51 // pred_fallthru
          _
        %v406 = vld [vmem:[%s387] sm:$0xff]
        %v407 = vld [vmem:[%s391] sm:$0xff]
        %v408 = vld [vmem:[#allocation4] sm:$0xff]
        %s409 = scalar_lea.vmem [#allocation4], 8
        %v410 = vld [vmem:[%s409] sm:$0xff]
        %s411 = scalar_lea.vmem [#allocation4], 16
        %v412 = vld [vmem:[%s411] sm:$0xff]
        %v413 = vld [vmem:[#allocation6] sm:$0xff]
        %s414 = scalar_lea.vmem [#allocation6], 8
        %v415 = vld [vmem:[%s414] sm:$0xff]
        %s416 = scalar_lea.vmem [#allocation6], 16
        %v417 = vld [vmem:[%s416] sm:$0xff]
        %v418 = vld [vmem:[%s11] sm:$0xff]
        %s419 = scalar_lea.vmem %s11, 8
        %v420 = vld [vmem:[%s419] sm:$0xff]
        %422 = vset.pattern.permute.xlu0 0
        %423 = vperm.xlu0 %422, %v418
        %v424 = vpop.permute.xlu0 %423
        %v426 = vmul.f32 %v424, %v410
        %428 = vrot.lane.b32.xlu0 %v406, 32
        %v429 = vpop.permute.xlu0 %428
        %432 = vrot.lane.b32.xlu0 %v426, 48
        %v433 = vpop.permute.xlu0 %432
        %vm435 = vcmask 261120
        %v436 = vsel %vm435, %v408, %v429
        %vm437 = vcmask 392192
        %v438 = vsel %vm437, %v436, %v433
        %v439 = vld [vmem:[%s2] sm:$0xff]
        %v440 = vld [vmem:[%s2 + $0x8] sm:$0xff]
        %v441 = vld [vmem:[%s2 + $0x10] sm:$0xff]
        %v442 = vld [vmem:[%s2 + $0x18] sm:$0xff]
        %v443 = vld [vmem:[%s2 + $0x20] sm:$0xff]
        %v444 = vld [vmem:[%s2 + $0x28] sm:$0xff]
        %v445 = vld [vmem:[%s2 + $0x30] sm:$0xff]
        %v446 = vld [vmem:[%s2 + $0x38] sm:$0xff]
        %v447 = vld [vmem:[%s2 + $0x40] sm:$0xff]
        %v448 = vld [vmem:[%s2 + $0x48] sm:$0xff]
        %v449 = vld [vmem:[%s2 + $0x50] sm:$0xff]
        %v450 = vld [vmem:[%s2 + $0x58] sm:$0xff]
        %v451 = vld [vmem:[%s2 + $0x60] sm:$0xff]
        %v452 = vld [vmem:[%s2 + $0x68] sm:$0xff]
        %v453 = vld [vmem:[%s2 + $0x70] sm:$0xff]
        %v454 = vld [vmem:[%s2 + $0x78] sm:$0xff]
        %v455 = vld [vmem:[%s2 + $0x80] sm:$0xff]
        %v456 = vld [vmem:[%s2 + $0x88] sm:$0xff]
        %v457 = vld [vmem:[%s2 + $0x90] sm:$0xff]
        %v458 = vld [vmem:[%s2 + $0x98] sm:$0xff]
        %v459 = vld [vmem:[%s3] sm:$0x3]
        %v461 = vlaneseq
        %v462 = vshrl.u32 %v461, 7
        %v463 = vsub.s32 0, %v462
        %v464 = vrot.slane %v459, %v463
        %v465 = vlaneseq
        %v466 = vshrl.u32 %v465, 7
        %v467 = vsub.s32 1, %v466
        %v468 = vrot.slane %v459, %v467
        %vm471 = vcmask 654336
        %v473 = vsel %vm471, %v438, 0
        %v475 = vand.u32 %v440, 4294901760
        %476 = vmatprep.subr.mxu0 %v475
        %v477 = vand.u32 %v439, 4294901760
        %478 = vmatpush1.msra.mxu0 %v477
        %v479 = vand.u32 %v442, 4294901760
        %480 = vmatprep.subr.mxu0 %v479
        %v481 = vand.u32 %v441, 4294901760
        %482 = vmatpush1.msra.mxu0 %v481
        %v483 = vand.u32 %v444, 4294901760
        %484 = vmatprep.subr.mxu0 %v483
        %v485 = vand.u32 %v443, 4294901760
        %486 = vmatpush1.msra.mxu0 %v485
        %v487 = vand.u32 %v446, 4294901760
        %488 = vmatprep.subr.mxu0 %v487
        %v489 = vand.u32 %v445, 4294901760
        %490 = vmatpush1.msra.mxu0 %v489
        %v491 = vand.u32 %v448, 4294901760
        %492 = vmatprep.subr.mxu0 %v491
        %v493 = vand.u32 %v447, 4294901760
        %494 = vmatpush1.msra.mxu0 %v493
        %v495 = vand.u32 %v450, 4294901760
        %496 = vmatprep.subr.mxu0 %v495
        %v497 = vand.u32 %v449, 4294901760
        %498 = vmatpush1.msra.mxu0 %v497
        %v499 = vand.u32 %v452, 4294901760
        %500 = vmatprep.subr.mxu0 %v499
        %v501 = vand.u32 %v451, 4294901760
        %502 = vmatpush1.msra.mxu0 %v501
        %v503 = vand.u32 %v454, 4294901760
        %504 = vmatprep.subr.mxu0 %v503
        %v505 = vand.u32 %v453, 4294901760
        %506 = vmatpush1.msra.mxu0 %v505
        %v507 = vand.u32 %v456, 4294901760
        %508 = vmatprep.subr.mxu0 %v507
        %v509 = vand.u32 %v455, 4294901760
        %510 = vmatpush1.msra.mxu0 %v509
        %v511 = vand.u32 %v458, 4294901760
        %512 = vmatprep.subr.mxu0 %v511
        %v513 = vand.u32 %v457, 4294901760
        %514 = vmatpush1.msra.mxu0 %v513
        %515 = vmatprep.subr.mxu0 0.0
        %516 = vmatpush1.msra.mxu0 0.0
        %517 = vmatprep.subr.mxu0 0.0
        %518 = vmatpush1.msra.mxu0 0.0
        %519 = vmatprep.subr.mxu0 0.0
        %520 = vmatpush1.msra.mxu0 0.0
        %521 = vmatprep.subr.mxu0 0.0
        %522 = vmatpush1.msra.mxu0 0.0
        %523 = vmatprep.subr.mxu0 0.0
        %524 = vmatpush1.msra.mxu0 0.0
        %525 = vmatprep.subr.mxu0 0.0
        %526 = vmatpush1.msra.mxu0 0.0
        %527 = vmatprep.subr.mxu0 0.0
        %528 = vmatpush1.msra.mxu0 0.0
        %529 = vmatprep.subr.mxu0 0.0
        %530 = vmatpush1.msra.mxu0 0.0
        %531 = vmatprep.subr.mxu0 0.0
        %532 = vmatpush1.msra.mxu0 0.0
        %533 = vmatprep.subr.mxu0 0.0
        %534 = vmatpush1.msra.mxu0 0.0
        %535 = vmatprep.subr.mxu0 0.0
        %536 = vmatpush1.msra.mxu0 0.0
        %537 = vmatprep.subr.mxu0 0.0
        %538 = vmatpush1.msra.mxu0 0.0
        %539 = vmatprep.subr.mxu0 0.0
        %540 = vmatpush1.msra.mxu0 0.0
        %541 = vmatprep.subr.mxu0 0.0
        %542 = vmatpush1.msra.mxu0 0.0
        %543 = vmatprep.subr.mxu0 0.0
        %544 = vmatpush1.msra.mxu0 0.0
        %545 = vmatprep.subr.mxu0 0.0
        %546 = vmatpush1.msra.mxu0 0.0
        %547 = vmatprep.subr.mxu0 0.0
        %548 = vmatpush1.msra.mxu0 0.0
        %549 = vmatprep.subr.mxu0 0.0
        %550 = vmatpush1.msra.mxu0 0.0
        %551 = vmatprep.subr.mxu0 0.0
        %552 = vmatpush1.msra.mxu0 0.0
        %553 = vmatprep.subr.mxu0 0.0
        %554 = vmatpush1.msra.mxu0 0.0
        %555 = vmatprep.subr.mxu0 0.0
        %556 = vmatpush1.msra.mxu0 0.0
        %557 = vmatprep.subr.mxu0 0.0
        %558 = vmatpush1.msra.mxu0 0.0
        %559 = vmatprep.mubr.f32.mxu0 0.0
        %v560 = vand.u32 %v473, 4294901760
        %v561 = vsub.f32 %v473, %v560
        %v562 = vand.u32 %v561, 4294901760
        %v563 = vsub.f32 %v561, %v562
        %v564 = vand.u32 %v563, 4294901760
        %565 = vmatmul.mubr.f32.gmra.mrb[0].mxu0 %v564
        %v566 = vpop.f32.mrb[0].mxu0
        %v567 = vadd.f32 %v464, %v566
        %v568 = vpop.f32.mrb[0].mxu0
        %v569 = vadd.f32 %v468, %v568
        %570 = vdwg.mxu0
        %v571 = vand.u32 %v440, 4294901760
        %v572 = vsub.f32 %v440, %v571
        %v573 = vand.u32 %v572, 4294901760
        %v574 = vsub.f32 %v572, %v573
        %v575 = vand.u32 %v574, 4294901760
        %576 = vmatprep.subr.mxu0 %v575
        %v577 = vand.u32 %v439, 4294901760
        %v578 = vsub.f32 %v439, %v577
        %v579 = vand.u32 %v578, 4294901760
        %v580 = vsub.f32 %v578, %v579
        %v581 = vand.u32 %v580, 4294901760
        %582 = vmatpush1.msra.mxu0 %v581
        %v583 = vand.u32 %v442, 4294901760
        %v584 = vsub.f32 %v442, %v583
        %v585 = vand.u32 %v584, 4294901760
        %v586 = vsub.f32 %v584, %v585
        %v587 = vand.u32 %v586, 4294901760
        %588 = vmatprep.subr.mxu0 %v587
        %v589 = vand.u32 %v441, 4294901760
        %v590 = vsub.f32 %v441, %v589
        %v591 = vand.u32 %v590, 4294901760
        %v592 = vsub.f32 %v590, %v591
        %v593 = vand.u32 %v592, 4294901760
        %594 = vmatpush1.msra.mxu0 %v593
        %v595 = vand.u32 %v444, 4294901760
        %v596 = vsub.f32 %v444, %v595
        %v597 = vand.u32 %v596, 4294901760
        %v598 = vsub.f32 %v596, %v597
        %v599 = vand.u32 %v598, 4294901760
        %600 = vmatprep.subr.mxu0 %v599
        %v601 = vand.u32 %v443, 4294901760
        %v602 = vsub.f32 %v443, %v601
        %v603 = vand.u32 %v602, 4294901760
        %v604 = vsub.f32 %v602, %v603
        %v605 = vand.u32 %v604, 4294901760
        %606 = vmatpush1.msra.mxu0 %v605
        %v607 = vand.u32 %v446, 4294901760
        %v608 = vsub.f32 %v446, %v607
        %v609 = vand.u32 %v608, 4294901760
        %v610 = vsub.f32 %v608, %v609
        %v611 = vand.u32 %v610, 4294901760
        %612 = vmatprep.subr.mxu0 %v611
        %v613 = vand.u32 %v445, 4294901760
        %v614 = vsub.f32 %v445, %v613
        %v615 = vand.u32 %v614, 4294901760
        %v616 = vsub.f32 %v614, %v615
        %v617 = vand.u32 %v616, 4294901760
        %618 = vmatpush1.msra.mxu0 %v617
        %v619 = vand.u32 %v448, 4294901760
        %v620 = vsub.f32 %v448, %v619
        %v621 = vand.u32 %v620, 4294901760
        %v622 = vsub.f32 %v620, %v621
        %v623 = vand.u32 %v622, 4294901760
        %624 = vmatprep.subr.mxu0 %v623
        %v625 = vand.u32 %v447, 4294901760
        %v626 = vsub.f32 %v447, %v625
        %v627 = vand.u32 %v626, 4294901760
        %v628 = vsub.f32 %v626, %v627
        %v629 = vand.u32 %v628, 4294901760
        %630 = vmatpush1.msra.mxu0 %v629
        %v631 = vand.u32 %v450, 4294901760
        %v632 = vsub.f32 %v450, %v631
        %v633 = vand.u32 %v632, 4294901760
        %v634 = vsub.f32 %v632, %v633
        %v635 = vand.u32 %v634, 4294901760
        %636 = vmatprep.subr.mxu0 %v635
        %v637 = vand.u32 %v449, 4294901760
        %v638 = vsub.f32 %v449, %v637
        %v639 = vand.u32 %v638, 4294901760
        %v640 = vsub.f32 %v638, %v639
        %v641 = vand.u32 %v640, 4294901760
        %642 = vmatpush1.msra.mxu0 %v641
        %v643 = vand.u32 %v452, 4294901760
        %v644 = vsub.f32 %v452, %v643
        %v645 = vand.u32 %v644, 4294901760
        %v646 = vsub.f32 %v644, %v645
        %v647 = vand.u32 %v646, 4294901760
        %648 = vmatprep.subr.mxu0 %v647
        %v649 = vand.u32 %v451, 4294901760
        %v650 = vsub.f32 %v451, %v649
        %v651 = vand.u32 %v650, 4294901760
        %v652 = vsub.f32 %v650, %v651
        %v653 = vand.u32 %v652, 4294901760
        %654 = vmatpush1.msra.mxu0 %v653
        %v655 = vand.u32 %v454, 4294901760
        %v656 = vsub.f32 %v454, %v655
        %v657 = vand.u32 %v656, 4294901760
        %v658 = vsub.f32 %v656, %v657
        %v659 = vand.u32 %v658, 4294901760
        %660 = vmatprep.subr.mxu0 %v659
        %v661 = vand.u32 %v453, 4294901760
        %v662 = vsub.f32 %v453, %v661
        %v663 = vand.u32 %v662, 4294901760
        %v664 = vsub.f32 %v662, %v663
        %v665 = vand.u32 %v664, 4294901760
        %666 = vmatpush1.msra.mxu0 %v665
        %v667 = vand.u32 %v456, 4294901760
        %v668 = vsub.f32 %v456, %v667
        %v669 = vand.u32 %v668, 4294901760
        %v670 = vsub.f32 %v668, %v669
        %v671 = vand.u32 %v670, 4294901760
        %672 = vmatprep.subr.mxu0 %v671
        %v673 = vand.u32 %v455, 4294901760
        %v674 = vsub.f32 %v455, %v673
        %v675 = vand.u32 %v674, 4294901760
        %v676 = vsub.f32 %v674, %v675
        %v677 = vand.u32 %v676, 4294901760
        %678 = vmatpush1.msra.mxu0 %v677
        %v679 = vand.u32 %v458, 4294901760
        %v680 = vsub.f32 %v458, %v679
        %v681 = vand.u32 %v680, 4294901760
        %v682 = vsub.f32 %v680, %v681
        %v683 = vand.u32 %v682, 4294901760
        %684 = vmatprep.subr.mxu0 %v683
        %v685 = vand.u32 %v457, 4294901760
        %v686 = vsub.f32 %v457, %v685
        %v687 = vand.u32 %v686, 4294901760
        %v688 = vsub.f32 %v686, %v687
        %v689 = vand.u32 %v688, 4294901760
        %690 = vmatpush1.msra.mxu0 %v689
        %691 = vmatprep.subr.mxu0 0.0
        %692 = vmatpush1.msra.mxu0 0.0
        %693 = vmatprep.subr.mxu0 0.0
        %694 = vmatpush1.msra.mxu0 0.0
        %695 = vmatprep.subr.mxu0 0.0
        %696 = vmatpush1.msra.mxu0 0.0
        %697 = vmatprep.subr.mxu0 0.0
        %698 = vmatpush1.msra.mxu0 0.0
        %699 = vmatprep.subr.mxu0 0.0
        %700 = vmatpush1.msra.mxu0 0.0
        %701 = vmatprep.subr.mxu0 0.0
        %702 = vmatpush1.msra.mxu0 0.0
        %703 = vmatprep.subr.mxu0 0.0
        %704 = vmatpush1.msra.mxu0 0.0
        %705 = vmatprep.subr.mxu0 0.0
        %706 = vmatpush1.msra.mxu0 0.0
        %707 = vmatprep.subr.mxu0 0.0
        %708 = vmatpush1.msra.mxu0 0.0
        %709 = vmatprep.subr.mxu0 0.0
        %710 = vmatpush1.msra.mxu0 0.0
        %711 = vmatprep.subr.mxu0 0.0
        %712 = vmatpush1.msra.mxu0 0.0
        %713 = vmatprep.subr.mxu0 0.0
        %714 = vmatpush1.msra.mxu0 0.0
        %715 = vmatprep.subr.mxu0 0.0
        %716 = vmatpush1.msra.mxu0 0.0
        %717 = vmatprep.subr.mxu0 0.0
        %718 = vmatpush1.msra.mxu0 0.0
        %719 = vmatprep.subr.mxu0 0.0
        %720 = vmatpush1.msra.mxu0 0.0
        %721 = vmatprep.subr.mxu0 0.0
        %722 = vmatpush1.msra.mxu0 0.0
        %723 = vmatprep.subr.mxu0 0.0
        %724 = vmatpush1.msra.mxu0 0.0
        %725 = vmatprep.subr.mxu0 0.0
        %726 = vmatpush1.msra.mxu0 0.0
        %727 = vmatprep.subr.mxu0 0.0
        %728 = vmatpush1.msra.mxu0 0.0
        %729 = vmatprep.subr.mxu0 0.0
        %730 = vmatpush1.msra.mxu0 0.0
        %731 = vmatprep.subr.mxu0 0.0
        %732 = vmatpush1.msra.mxu0 0.0
        %733 = vmatprep.subr.mxu0 0.0
        %734 = vmatpush1.msra.mxu0 0.0
        %735 = vmatprep.mubr.f32.mxu0 0.0
        %v736 = vand.u32 %v473, 4294901760
        %737 = vmatmul.mubr.f32.gmra.mrb[0].mxu0 %v736
        %v738 = vpop.f32.mrb[0].mxu0
        %v739 = vadd.f32 %v567, %v738
        %v740 = vpop.f32.mrb[0].mxu0
        %v741 = vadd.f32 %v569, %v740
        %742 = vdwg.mxu0
        %v743 = vand.u32 %v440, 4294901760
        %v744 = vsub.f32 %v440, %v743
        %745 = vmatprep.subr.mxu0 %v744
        %v746 = vand.u32 %v439, 4294901760
        %v747 = vsub.f32 %v439, %v746
        %748 = vmatpush1.msra.mxu0 %v747
        %v749 = vand.u32 %v442, 4294901760
        %v750 = vsub.f32 %v442, %v749
        %751 = vmatprep.subr.mxu0 %v750
        %v752 = vand.u32 %v441, 4294901760
        %v753 = vsub.f32 %v441, %v752
        %754 = vmatpush1.msra.mxu0 %v753
        %v755 = vand.u32 %v444, 4294901760
        %v756 = vsub.f32 %v444, %v755
        %757 = vmatprep.subr.mxu0 %v756
        %v758 = vand.u32 %v443, 4294901760
        %v759 = vsub.f32 %v443, %v758
        %760 = vmatpush1.msra.mxu0 %v759
        %v761 = vand.u32 %v446, 4294901760
        %v762 = vsub.f32 %v446, %v761
        %763 = vmatprep.subr.mxu0 %v762
        %v764 = vand.u32 %v445, 4294901760
        %v765 = vsub.f32 %v445, %v764
        %766 = vmatpush1.msra.mxu0 %v765
        %v767 = vand.u32 %v448, 4294901760
        %v768 = vsub.f32 %v448, %v767
        %769 = vmatprep.subr.mxu0 %v768
        %v770 = vand.u32 %v447, 4294901760
        %v771 = vsub.f32 %v447, %v770
        %772 = vmatpush1.msra.mxu0 %v771
        %v773 = vand.u32 %v450, 4294901760
        %v774 = vsub.f32 %v450, %v773
        %775 = vmatprep.subr.mxu0 %v774
        %v776 = vand.u32 %v449, 4294901760
        %v777 = vsub.f32 %v449, %v776
        %778 = vmatpush1.msra.mxu0 %v777
        %v779 = vand.u32 %v452, 4294901760
        %v780 = vsub.f32 %v452, %v779
        %781 = vmatprep.subr.mxu0 %v780
        %v782 = vand.u32 %v451, 4294901760
        %v783 = vsub.f32 %v451, %v782
        %784 = vmatpush1.msra.mxu0 %v783
        %v785 = vand.u32 %v454, 4294901760
        %v786 = vsub.f32 %v454, %v785
        %787 = vmatprep.subr.mxu0 %v786
        %v788 = vand.u32 %v453, 4294901760
        %v789 = vsub.f32 %v453, %v788
        %790 = vmatpush1.msra.mxu0 %v789
        %v791 = vand.u32 %v456, 4294901760
        %v792 = vsub.f32 %v456, %v791
        %793 = vmatprep.subr.mxu0 %v792
        %v794 = vand.u32 %v455, 4294901760
        %v795 = vsub.f32 %v455, %v794
        %796 = vmatpush1.msra.mxu0 %v795
        %v797 = vand.u32 %v458, 4294901760
        %v798 = vsub.f32 %v458, %v797
        %799 = vmatprep.subr.mxu0 %v798
        %v800 = vand.u32 %v457, 4294901760
        %v801 = vsub.f32 %v457, %v800
        %802 = vmatpush1.msra.mxu0 %v801
        %803 = vmatprep.subr.mxu0 0.0
        %804 = vmatpush1.msra.mxu0 0.0
        %805 = vmatprep.subr.mxu0 0.0
        %806 = vmatpush1.msra.mxu0 0.0
        %807 = vmatprep.subr.mxu0 0.0
        %808 = vmatpush1.msra.mxu0 0.0
        %809 = vmatprep.subr.mxu0 0.0
        %810 = vmatpush1.msra.mxu0 0.0
        %811 = vmatprep.subr.mxu0 0.0
        %812 = vmatpush1.msra.mxu0 0.0
        %813 = vmatprep.subr.mxu0 0.0
        %814 = vmatpush1.msra.mxu0 0.0
        %815 = vmatprep.subr.mxu0 0.0
        %816 = vmatpush1.msra.mxu0 0.0
        %817 = vmatprep.subr.mxu0 0.0
        %818 = vmatpush1.msra.mxu0 0.0
        %819 = vmatprep.subr.mxu0 0.0
        %820 = vmatpush1.msra.mxu0 0.0
        %821 = vmatprep.subr.mxu0 0.0
        %822 = vmatpush1.msra.mxu0 0.0
        %823 = vmatprep.subr.mxu0 0.0
        %824 = vmatpush1.msra.mxu0 0.0
        %825 = vmatprep.subr.mxu0 0.0
        %826 = vmatpush1.msra.mxu0 0.0
        %827 = vmatprep.subr.mxu0 0.0
        %828 = vmatpush1.msra.mxu0 0.0
        %829 = vmatprep.subr.mxu0 0.0
        %830 = vmatpush1.msra.mxu0 0.0
        %831 = vmatprep.subr.mxu0 0.0
        %832 = vmatpush1.msra.mxu0 0.0
        %833 = vmatprep.subr.mxu0 0.0
        %834 = vmatpush1.msra.mxu0 0.0
        %835 = vmatprep.subr.mxu0 0.0
        %836 = vmatpush1.msra.mxu0 0.0
        %837 = vmatprep.subr.mxu0 0.0
        %838 = vmatpush1.msra.mxu0 0.0
        %839 = vmatprep.subr.mxu0 0.0
        %840 = vmatpush1.msra.mxu0 0.0
        %841 = vmatprep.subr.mxu0 0.0
        %842 = vmatpush1.msra.mxu0 0.0
        %843 = vmatprep.subr.mxu0 0.0
        %844 = vmatpush1.msra.mxu0 0.0
        %845 = vmatprep.subr.mxu0 0.0
        %846 = vmatpush1.msra.mxu0 0.0
        %847 = vmatprep.mubr.f32.mxu0 0.0
        %v848 = vand.u32 %v473, 4294901760
        %v849 = vsub.f32 %v473, %v848
        %850 = vmatmul.mubr.f32.gmra.mrb[0].mxu0 %v849
        %v851 = vpop.f32.mrb[0].mxu0
        %v852 = vadd.f32 %v739, %v851
        %v853 = vpop.f32.mrb[0].mxu0
        %v854 = vadd.f32 %v741, %v853
        %855 = vdwg.mxu0
        %v856 = vand.u32 %v440, 4294901760
        %857 = vmatprep.subr.mxu0 %v856
        %v858 = vand.u32 %v439, 4294901760
        %859 = vmatpush1.msra.mxu0 %v858
        %v860 = vand.u32 %v442, 4294901760
        %861 = vmatprep.subr.mxu0 %v860
        %v862 = vand.u32 %v441, 4294901760
        %863 = vmatpush1.msra.mxu0 %v862
        %v864 = vand.u32 %v444, 4294901760
        %865 = vmatprep.subr.mxu0 %v864
        %v866 = vand.u32 %v443, 4294901760
        %867 = vmatpush1.msra.mxu0 %v866
        %v868 = vand.u32 %v446, 4294901760
        %869 = vmatprep.subr.mxu0 %v868
        %v870 = vand.u32 %v445, 4294901760
        %871 = vmatpush1.msra.mxu0 %v870
        %v872 = vand.u32 %v448, 4294901760
        %873 = vmatprep.subr.mxu0 %v872
        %v874 = vand.u32 %v447, 4294901760
        %875 = vmatpush1.msra.mxu0 %v874
        %v876 = vand.u32 %v450, 4294901760
        %877 = vmatprep.subr.mxu0 %v876
        %v878 = vand.u32 %v449, 4294901760
        %879 = vmatpush1.msra.mxu0 %v878
        %v880 = vand.u32 %v452, 4294901760
        %881 = vmatprep.subr.mxu0 %v880
        %v882 = vand.u32 %v451, 4294901760
        %883 = vmatpush1.msra.mxu0 %v882
        %v884 = vand.u32 %v454, 4294901760
        %885 = vmatprep.subr.mxu0 %v884
        %v886 = vand.u32 %v453, 4294901760
        %887 = vmatpush1.msra.mxu0 %v886
        %v888 = vand.u32 %v456, 4294901760
        %889 = vmatprep.subr.mxu0 %v888
        %v890 = vand.u32 %v455, 4294901760
        %891 = vmatpush1.msra.mxu0 %v890
        %v892 = vand.u32 %v458, 4294901760
        %893 = vmatprep.subr.mxu0 %v892
        %v894 = vand.u32 %v457, 4294901760
        %895 = vmatpush1.msra.mxu0 %v894
        %896 = vmatprep.subr.mxu0 0.0
        %897 = vmatpush1.msra.mxu0 0.0
        %898 = vmatprep.subr.mxu0 0.0
        %899 = vmatpush1.msra.mxu0 0.0
        %900 = vmatprep.subr.mxu0 0.0
        %901 = vmatpush1.msra.mxu0 0.0
        %902 = vmatprep.subr.mxu0 0.0
        %903 = vmatpush1.msra.mxu0 0.0
        %904 = vmatprep.subr.mxu0 0.0
        %905 = vmatpush1.msra.mxu0 0.0
        %906 = vmatprep.subr.mxu0 0.0
        %907 = vmatpush1.msra.mxu0 0.0
        %908 = vmatprep.subr.mxu0 0.0
        %909 = vmatpush1.msra.mxu0 0.0
        %910 = vmatprep.subr.mxu0 0.0
        %911 = vmatpush1.msra.mxu0 0.0
        %912 = vmatprep.subr.mxu0 0.0
        %913 = vmatpush1.msra.mxu0 0.0
        %914 = vmatprep.subr.mxu0 0.0
        %915 = vmatpush1.msra.mxu0 0.0
        %916 = vmatprep.subr.mxu0 0.0
        %917 = vmatpush1.msra.mxu0 0.0
        %918 = vmatprep.subr.mxu0 0.0
        %919 = vmatpush1.msra.mxu0 0.0
        %920 = vmatprep.subr.mxu0 0.0
        %921 = vmatpush1.msra.mxu0 0.0
        %922 = vmatprep.subr.mxu0 0.0
        %923 = vmatpush1.msra.mxu0 0.0
        %924 = vmatprep.subr.mxu0 0.0
        %925 = vmatpush1.msra.mxu0 0.0
        %926 = vmatprep.subr.mxu0 0.0
        %927 = vmatpush1.msra.mxu0 0.0
        %928 = vmatprep.subr.mxu0 0.0
        %929 = vmatpush1.msra.mxu0 0.0
        %930 = vmatprep.subr.mxu0 0.0
        %931 = vmatpush1.msra.mxu0 0.0
        %932 = vmatprep.subr.mxu0 0.0
        %933 = vmatpush1.msra.mxu0 0.0
        %934 = vmatprep.subr.mxu0 0.0
        %935 = vmatpush1.msra.mxu0 0.0
        %936 = vmatprep.subr.mxu0 0.0
        %937 = vmatpush1.msra.mxu0 0.0
        %938 = vmatprep.subr.mxu0 0.0
        %939 = vmatpush1.msra.mxu0 0.0
        %940 = vmatprep.mubr.f32.mxu0 0.0
        %v941 = vand.u32 %v473, 4294901760
        %v942 = vsub.f32 %v473, %v941
        %v943 = vand.u32 %v942, 4294901760
        %944 = vmatmul.mubr.f32.gmra.mrb[0].mxu0 %v943
        %v945 = vpop.f32.mrb[0].mxu0
        %v946 = vadd.f32 %v852, %v945
        %v947 = vpop.f32.mrb[0].mxu0
        %v948 = vadd.f32 %v854, %v947
        %949 = vdwg.mxu0
        %v950 = vand.u32 %v440, 4294901760
        %v951 = vsub.f32 %v440, %v950
        %v952 = vand.u32 %v951, 4294901760
        %953 = vmatprep.subr.mxu0 %v952
        %v954 = vand.u32 %v439, 4294901760
        %v955 = vsub.f32 %v439, %v954
        %v956 = vand.u32 %v955, 4294901760
        %957 = vmatpush1.msra.mxu0 %v956
        %v958 = vand.u32 %v442, 4294901760
        %v959 = vsub.f32 %v442, %v958
        %v960 = vand.u32 %v959, 4294901760
        %961 = vmatprep.subr.mxu0 %v960
        %v962 = vand.u32 %v441, 4294901760
        %v963 = vsub.f32 %v441, %v962
        %v964 = vand.u32 %v963, 4294901760
        %965 = vmatpush1.msra.mxu0 %v964
        %v966 = vand.u32 %v444, 4294901760
        %v967 = vsub.f32 %v444, %v966
        %v968 = vand.u32 %v967, 4294901760
        %969 = vmatprep.subr.mxu0 %v968
        %v970 = vand.u32 %v443, 4294901760
        %v971 = vsub.f32 %v443, %v970
        %v972 = vand.u32 %v971, 4294901760
        %973 = vmatpush1.msra.mxu0 %v972
        %v974 = vand.u32 %v446, 4294901760
        %v975 = vsub.f32 %v446, %v974
        %v976 = vand.u32 %v975, 4294901760
        %977 = vmatprep.subr.mxu0 %v976
        %v978 = vand.u32 %v445, 4294901760
        %v979 = vsub.f32 %v445, %v978
        %v980 = vand.u32 %v979, 4294901760
        %981 = vmatpush1.msra.mxu0 %v980
        %v982 = vand.u32 %v448, 4294901760
        %v983 = vsub.f32 %v448, %v982
        %v984 = vand.u32 %v983, 4294901760
        %985 = vmatprep.subr.mxu0 %v984
        %v986 = vand.u32 %v447, 4294901760
        %v987 = vsub.f32 %v447, %v986
        %v988 = vand.u32 %v987, 4294901760
        %989 = vmatpush1.msra.mxu0 %v988
        %v990 = vand.u32 %v450, 4294901760
        %v991 = vsub.f32 %v450, %v990
        %v992 = vand.u32 %v991, 4294901760
        %993 = vmatprep.subr.mxu0 %v992
        %v994 = vand.u32 %v449, 4294901760
        %v995 = vsub.f32 %v449, %v994
        %v996 = vand.u32 %v995, 4294901760
        %997 = vmatpush1.msra.mxu0 %v996
        %v998 = vand.u32 %v452, 4294901760
        %v999 = vsub.f32 %v452, %v998
        %v1000 = vand.u32 %v999, 4294901760
        %1001 = vmatprep.subr.mxu0 %v1000
        %v1002 = vand.u32 %v451, 4294901760
        %v1003 = vsub.f32 %v451, %v1002
        %v1004 = vand.u32 %v1003, 4294901760
        %1005 = vmatpush1.msra.mxu0 %v1004
        %v1006 = vand.u32 %v454, 4294901760
        %v1007 = vsub.f32 %v454, %v1006
        %v1008 = vand.u32 %v1007, 4294901760
        %1009 = vmatprep.subr.mxu0 %v1008
        %v1010 = vand.u32 %v453, 4294901760
        %v1011 = vsub.f32 %v453, %v1010
        %v1012 = vand.u32 %v1011, 4294901760
        %1013 = vmatpush1.msra.mxu0 %v1012
        %v1014 = vand.u32 %v456, 4294901760
        %v1015 = vsub.f32 %v456, %v1014
        %v1016 = vand.u32 %v1015, 4294901760
        %1017 = vmatprep.subr.mxu0 %v1016
        %v1018 = vand.u32 %v455, 4294901760
        %v1019 = vsub.f32 %v455, %v1018
        %v1020 = vand.u32 %v1019, 4294901760
        %1021 = vmatpush1.msra.mxu0 %v1020
        %v1022 = vand.u32 %v458, 4294901760
        %v1023 = vsub.f32 %v458, %v1022
        %v1024 = vand.u32 %v1023, 4294901760
        %1025 = vmatprep.subr.mxu0 %v1024
        %v1026 = vand.u32 %v457, 4294901760
        %v1027 = vsub.f32 %v457, %v1026
        %v1028 = vand.u32 %v1027, 4294901760
        %1029 = vmatpush1.msra.mxu0 %v1028
        %1030 = vmatprep.subr.mxu0 0.0
        %1031 = vmatpush1.msra.mxu0 0.0
        %1032 = vmatprep.subr.mxu0 0.0
        %1033 = vmatpush1.msra.mxu0 0.0
        %1034 = vmatprep.subr.mxu0 0.0
        %1035 = vmatpush1.msra.mxu0 0.0
        %1036 = vmatprep.subr.mxu0 0.0
        %1037 = vmatpush1.msra.mxu0 0.0
        %1038 = vmatprep.subr.mxu0 0.0
        %1039 = vmatpush1.msra.mxu0 0.0
        %1040 = vmatprep.subr.mxu0 0.0
        %1041 = vmatpush1.msra.mxu0 0.0
        %1042 = vmatprep.subr.mxu0 0.0
        %1043 = vmatpush1.msra.mxu0 0.0
        %1044 = vmatprep.subr.mxu0 0.0
        %1045 = vmatpush1.msra.mxu0 0.0
        %1046 = vmatprep.subr.mxu0 0.0
        %1047 = vmatpush1.msra.mxu0 0.0
        %1048 = vmatprep.subr.mxu0 0.0
        %1049 = vmatpush1.msra.mxu0 0.0
        %1050 = vmatprep.subr.mxu0 0.0
        %1051 = vmatpush1.msra.mxu0 0.0
        %1052 = vmatprep.subr.mxu0 0.0
        %1053 = vmatpush1.msra.mxu0 0.0
        %1054 = vmatprep.subr.mxu0 0.0
        %1055 = vmatpush1.msra.mxu0 0.0
        %1056 = vmatprep.subr.mxu0 0.0
        %1057 = vmatpush1.msra.mxu0 0.0
        %1058 = vmatprep.subr.mxu0 0.0
        %1059 = vmatpush1.msra.mxu0 0.0
        %1060 = vmatprep.subr.mxu0 0.0
        %1061 = vmatpush1.msra.mxu0 0.0
        %1062 = vmatprep.subr.mxu0 0.0
        %1063 = vmatpush1.msra.mxu0 0.0
        %1064 = vmatprep.subr.mxu0 0.0
        %1065 = vmatpush1.msra.mxu0 0.0
        %1066 = vmatprep.subr.mxu0 0.0
        %1067 = vmatpush1.msra.mxu0 0.0
        %1068 = vmatprep.subr.mxu0 0.0
        %1069 = vmatpush1.msra.mxu0 0.0
        %1070 = vmatprep.subr.mxu0 0.0
        %1071 = vmatpush1.msra.mxu0 0.0
        %1072 = vmatprep.subr.mxu0 0.0
        %1073 = vmatpush1.msra.mxu0 0.0
        %1074 = vmatprep.mubr.f32.mxu0 0.0
        %v1075 = vand.u32 %v473, 4294901760
        %1076 = vmatmul.mubr.f32.gmra.mrb[0].mxu0 %v1075
        %v1077 = vpop.f32.mrb[0].mxu0
        %v1078 = vadd.f32 %v946, %v1077
        %v1079 = vpop.f32.mrb[0].mxu0
        %v1080 = vadd.f32 %v948, %v1079
        %1081 = vdwg.mxu0
        %v1082 = vand.u32 %v440, 4294901760
        %1083 = vmatprep.subr.mxu0 %v1082
        %v1084 = vand.u32 %v439, 4294901760
        %1085 = vmatpush1.msra.mxu0 %v1084
        %v1086 = vand.u32 %v442, 4294901760
        %1087 = vmatprep.subr.mxu0 %v1086
        %v1088 = vand.u32 %v441, 4294901760
        %1089 = vmatpush1.msra.mxu0 %v1088
        %v1090 = vand.u32 %v444, 4294901760
        %1091 = vmatprep.subr.mxu0 %v1090
        %v1092 = vand.u32 %v443, 4294901760
        %1093 = vmatpush1.msra.mxu0 %v1092
        %v1094 = vand.u32 %v446, 4294901760
        %1095 = vmatprep.subr.mxu0 %v1094
        %v1096 = vand.u32 %v445, 4294901760
        %1097 = vmatpush1.msra.mxu0 %v1096
        %v1098 = vand.u32 %v448, 4294901760
        %1099 = vmatprep.subr.mxu0 %v1098
        %v1100 = vand.u32 %v447, 4294901760
        %1101 = vmatpush1.msra.mxu0 %v1100
        %v1102 = vand.u32 %v450, 4294901760
        %1103 = vmatprep.subr.mxu0 %v1102
        %v1104 = vand.u32 %v449, 4294901760
        %1105 = vmatpush1.msra.mxu0 %v1104
        %v1106 = vand.u32 %v452, 4294901760
        %1107 = vmatprep.subr.mxu0 %v1106
        %v1108 = vand.u32 %v451, 4294901760
        %1109 = vmatpush1.msra.mxu0 %v1108
        %v1110 = vand.u32 %v454, 4294901760
        %1111 = vmatprep.subr.mxu0 %v1110
        %v1112 = vand.u32 %v453, 4294901760
        %1113 = vmatpush1.msra.mxu0 %v1112
        %v1114 = vand.u32 %v456, 4294901760
        %1115 = vmatprep.subr.mxu0 %v1114
        %v1116 = vand.u32 %v455, 4294901760
        %1117 = vmatpush1.msra.mxu0 %v1116
        %v1118 = vand.u32 %v458, 4294901760
        %1119 = vmatprep.subr.mxu0 %v1118
        %v1120 = vand.u32 %v457, 4294901760
        %1121 = vmatpush1.msra.mxu0 %v1120
        %1122 = vmatprep.subr.mxu0 0.0
        %1123 = vmatpush1.msra.mxu0 0.0
        %1124 = vmatprep.subr.mxu0 0.0
        %1125 = vmatpush1.msra.mxu0 0.0
        %1126 = vmatprep.subr.mxu0 0.0
        %1127 = vmatpush1.msra.mxu0 0.0
        %1128 = vmatprep.subr.mxu0 0.0
        %1129 = vmatpush1.msra.mxu0 0.0
        %1130 = vmatprep.subr.mxu0 0.0
        %1131 = vmatpush1.msra.mxu0 0.0
        %1132 = vmatprep.subr.mxu0 0.0
        %1133 = vmatpush1.msra.mxu0 0.0
        %1134 = vmatprep.subr.mxu0 0.0
        %1135 = vmatpush1.msra.mxu0 0.0
        %1136 = vmatprep.subr.mxu0 0.0
        %1137 = vmatpush1.msra.mxu0 0.0
        %1138 = vmatprep.subr.mxu0 0.0
        %1139 = vmatpush1.msra.mxu0 0.0
        %1140 = vmatprep.subr.mxu0 0.0
        %1141 = vmatpush1.msra.mxu0 0.0
        %1142 = vmatprep.subr.mxu0 0.0
        %1143 = vmatpush1.msra.mxu0 0.0
        %1144 = vmatprep.subr.mxu0 0.0
        %1145 = vmatpush1.msra.mxu0 0.0
        %1146 = vmatprep.subr.mxu0 0.0
        %1147 = vmatpush1.msra.mxu0 0.0
        %1148 = vmatprep.subr.mxu0 0.0
        %1149 = vmatpush1.msra.mxu0 0.0
        %1150 = vmatprep.subr.mxu0 0.0
        %1151 = vmatpush1.msra.mxu0 0.0
        %1152 = vmatprep.subr.mxu0 0.0
        %1153 = vmatpush1.msra.mxu0 0.0
        %1154 = vmatprep.subr.mxu0 0.0
        %1155 = vmatpush1.msra.mxu0 0.0
        %1156 = vmatprep.subr.mxu0 0.0
        %1157 = vmatpush1.msra.mxu0 0.0
        %1158 = vmatprep.subr.mxu0 0.0
        %1159 = vmatpush1.msra.mxu0 0.0
        %1160 = vmatprep.subr.mxu0 0.0
        %1161 = vmatpush1.msra.mxu0 0.0
        %1162 = vmatprep.subr.mxu0 0.0
        %1163 = vmatpush1.msra.mxu0 0.0
        %1164 = vmatprep.subr.mxu0 0.0
        %1165 = vmatpush1.msra.mxu0 0.0
        %1166 = vmatprep.mubr.f32.mxu0 0.0
        %v1167 = vand.u32 %v473, 4294901760
        %1168 = vmatmul.mubr.f32.gmra.mrb[0].mxu0 %v1167
        %v1169 = vpop.f32.mrb[0].mxu0
        %v1170 = vadd.f32 %v1078, %v1169
        %v1171 = vpop.f32.mrb[0].mxu0
        %v1172 = vadd.f32 %v1080, %v1171
        %1173 = vdwg.mxu0
        %v1174 = vsub.f32 1.0, %v418
        %v1175 = vxor.u32 %v1170, 2147483648
        %v1176 = vmul.f32 %v1175, 1.442695
        %v1177 = vpow.pop %v1176
        %v1178 = vadd.f32 %v1177, 1.0
        %v1179 = vrcp.pop %v1178
        %v1180 = vmul.f32 1.0, %v1179
        %1182 = vset.pattern.permute.xlu0 0
        %1183 = vperm.xlu0 %1182, %v1174
        %v1184 = vpop.permute.xlu0 %1183
        %v1186 = vmul.f32 %v1184, %v1180
        %v1187 = vmul.f32 %v1186, %v413
        %v1188 = vtanh.pop %v1170
        %1190 = vrot.lane.b32.xlu0 %v1188, 64
        %v1191 = vpop.permute.xlu0 %1190
        %v1193 = vmul.f32 %v1180, %v1191
        %1195 = vrot.lane.b32.xlu0 %v1193, 96
        %v1196 = vpop.permute.xlu0 %1195
        %v1198 = vadd.f32 %v1187, %v1196
        %v1199 = vtanh.pop %v1198
        %1201 = vrot.lane.b32.xlu0 %v1199, 64
        %v1202 = vpop.permute.xlu0 %1201
        %v1204 = vmul.f32 %v1180, %v1202
        %vm1205 = vcmp.gt.f32.partialorder %v1172, 0.0
        %v1206 = vsel %vm1205, 1, 0
        %v1207 = vcvt.s32.f32 %v1206
        %1209 = vset.pattern.permute.xlu0 0
        %1210 = vperm.xlu0 %1209, %v407
        %v1211 = vpop.permute.xlu0 %1210
        %v1213 = vmul.f32 %v1211, %v1204
        %v1214 = vsub.f32 1.0, %v407
        %1216 = vset.pattern.permute.xlu0 0
        %1217 = vperm.xlu0 %1216, %v1214
        %v1218 = vpop.permute.xlu0 %1217
        %v1220 = vmul.f32 %v1218, %v408
        %1222 = vrot.lane.b32.xlu0 %v1220, 64
        %v1223 = vpop.permute.xlu0 %1222
        %v1225 = vadd.f32 %v1213, %v1223
        %v1226 = vmul.f32 %v1211, %v1198
        %v1227 = vmul.f32 %v1218, %v413
        %v1228 = vadd.f32 %v1226, %v1227
        %v1229 = vmul.f32 %v407, %v1207
        %v1230 = vmul.f32 %v1214, %v418
        %v1231 = vadd.f32 %v1229, %v1230
        %1233 = vset.pattern.permute.xlu0 0
        %1234 = vperm.xlu0 %1233, %v1231
        %v1235 = vpop.permute.xlu0 %1234
        %v1237 = vmul.f32 %v1235, %v1225
        %1239 = vset.pattern.permute.xlu0 0
        %1240 = vperm.xlu0 %1239, %v420
        %v1241 = vpop.permute.xlu0 %1240
        %v1243 = vmul.f32 %v1241, %v412
        %1245 = vrot.lane.b32.xlu0 %v1237, 96
        %v1246 = vpop.permute.xlu0 %1245
        %1249 = vrot.lane.b32.xlu0 %v1243, 64
        %v1250 = vpop.permute.xlu0 %1249
        %v1252 = vsel %vm435, %v410, %v1246
        %vm1253 = vcmask 523264
        %v1254 = vsel %vm1253, %v1252, %v1250
        %v1255 = vld [vmem:[%s4] sm:$0xff]
        %v1256 = vld [vmem:[%s4 + $0x8] sm:$0xff]
        %v1257 = vld [vmem:[%s4 + $0x10] sm:$0xff]
        %v1258 = vld [vmem:[%s4 + $0x18] sm:$0xff]
        %v1259 = vld [vmem:[%s4 + $0x20] sm:$0xff]
        %v1260 = vld [vmem:[%s4 + $0x28] sm:$0xff]
        %v1261 = vld [vmem:[%s4 + $0x30] sm:$0xff]
        %v1262 = vld [vmem:[%s4 + $0x38] sm:$0xff]
        %v1263 = vld [vmem:[%s4 + $0x40] sm:$0xff]
        %v1264 = vld [vmem:[%s4 + $0x48] sm:$0xff]
        %v1265 = vld [vmem:[%s4 + $0x50] sm:$0xff]
        %v1266 = vld [vmem:[%s4 + $0x58] sm:$0xff]
        %v1267 = vld [vmem:[%s4 + $0x60] sm:$0xff]
        %v1268 = vld [vmem:[%s4 + $0x68] sm:$0xff]
        %v1269 = vld [vmem:[%s4 + $0x70] sm:$0xff]
        %v1270 = vld [vmem:[%s4 + $0x78] sm:$0xff]
        %v1271 = vld [vmem:[%s4 + $0x80] sm:$0xff]
        %v1272 = vld [vmem:[%s4 + $0x88] sm:$0xff]
        %v1273 = vld [vmem:[%s4 + $0x90] sm:$0xff]
        %v1274 = vld [vmem:[%s4 + $0x98] sm:$0xff]
        %v1275 = vld [vmem:[%s4 + $0xa0] sm:$0xff]
        %v1276 = vld [vmem:[%s4 + $0xa8] sm:$0xff]
        %v1277 = vld [vmem:[%s4 + $0xb0] sm:$0xff]
        %v1278 = vld [vmem:[%s4 + $0xb8] sm:$0xff]
        %v1279 = vld [vmem:[%s5] sm:$0x3]
        %v1281 = vlaneseq
        %v1282 = vshrl.u32 %v1281, 7
        %v1283 = vsub.s32 0, %v1282
        %v1284 = vrot.slane %v1279, %v1283
        %v1285 = vlaneseq
        %v1286 = vshrl.u32 %v1285, 7
        %v1287 = vsub.s32 1, %v1286
        %v1288 = vrot.slane %v1279, %v1287
        %vm1291 = vcmask 785408
        %v1293 = vsel %vm1291, %v1254, 0
        %v1295 = vand.u32 %v1256, 4294901760
        %1296 = vmatprep.subr.mxu0 %v1295
        %v1297 = vand.u32 %v1255, 4294901760
        %1298 = vmatpush1.msra.mxu0 %v1297
        %v1299 = vand.u32 %v1258, 4294901760
        %1300 = vmatprep.subr.mxu0 %v1299
        %v1301 = vand.u32 %v1257, 4294901760
        %1302 = vmatpush1.msra.mxu0 %v1301
        %v1303 = vand.u32 %v1260, 4294901760
        %1304 = vmatprep.subr.mxu0 %v1303
        %v1305 = vand.u32 %v1259, 4294901760
        %1306 = vmatpush1.msra.mxu0 %v1305
        %v1307 = vand.u32 %v1262, 4294901760
        %1308 = vmatprep.subr.mxu0 %v1307
        %v1309 = vand.u32 %v1261, 4294901760
        %1310 = vmatpush1.msra.mxu0 %v1309
        %v1311 = vand.u32 %v1264, 4294901760
        %1312 = vmatprep.subr.mxu0 %v1311
        %v1313 = vand.u32 %v1263, 4294901760
        %1314 = vmatpush1.msra.mxu0 %v1313
        %v1315 = vand.u32 %v1266, 4294901760
        %1316 = vmatprep.subr.mxu0 %v1315
        %v1317 = vand.u32 %v1265, 4294901760
        %1318 = vmatpush1.msra.mxu0 %v1317
        %v1319 = vand.u32 %v1268, 4294901760
        %1320 = vmatprep.subr.mxu0 %v1319
        %v1321 = vand.u32 %v1267, 4294901760
        %1322 = vmatpush1.msra.mxu0 %v1321
        %v1323 = vand.u32 %v1270, 4294901760
        %1324 = vmatprep.subr.mxu0 %v1323
        %v1325 = vand.u32 %v1269, 4294901760
        %1326 = vmatpush1.msra.mxu0 %v1325
        %v1327 = vand.u32 %v1272, 4294901760
        %1328 = vmatprep.subr.mxu0 %v1327
        %v1329 = vand.u32 %v1271, 4294901760
        %1330 = vmatpush1.msra.mxu0 %v1329
        %v1331 = vand.u32 %v1274, 4294901760
        %1332 = vmatprep.subr.mxu0 %v1331
        %v1333 = vand.u32 %v1273, 4294901760
        %1334 = vmatpush1.msra.mxu0 %v1333
        %v1335 = vand.u32 %v1276, 4294901760
        %1336 = vmatprep.subr.mxu0 %v1335
        %v1337 = vand.u32 %v1275, 4294901760
        %1338 = vmatpush1.msra.mxu0 %v1337
        %v1339 = vand.u32 %v1278, 4294901760
        %1340 = vmatprep.subr.mxu0 %v1339
        %v1341 = vand.u32 %v1277, 4294901760
        %1342 = vmatpush1.msra.mxu0 %v1341
        %1343 = vmatprep.subr.mxu0 0.0
        %1344 = vmatpush1.msra.mxu0 0.0
        %1345 = vmatprep.subr.mxu0 0.0
        %1346 = vmatpush1.msra.mxu0 0.0
        %1347 = vmatprep.subr.mxu0 0.0
        %1348 = vmatpush1.msra.mxu0 0.0
        %1349 = vmatprep.subr.mxu0 0.0
        %1350 = vmatpush1.msra.mxu0 0.0
        %1351 = vmatprep.subr.mxu0 0.0
        %1352 = vmatpush1.msra.mxu0 0.0
        %1353 = vmatprep.subr.mxu0 0.0
        %1354 = vmatpush1.msra.mxu0 0.0
        %1355 = vmatprep.subr.mxu0 0.0
        %1356 = vmatpush1.msra.mxu0 0.0
        %1357 = vmatprep.subr.mxu0 0.0
        %1358 = vmatpush1.msra.mxu0 0.0
        %1359 = vmatprep.subr.mxu0 0.0
        %1360 = vmatpush1.msra.mxu0 0.0
        %1361 = vmatprep.subr.mxu0 0.0
        %1362 = vmatpush1.msra.mxu0 0.0
        %1363 = vmatprep.subr.mxu0 0.0
        %1364 = vmatpush1.msra.mxu0 0.0
        %1365 = vmatprep.subr.mxu0 0.0
        %1366 = vmatpush1.msra.mxu0 0.0
        %1367 = vmatprep.subr.mxu0 0.0
        %1368 = vmatpush1.msra.mxu0 0.0
        %1369 = vmatprep.subr.mxu0 0.0
        %1370 = vmatpush1.msra.mxu0 0.0
        %1371 = vmatprep.subr.mxu0 0.0
        %1372 = vmatpush1.msra.mxu0 0.0
        %1373 = vmatprep.subr.mxu0 0.0
        %1374 = vmatpush1.msra.mxu0 0.0
        %1375 = vmatprep.subr.mxu0 0.0
        %1376 = vmatpush1.msra.mxu0 0.0
        %1377 = vmatprep.subr.mxu0 0.0
        %1378 = vmatpush1.msra.mxu0 0.0
        %1379 = vmatprep.subr.mxu0 0.0
        %1380 = vmatpush1.msra.mxu0 0.0
        %1381 = vmatprep.subr.mxu0 0.0
        %1382 = vmatpush1.msra.mxu0 0.0
        %1383 = vmatprep.mubr.f32.mxu0 0.0
        %v1384 = vand.u32 %v1293, 4294901760
        %v1385 = vsub.f32 %v1293, %v1384
        %v1386 = vand.u32 %v1385, 4294901760
        %v1387 = vsub.f32 %v1385, %v1386
        %v1388 = vand.u32 %v1387, 4294901760
        %1389 = vmatmul.mubr.f32.gmra.mrb[0].mxu0 %v1388
        %v1390 = vpop.f32.mrb[0].mxu0
        %v1391 = vadd.f32 %v1284, %v1390
        %v1392 = vpop.f32.mrb[0].mxu0
        %v1393 = vadd.f32 %v1288, %v1392
        %1394 = vdwg.mxu0
        %v1395 = vand.u32 %v1256, 4294901760
        %v1396 = vsub.f32 %v1256, %v1395
        %v1397 = vand.u32 %v1396, 4294901760
        %v1398 = vsub.f32 %v1396, %v1397
        %v1399 = vand.u32 %v1398, 4294901760
        %1400 = vmatprep.subr.mxu0 %v1399
        %v1401 = vand.u32 %v1255, 4294901760
        %v1402 = vsub.f32 %v1255, %v1401
        %v1403 = vand.u32 %v1402, 4294901760
        %v1404 = vsub.f32 %v1402, %v1403
        %v1405 = vand.u32 %v1404, 4294901760
        %1406 = vmatpush1.msra.mxu0 %v1405
        %v1407 = vand.u32 %v1258, 4294901760
        %v1408 = vsub.f32 %v1258, %v1407
        %v1409 = vand.u32 %v1408, 4294901760
        %v1410 = vsub.f32 %v1408, %v1409
        %v1411 = vand.u32 %v1410, 4294901760
        %1412 = vmatprep.subr.mxu0 %v1411
        %v1413 = vand.u32 %v1257, 4294901760
        %v1414 = vsub.f32 %v1257, %v1413
        %v1415 = vand.u32 %v1414, 4294901760
        %v1416 = vsub.f32 %v1414, %v1415
        %v1417 = vand.u32 %v1416, 4294901760
        %1418 = vmatpush1.msra.mxu0 %v1417
        %v1419 = vand.u32 %v1260, 4294901760
        %v1420 = vsub.f32 %v1260, %v1419
        %v1421 = vand.u32 %v1420, 4294901760
        %v1422 = vsub.f32 %v1420, %v1421
        %v1423 = vand.u32 %v1422, 4294901760
        %1424 = vmatprep.subr.mxu0 %v1423
        %v1425 = vand.u32 %v1259, 4294901760
        %v1426 = vsub.f32 %v1259, %v1425
        %v1427 = vand.u32 %v1426, 4294901760
        %v1428 = vsub.f32 %v1426, %v1427
        %v1429 = vand.u32 %v1428, 4294901760
        %1430 = vmatpush1.msra.mxu0 %v1429
        %v1431 = vand.u32 %v1262, 4294901760
        %v1432 = vsub.f32 %v1262, %v1431
        %v1433 = vand.u32 %v1432, 4294901760
        %v1434 = vsub.f32 %v1432, %v1433
        %v1435 = vand.u32 %v1434, 4294901760
        %1436 = vmatprep.subr.mxu0 %v1435
        %v1437 = vand.u32 %v1261, 4294901760
        %v1438 = vsub.f32 %v1261, %v1437
        %v1439 = vand.u32 %v1438, 4294901760
        %v1440 = vsub.f32 %v1438, %v1439
        %v1441 = vand.u32 %v1440, 4294901760
        %1442 = vmatpush1.msra.mxu0 %v1441
        %v1443 = vand.u32 %v1264, 4294901760
        %v1444 = vsub.f32 %v1264, %v1443
        %v1445 = vand.u32 %v1444, 4294901760
        %v1446 = vsub.f32 %v1444, %v1445
        %v1447 = vand.u32 %v1446, 4294901760
        %1448 = vmatprep.subr.mxu0 %v1447
        %v1449 = vand.u32 %v1263, 4294901760
        %v1450 = vsub.f32 %v1263, %v1449
        %v1451 = vand.u32 %v1450, 4294901760
        %v1452 = vsub.f32 %v1450, %v1451
        %v1453 = vand.u32 %v1452, 4294901760
        %1454 = vmatpush1.msra.mxu0 %v1453
        %v1455 = vand.u32 %v1266, 4294901760
        %v1456 = vsub.f32 %v1266, %v1455
        %v1457 = vand.u32 %v1456, 4294901760
        %v1458 = vsub.f32 %v1456, %v1457
        %v1459 = vand.u32 %v1458, 4294901760
        %1460 = vmatprep.subr.mxu0 %v1459
        %v1461 = vand.u32 %v1265, 4294901760
        %v1462 = vsub.f32 %v1265, %v1461
        %v1463 = vand.u32 %v1462, 4294901760
        %v1464 = vsub.f32 %v1462, %v1463
        %v1465 = vand.u32 %v1464, 4294901760
        %1466 = vmatpush1.msra.mxu0 %v1465
        %v1467 = vand.u32 %v1268, 4294901760
        %v1468 = vsub.f32 %v1268, %v1467
        %v1469 = vand.u32 %v1468, 4294901760
        %v1470 = vsub.f32 %v1468, %v1469
        %v1471 = vand.u32 %v1470, 4294901760
        %1472 = vmatprep.subr.mxu0 %v1471
        %v1473 = vand.u32 %v1267, 4294901760
        %v1474 = vsub.f32 %v1267, %v1473
        %v1475 = vand.u32 %v1474, 4294901760
        %v1476 = vsub.f32 %v1474, %v1475
        %v1477 = vand.u32 %v1476, 4294901760
        %1478 = vmatpush1.msra.mxu0 %v1477
        %v1479 = vand.u32 %v1270, 4294901760
        %v1480 = vsub.f32 %v1270, %v1479
        %v1481 = vand.u32 %v1480, 4294901760
        %v1482 = vsub.f32 %v1480, %v1481
        %v1483 = vand.u32 %v1482, 4294901760
        %1484 = vmatprep.subr.mxu0 %v1483
        %v1485 = vand.u32 %v1269, 4294901760
        %v1486 = vsub.f32 %v1269, %v1485
        %v1487 = vand.u32 %v1486, 4294901760
        %v1488 = vsub.f32 %v1486, %v1487
        %v1489 = vand.u32 %v1488, 4294901760
        %1490 = vmatpush1.msra.mxu0 %v1489
        %v1491 = vand.u32 %v1272, 4294901760
        %v1492 = vsub.f32 %v1272, %v1491
        %v1493 = vand.u32 %v1492, 4294901760
        %v1494 = vsub.f32 %v1492, %v1493
        %v1495 = vand.u32 %v1494, 4294901760
        %1496 = vmatprep.subr.mxu0 %v1495
        %v1497 = vand.u32 %v1271, 4294901760
        %v1498 = vsub.f32 %v1271, %v1497
        %v1499 = vand.u32 %v1498, 4294901760
        %v1500 = vsub.f32 %v1498, %v1499
        %v1501 = vand.u32 %v1500, 4294901760
        %1502 = vmatpush1.msra.mxu0 %v1501
        %v1503 = vand.u32 %v1274, 4294901760
        %v1504 = vsub.f32 %v1274, %v1503
        %v1505 = vand.u32 %v1504, 4294901760
        %v1506 = vsub.f32 %v1504, %v1505
        %v1507 = vand.u32 %v1506, 4294901760
        %1508 = vmatprep.subr.mxu0 %v1507
        %v1509 = vand.u32 %v1273, 4294901760
        %v1510 = vsub.f32 %v1273, %v1509
        %v1511 = vand.u32 %v1510, 4294901760
        %v1512 = vsub.f32 %v1510, %v1511
        %v1513 = vand.u32 %v1512, 4294901760
        %1514 = vmatpush1.msra.mxu0 %v1513
        %v1515 = vand.u32 %v1276, 4294901760
        %v1516 = vsub.f32 %v1276, %v1515
        %v1517 = vand.u32 %v1516, 4294901760
        %v1518 = vsub.f32 %v1516, %v1517
        %v1519 = vand.u32 %v1518, 4294901760
        %1520 = vmatprep.subr.mxu0 %v1519
        %v1521 = vand.u32 %v1275, 4294901760
        %v1522 = vsub.f32 %v1275, %v1521
        %v1523 = vand.u32 %v1522, 4294901760
        %v1524 = vsub.f32 %v1522, %v1523
        %v1525 = vand.u32 %v1524, 4294901760
        %1526 = vmatpush1.msra.mxu0 %v1525
        %v1527 = vand.u32 %v1278, 4294901760
        %v1528 = vsub.f32 %v1278, %v1527
        %v1529 = vand.u32 %v1528, 4294901760
        %v1530 = vsub.f32 %v1528, %v1529
        %v1531 = vand.u32 %v1530, 4294901760
        %1532 = vmatprep.subr.mxu0 %v1531
        %v1533 = vand.u32 %v1277, 4294901760
        %v1534 = vsub.f32 %v1277, %v1533
        %v1535 = vand.u32 %v1534, 4294901760
        %v1536 = vsub.f32 %v1534, %v1535
        %v1537 = vand.u32 %v1536, 4294901760
        %1538 = vmatpush1.msra.mxu0 %v1537
        %1539 = vmatprep.subr.mxu0 0.0
        %1540 = vmatpush1.msra.mxu0 0.0
        %1541 = vmatprep.subr.mxu0 0.0
        %1542 = vmatpush1.msra.mxu0 0.0
        %1543 = vmatprep.subr.mxu0 0.0
        %1544 = vmatpush1.msra.mxu0 0.0
        %1545 = vmatprep.subr.mxu0 0.0
        %1546 = vmatpush1.msra.mxu0 0.0
        %1547 = vmatprep.subr.mxu0 0.0
        %1548 = vmatpush1.msra.mxu0 0.0
        %1549 = vmatprep.subr.mxu0 0.0
        %1550 = vmatpush1.msra.mxu0 0.0
        %1551 = vmatprep.subr.mxu0 0.0
        %1552 = vmatpush1.msra.mxu0 0.0
        %1553 = vmatprep.subr.mxu0 0.0
        %1554 = vmatpush1.msra.mxu0 0.0
        %1555 = vmatprep.subr.mxu0 0.0
        %1556 = vmatpush1.msra.mxu0 0.0
        %1557 = vmatprep.subr.mxu0 0.0
        %1558 = vmatpush1.msra.mxu0 0.0
        %1559 = vmatprep.subr.mxu0 0.0
        %1560 = vmatpush1.msra.mxu0 0.0
        %1561 = vmatprep.subr.mxu0 0.0
        %1562 = vmatpush1.msra.mxu0 0.0
        %1563 = vmatprep.subr.mxu0 0.0
        %1564 = vmatpush1.msra.mxu0 0.0
        %1565 = vmatprep.subr.mxu0 0.0
        %1566 = vmatpush1.msra.mxu0 0.0
        %1567 = vmatprep.subr.mxu0 0.0
        %1568 = vmatpush1.msra.mxu0 0.0
        %1569 = vmatprep.subr.mxu0 0.0
        %1570 = vmatpush1.msra.mxu0 0.0
        %1571 = vmatprep.subr.mxu0 0.0
        %1572 = vmatpush1.msra.mxu0 0.0
        %1573 = vmatprep.subr.mxu0 0.0
        %1574 = vmatpush1.msra.mxu0 0.0
        %1575 = vmatprep.subr.mxu0 0.0
        %1576 = vmatpush1.msra.mxu0 0.0
        %1577 = vmatprep.subr.mxu0 0.0
        %1578 = vmatpush1.msra.mxu0 0.0
        %1579 = vmatprep.mubr.f32.mxu0 0.0
        %v1580 = vand.u32 %v1293, 4294901760
        %1581 = vmatmul.mubr.f32.gmra.mrb[0].mxu0 %v1580
        %v1582 = vpop.f32.mrb[0].mxu0
        %v1583 = vadd.f32 %v1391, %v1582
        %v1584 = vpop.f32.mrb[0].mxu0
        %v1585 = vadd.f32 %v1393, %v1584
        %1586 = vdwg.mxu0
        %v1587 = vand.u32 %v1256, 4294901760
        %v1588 = vsub.f32 %v1256, %v1587
        %1589 = vmatprep.subr.mxu0 %v1588
        %v1590 = vand.u32 %v1255, 4294901760
        %v1591 = vsub.f32 %v1255, %v1590
        %1592 = vmatpush1.msra.mxu0 %v1591
        %v1593 = vand.u32 %v1258, 4294901760
        %v1594 = vsub.f32 %v1258, %v1593
        %1595 = vmatprep.subr.mxu0 %v1594
        %v1596 = vand.u32 %v1257, 4294901760
        %v1597 = vsub.f32 %v1257, %v1596
        %1598 = vmatpush1.msra.mxu0 %v1597
        %v1599 = vand.u32 %v1260, 4294901760
        %v1600 = vsub.f32 %v1260, %v1599
        %1601 = vmatprep.subr.mxu0 %v1600
        %v1602 = vand.u32 %v1259, 4294901760
        %v1603 = vsub.f32 %v1259, %v1602
        %1604 = vmatpush1.msra.mxu0 %v1603
        %v1605 = vand.u32 %v1262, 4294901760
        %v1606 = vsub.f32 %v1262, %v1605
        %1607 = vmatprep.subr.mxu0 %v1606
        %v1608 = vand.u32 %v1261, 4294901760
        %v1609 = vsub.f32 %v1261, %v1608
        %1610 = vmatpush1.msra.mxu0 %v1609
        %v1611 = vand.u32 %v1264, 4294901760
        %v1612 = vsub.f32 %v1264, %v1611
        %1613 = vmatprep.subr.mxu0 %v1612
        %v1614 = vand.u32 %v1263, 4294901760
        %v1615 = vsub.f32 %v1263, %v1614
        %1616 = vmatpush1.msra.mxu0 %v1615
        %v1617 = vand.u32 %v1266, 4294901760
        %v1618 = vsub.f32 %v1266, %v1617
        %1619 = vmatprep.subr.mxu0 %v1618
        %v1620 = vand.u32 %v1265, 4294901760
        %v1621 = vsub.f32 %v1265, %v1620
        %1622 = vmatpush1.msra.mxu0 %v1621
        %v1623 = vand.u32 %v1268, 4294901760
        %v1624 = vsub.f32 %v1268, %v1623
        %1625 = vmatprep.subr.mxu0 %v1624
        %v1626 = vand.u32 %v1267, 4294901760
        %v1627 = vsub.f32 %v1267, %v1626
        %1628 = vmatpush1.msra.mxu0 %v1627
        %v1629 = vand.u32 %v1270, 4294901760
        %v1630 = vsub.f32 %v1270, %v1629
        %1631 = vmatprep.subr.mxu0 %v1630
        %v1632 = vand.u32 %v1269, 4294901760
        %v1633 = vsub.f32 %v1269, %v1632
        %1634 = vmatpush1.msra.mxu0 %v1633
        %v1635 = vand.u32 %v1272, 4294901760
        %v1636 = vsub.f32 %v1272, %v1635
        %1637 = vmatprep.subr.mxu0 %v1636
        %v1638 = vand.u32 %v1271, 4294901760
        %v1639 = vsub.f32 %v1271, %v1638
        %1640 = vmatpush1.msra.mxu0 %v1639
        %v1641 = vand.u32 %v1274, 4294901760
        %v1642 = vsub.f32 %v1274, %v1641
        %1643 = vmatprep.subr.mxu0 %v1642
        %v1644 = vand.u32 %v1273, 4294901760
        %v1645 = vsub.f32 %v1273, %v1644
        %1646 = vmatpush1.msra.mxu0 %v1645
        %v1647 = vand.u32 %v1276, 4294901760
        %v1648 = vsub.f32 %v1276, %v1647
        %1649 = vmatprep.subr.mxu0 %v1648
        %v1650 = vand.u32 %v1275, 4294901760
        %v1651 = vsub.f32 %v1275, %v1650
        %1652 = vmatpush1.msra.mxu0 %v1651
        %v1653 = vand.u32 %v1278, 4294901760
        %v1654 = vsub.f32 %v1278, %v1653
        %1655 = vmatprep.subr.mxu0 %v1654
        %v1656 = vand.u32 %v1277, 4294901760
        %v1657 = vsub.f32 %v1277, %v1656
        %1658 = vmatpush1.msra.mxu0 %v1657
        %1659 = vmatprep.subr.mxu0 0.0
        %1660 = vmatpush1.msra.mxu0 0.0
        %1661 = vmatprep.subr.mxu0 0.0
        %1662 = vmatpush1.msra.mxu0 0.0
        %1663 = vmatprep.subr.mxu0 0.0
        %1664 = vmatpush1.msra.mxu0 0.0
        %1665 = vmatprep.subr.mxu0 0.0
        %1666 = vmatpush1.msra.mxu0 0.0
        %1667 = vmatprep.subr.mxu0 0.0
        %1668 = vmatpush1.msra.mxu0 0.0
        %1669 = vmatprep.subr.mxu0 0.0
        %1670 = vmatpush1.msra.mxu0 0.0
        %1671 = vmatprep.subr.mxu0 0.0
        %1672 = vmatpush1.msra.mxu0 0.0
        %1673 = vmatprep.subr.mxu0 0.0
        %1674 = vmatpush1.msra.mxu0 0.0
        %1675 = vmatprep.subr.mxu0 0.0
        %1676 = vmatpush1.msra.mxu0 0.0
        %1677 = vmatprep.subr.mxu0 0.0
        %1678 = vmatpush1.msra.mxu0 0.0
        %1679 = vmatprep.subr.mxu0 0.0
        %1680 = vmatpush1.msra.mxu0 0.0
        %1681 = vmatprep.subr.mxu0 0.0
        %1682 = vmatpush1.msra.mxu0 0.0
        %1683 = vmatprep.subr.mxu0 0.0
        %1684 = vmatpush1.msra.mxu0 0.0
        %1685 = vmatprep.subr.mxu0 0.0
        %1686 = vmatpush1.msra.mxu0 0.0
        %1687 = vmatprep.subr.mxu0 0.0
        %1688 = vmatpush1.msra.mxu0 0.0
        %1689 = vmatprep.subr.mxu0 0.0
        %1690 = vmatpush1.msra.mxu0 0.0
        %1691 = vmatprep.subr.mxu0 0.0
        %1692 = vmatpush1.msra.mxu0 0.0
        %1693 = vmatprep.subr.mxu0 0.0
        %1694 = vmatpush1.msra.mxu0 0.0
        %1695 = vmatprep.subr.mxu0 0.0
        %1696 = vmatpush1.msra.mxu0 0.0
        %1697 = vmatprep.subr.mxu0 0.0
        %1698 = vmatpush1.msra.mxu0 0.0
        %1699 = vmatprep.mubr.f32.mxu0 0.0
        %v1700 = vand.u32 %v1293, 4294901760
        %v1701 = vsub.f32 %v1293, %v1700
        %1702 = vmatmul.mubr.f32.gmra.mrb[0].mxu0 %v1701
        %v1703 = vpop.f32.mrb[0].mxu0
        %v1704 = vadd.f32 %v1583, %v1703
        %v1705 = vpop.f32.mrb[0].mxu0
        %v1706 = vadd.f32 %v1585, %v1705
        %1707 = vdwg.mxu0
        %v1708 = vand.u32 %v1256, 4294901760
        %1709 = vmatprep.subr.mxu0 %v1708
        %v1710 = vand.u32 %v1255, 4294901760
        %1711 = vmatpush1.msra.mxu0 %v1710
        %v1712 = vand.u32 %v1258, 4294901760
        %1713 = vmatprep.subr.mxu0 %v1712
        %v1714 = vand.u32 %v1257, 4294901760
        %1715 = vmatpush1.msra.mxu0 %v1714
        %v1716 = vand.u32 %v1260, 4294901760
        %1717 = vmatprep.subr.mxu0 %v1716
        %v1718 = vand.u32 %v1259, 4294901760
        %1719 = vmatpush1.msra.mxu0 %v1718
        %v1720 = vand.u32 %v1262, 4294901760
        %1721 = vmatprep.subr.mxu0 %v1720
        %v1722 = vand.u32 %v1261, 4294901760
        %1723 = vmatpush1.msra.mxu0 %v1722
        %v1724 = vand.u32 %v1264, 4294901760
        %1725 = vmatprep.subr.mxu0 %v1724
        %v1726 = vand.u32 %v1263, 4294901760
        %1727 = vmatpush1.msra.mxu0 %v1726
        %v1728 = vand.u32 %v1266, 4294901760
        %1729 = vmatprep.subr.mxu0 %v1728
        %v1730 = vand.u32 %v1265, 4294901760
        %1731 = vmatpush1.msra.mxu0 %v1730
        %v1732 = vand.u32 %v1268, 4294901760
        %1733 = vmatprep.subr.mxu0 %v1732
        %v1734 = vand.u32 %v1267, 4294901760
        %1735 = vmatpush1.msra.mxu0 %v1734
        %v1736 = vand.u32 %v1270, 4294901760
        %1737 = vmatprep.subr.mxu0 %v1736
        %v1738 = vand.u32 %v1269, 4294901760
        %1739 = vmatpush1.msra.mxu0 %v1738
        %v1740 = vand.u32 %v1272, 4294901760
        %1741 = vmatprep.subr.mxu0 %v1740
        %v1742 = vand.u32 %v1271, 4294901760
        %1743 = vmatpush1.msra.mxu0 %v1742
        %v1744 = vand.u32 %v1274, 4294901760
        %1745 = vmatprep.subr.mxu0 %v1744
        %v1746 = vand.u32 %v1273, 4294901760
        %1747 = vmatpush1.msra.mxu0 %v1746
        %v1748 = vand.u32 %v1276, 4294901760
        %1749 = vmatprep.subr.mxu0 %v1748
        %v1750 = vand.u32 %v1275, 4294901760
        %1751 = vmatpush1.msra.mxu0 %v1750
        %v1752 = vand.u32 %v1278, 4294901760
        %1753 = vmatprep.subr.mxu0 %v1752
        %v1754 = vand.u32 %v1277, 4294901760
        %1755 = vmatpush1.msra.mxu0 %v1754
        %1756 = vmatprep.subr.mxu0 0.0
        %1757 = vmatpush1.msra.mxu0 0.0
        %1758 = vmatprep.subr.mxu0 0.0
        %1759 = vmatpush1.msra.mxu0 0.0
        %1760 = vmatprep.subr.mxu0 0.0
        %1761 = vmatpush1.msra.mxu0 0.0
        %1762 = vmatprep.subr.mxu0 0.0
        %1763 = vmatpush1.msra.mxu0 0.0
        %1764 = vmatprep.subr.mxu0 0.0
        %1765 = vmatpush1.msra.mxu0 0.0
        %1766 = vmatprep.subr.mxu0 0.0
        %1767 = vmatpush1.msra.mxu0 0.0
        %1768 = vmatprep.subr.mxu0 0.0
        %1769 = vmatpush1.msra.mxu0 0.0
        %1770 = vmatprep.subr.mxu0 0.0
        %1771 = vmatpush1.msra.mxu0 0.0
        %1772 = vmatprep.subr.mxu0 0.0
        %1773 = vmatpush1.msra.mxu0 0.0
        %1774 = vmatprep.subr.mxu0 0.0
        %1775 = vmatpush1.msra.mxu0 0.0
        %1776 = vmatprep.subr.mxu0 0.0
        %1777 = vmatpush1.msra.mxu0 0.0
        %1778 = vmatprep.subr.mxu0 0.0
        %1779 = vmatpush1.msra.mxu0 0.0
        %1780 = vmatprep.subr.mxu0 0.0
        %1781 = vmatpush1.msra.mxu0 0.0
        %1782 = vmatprep.subr.mxu0 0.0
        %1783 = vmatpush1.msra.mxu0 0.0
        %1784 = vmatprep.subr.mxu0 0.0
        %1785 = vmatpush1.msra.mxu0 0.0
        %1786 = vmatprep.subr.mxu0 0.0
        %1787 = vmatpush1.msra.mxu0 0.0
        %1788 = vmatprep.subr.mxu0 0.0
        %1789 = vmatpush1.msra.mxu0 0.0
        %1790 = vmatprep.subr.mxu0 0.0
        %1791 = vmatpush1.msra.mxu0 0.0
        %1792 = vmatprep.subr.mxu0 0.0
        %1793 = vmatpush1.msra.mxu0 0.0
        %1794 = vmatprep.subr.mxu0 0.0
        %1795 = vmatpush1.msra.mxu0 0.0
        %1796 = vmatprep.mubr.f32.mxu0 0.0
        %v1797 = vand.u32 %v1293, 4294901760
        %v1798 = vsub.f32 %v1293, %v1797
        %v1799 = vand.u32 %v1798, 4294901760
        %1800 = vmatmul.mubr.f32.gmra.mrb[0].mxu0 %v1799
        %v1801 = vpop.f32.mrb[0].mxu0
        %v1802 = vadd.f32 %v1704, %v1801
        %v1803 = vpop.f32.mrb[0].mxu0
        %v1804 = vadd.f32 %v1706, %v1803
        %1805 = vdwg.mxu0
        %v1806 = vand.u32 %v1256, 4294901760
        %v1807 = vsub.f32 %v1256, %v1806
        %v1808 = vand.u32 %v1807, 4294901760
        %1809 = vmatprep.subr.mxu0 %v1808
        %v1810 = vand.u32 %v1255, 4294901760
        %v1811 = vsub.f32 %v1255, %v1810
        %v1812 = vand.u32 %v1811, 4294901760
        %1813 = vmatpush1.msra.mxu0 %v1812
        %v1814 = vand.u32 %v1258, 4294901760
        %v1815 = vsub.f32 %v1258, %v1814
        %v1816 = vand.u32 %v1815, 4294901760
        %1817 = vmatprep.subr.mxu0 %v1816
        %v1818 = vand.u32 %v1257, 4294901760
        %v1819 = vsub.f32 %v1257, %v1818
        %v1820 = vand.u32 %v1819, 4294901760
        %1821 = vmatpush1.msra.mxu0 %v1820
        %v1822 = vand.u32 %v1260, 4294901760
        %v1823 = vsub.f32 %v1260, %v1822
        %v1824 = vand.u32 %v1823, 4294901760
        %1825 = vmatprep.subr.mxu0 %v1824
        %v1826 = vand.u32 %v1259, 4294901760
        %v1827 = vsub.f32 %v1259, %v1826
        %v1828 = vand.u32 %v1827, 4294901760
        %1829 = vmatpush1.msra.mxu0 %v1828
        %v1830 = vand.u32 %v1262, 4294901760
        %v1831 = vsub.f32 %v1262, %v1830
        %v1832 = vand.u32 %v1831, 4294901760
        %1833 = vmatprep.subr.mxu0 %v1832
        %v1834 = vand.u32 %v1261, 4294901760
        %v1835 = vsub.f32 %v1261, %v1834
        %v1836 = vand.u32 %v1835, 4294901760
        %1837 = vmatpush1.msra.mxu0 %v1836
        %v1838 = vand.u32 %v1264, 4294901760
        %v1839 = vsub.f32 %v1264, %v1838
        %v1840 = vand.u32 %v1839, 4294901760
        %1841 = vmatprep.subr.mxu0 %v1840
        %v1842 = vand.u32 %v1263, 4294901760
        %v1843 = vsub.f32 %v1263, %v1842
        %v1844 = vand.u32 %v1843, 4294901760
        %1845 = vmatpush1.msra.mxu0 %v1844
        %v1846 = vand.u32 %v1266, 4294901760
        %v1847 = vsub.f32 %v1266, %v1846
        %v1848 = vand.u32 %v1847, 4294901760
        %1849 = vmatprep.subr.mxu0 %v1848
        %v1850 = vand.u32 %v1265, 4294901760
        %v1851 = vsub.f32 %v1265, %v1850
        %v1852 = vand.u32 %v1851, 4294901760
        %1853 = vmatpush1.msra.mxu0 %v1852
        %v1854 = vand.u32 %v1268, 4294901760
        %v1855 = vsub.f32 %v1268, %v1854
        %v1856 = vand.u32 %v1855, 4294901760
        %1857 = vmatprep.subr.mxu0 %v1856
        %v1858 = vand.u32 %v1267, 4294901760
        %v1859 = vsub.f32 %v1267, %v1858
        %v1860 = vand.u32 %v1859, 4294901760
        %1861 = vmatpush1.msra.mxu0 %v1860
        %v1862 = vand.u32 %v1270, 4294901760
        %v1863 = vsub.f32 %v1270, %v1862
        %v1864 = vand.u32 %v1863, 4294901760
        %1865 = vmatprep.subr.mxu0 %v1864
        %v1866 = vand.u32 %v1269, 4294901760
        %v1867 = vsub.f32 %v1269, %v1866
        %v1868 = vand.u32 %v1867, 4294901760
        %1869 = vmatpush1.msra.mxu0 %v1868
        %v1870 = vand.u32 %v1272, 4294901760
        %v1871 = vsub.f32 %v1272, %v1870
        %v1872 = vand.u32 %v1871, 4294901760
        %1873 = vmatprep.subr.mxu0 %v1872
        %v1874 = vand.u32 %v1271, 4294901760
        %v1875 = vsub.f32 %v1271, %v1874
        %v1876 = vand.u32 %v1875, 4294901760
        %1877 = vmatpush1.msra.mxu0 %v1876
        %v1878 = vand.u32 %v1274, 4294901760
        %v1879 = vsub.f32 %v1274, %v1878
        %v1880 = vand.u32 %v1879, 4294901760
        %1881 = vmatprep.subr.mxu0 %v1880
        %v1882 = vand.u32 %v1273, 4294901760
        %v1883 = vsub.f32 %v1273, %v1882
        %v1884 = vand.u32 %v1883, 4294901760
        %1885 = vmatpush1.msra.mxu0 %v1884
        %v1886 = vand.u32 %v1276, 4294901760
        %v1887 = vsub.f32 %v1276, %v1886
        %v1888 = vand.u32 %v1887, 4294901760
        %1889 = vmatprep.subr.mxu0 %v1888
        %v1890 = vand.u32 %v1275, 4294901760
        %v1891 = vsub.f32 %v1275, %v1890
        %v1892 = vand.u32 %v1891, 4294901760
        %1893 = vmatpush1.msra.mxu0 %v1892
        %v1894 = vand.u32 %v1278, 4294901760
        %v1895 = vsub.f32 %v1278, %v1894
        %v1896 = vand.u32 %v1895, 4294901760
        %1897 = vmatprep.subr.mxu0 %v1896
        %v1898 = vand.u32 %v1277, 4294901760
        %v1899 = vsub.f32 %v1277, %v1898
        %v1900 = vand.u32 %v1899, 4294901760
        %1901 = vmatpush1.msra.mxu0 %v1900
        %1902 = vmatprep.subr.mxu0 0.0
        %1903 = vmatpush1.msra.mxu0 0.0
        %1904 = vmatprep.subr.mxu0 0.0
        %1905 = vmatpush1.msra.mxu0 0.0
        %1906 = vmatprep.subr.mxu0 0.0
        %1907 = vmatpush1.msra.mxu0 0.0
        %1908 = vmatprep.subr.mxu0 0.0
        %1909 = vmatpush1.msra.mxu0 0.0
        %1910 = vmatprep.subr.mxu0 0.0
        %1911 = vmatpush1.msra.mxu0 0.0
        %1912 = vmatprep.subr.mxu0 0.0
        %1913 = vmatpush1.msra.mxu0 0.0
        %1914 = vmatprep.subr.mxu0 0.0
        %1915 = vmatpush1.msra.mxu0 0.0
        %1916 = vmatprep.subr.mxu0 0.0
        %1917 = vmatpush1.msra.mxu0 0.0
        %1918 = vmatprep.subr.mxu0 0.0
        %1919 = vmatpush1.msra.mxu0 0.0
        %1920 = vmatprep.subr.mxu0 0.0
        %1921 = vmatpush1.msra.mxu0 0.0
        %1922 = vmatprep.subr.mxu0 0.0
        %1923 = vmatpush1.msra.mxu0 0.0
        %1924 = vmatprep.subr.mxu0 0.0
        %1925 = vmatpush1.msra.mxu0 0.0
        %1926 = vmatprep.subr.mxu0 0.0
        %1927 = vmatpush1.msra.mxu0 0.0
        %1928 = vmatprep.subr.mxu0 0.0
        %1929 = vmatpush1.msra.mxu0 0.0
        %1930 = vmatprep.subr.mxu0 0.0
        %1931 = vmatpush1.msra.mxu0 0.0
        %1932 = vmatprep.subr.mxu0 0.0
        %1933 = vmatpush1.msra.mxu0 0.0
        %1934 = vmatprep.subr.mxu0 0.0
        %1935 = vmatpush1.msra.mxu0 0.0
        %1936 = vmatprep.subr.mxu0 0.0
        %1937 = vmatpush1.msra.mxu0 0.0
        %1938 = vmatprep.subr.mxu0 0.0
        %1939 = vmatpush1.msra.mxu0 0.0
        %1940 = vmatprep.subr.mxu0 0.0
        %1941 = vmatpush1.msra.mxu0 0.0
        %1942 = vmatprep.mubr.f32.mxu0 0.0
        %v1943 = vand.u32 %v1293, 4294901760
        %1944 = vmatmul.mubr.f32.gmra.mrb[0].mxu0 %v1943
        %v1945 = vpop.f32.mrb[0].mxu0
        %v1946 = vadd.f32 %v1802, %v1945
        %v1947 = vpop.f32.mrb[0].mxu0
        %v1948 = vadd.f32 %v1804, %v1947
        %1949 = vdwg.mxu0
        %v1950 = vand.u32 %v1256, 4294901760
        %1951 = vmatprep.subr.mxu0 %v1950
        %v1952 = vand.u32 %v1255, 4294901760
        %1953 = vmatpush1.msra.mxu0 %v1952
        %v1954 = vand.u32 %v1258, 4294901760
        %1955 = vmatprep.subr.mxu0 %v1954
        %v1956 = vand.u32 %v1257, 4294901760
        %1957 = vmatpush1.msra.mxu0 %v1956
        %v1958 = vand.u32 %v1260, 4294901760
        %1959 = vmatprep.subr.mxu0 %v1958
        %v1960 = vand.u32 %v1259, 4294901760
        %1961 = vmatpush1.msra.mxu0 %v1960
        %v1962 = vand.u32 %v1262, 4294901760
        %1963 = vmatprep.subr.mxu0 %v1962
        %v1964 = vand.u32 %v1261, 4294901760
        %1965 = vmatpush1.msra.mxu0 %v1964
        %v1966 = vand.u32 %v1264, 4294901760
        %1967 = vmatprep.subr.mxu0 %v1966
        %v1968 = vand.u32 %v1263, 4294901760
        %1969 = vmatpush1.msra.mxu0 %v1968
        %v1970 = vand.u32 %v1266, 4294901760
        %1971 = vmatprep.subr.mxu0 %v1970
        %v1972 = vand.u32 %v1265, 4294901760
        %1973 = vmatpush1.msra.mxu0 %v1972
        %v1974 = vand.u32 %v1268, 4294901760
        %1975 = vmatprep.subr.mxu0 %v1974
        %v1976 = vand.u32 %v1267, 4294901760
        %1977 = vmatpush1.msra.mxu0 %v1976
        %v1978 = vand.u32 %v1270, 4294901760
        %1979 = vmatprep.subr.mxu0 %v1978
        %v1980 = vand.u32 %v1269, 4294901760
        %1981 = vmatpush1.msra.mxu0 %v1980
        %v1982 = vand.u32 %v1272, 4294901760
        %1983 = vmatprep.subr.mxu0 %v1982
        %v1984 = vand.u32 %v1271, 4294901760
        %1985 = vmatpush1.msra.mxu0 %v1984
        %v1986 = vand.u32 %v1274, 4294901760
        %1987 = vmatprep.subr.mxu0 %v1986
        %v1988 = vand.u32 %v1273, 4294901760
        %1989 = vmatpush1.msra.mxu0 %v1988
        %v1990 = vand.u32 %v1276, 4294901760
        %1991 = vmatprep.subr.mxu0 %v1990
        %v1992 = vand.u32 %v1275, 4294901760
        %1993 = vmatpush1.msra.mxu0 %v1992
        %v1994 = vand.u32 %v1278, 4294901760
        %1995 = vmatprep.subr.mxu0 %v1994
        %v1996 = vand.u32 %v1277, 4294901760
        %1997 = vmatpush1.msra.mxu0 %v1996
        %1998 = vmatprep.subr.mxu0 0.0
        %1999 = vmatpush1.msra.mxu0 0.0
        %2000 = vmatprep.subr.mxu0 0.0
        %2001 = vmatpush1.msra.mxu0 0.0
        %2002 = vmatprep.subr.mxu0 0.0
        %2003 = vmatpush1.msra.mxu0 0.0
        %2004 = vmatprep.subr.mxu0 0.0
        %2005 = vmatpush1.msra.mxu0 0.0
        %2006 = vmatprep.subr.mxu0 0.0
        %2007 = vmatpush1.msra.mxu0 0.0
        %2008 = vmatprep.subr.mxu0 0.0
        %2009 = vmatpush1.msra.mxu0 0.0
        %2010 = vmatprep.subr.mxu0 0.0
        %2011 = vmatpush1.msra.mxu0 0.0
        %2012 = vmatprep.subr.mxu0 0.0
        %2013 = vmatpush1.msra.mxu0 0.0
        %2014 = vmatprep.subr.mxu0 0.0
        %2015 = vmatpush1.msra.mxu0 0.0
        %2016 = vmatprep.subr.mxu0 0.0
        %2017 = vmatpush1.msra.mxu0 0.0
        %2018 = vmatprep.subr.mxu0 0.0
        %2019 = vmatpush1.msra.mxu0 0.0
        %2020 = vmatprep.subr.mxu0 0.0
        %2021 = vmatpush1.msra.mxu0 0.0
        %2022 = vmatprep.subr.mxu0 0.0
        %2023 = vmatpush1.msra.mxu0 0.0
        %2024 = vmatprep.subr.mxu0 0.0
        %2025 = vmatpush1.msra.mxu0 0.0
        %2026 = vmatprep.subr.mxu0 0.0
        %2027 = vmatpush1.msra.mxu0 0.0
        %2028 = vmatprep.subr.mxu0 0.0
        %2029 = vmatpush1.msra.mxu0 0.0
        %2030 = vmatprep.subr.mxu0 0.0
        %2031 = vmatpush1.msra.mxu0 0.0
        %2032 = vmatprep.subr.mxu0 0.0
        %2033 = vmatpush1.msra.mxu0 0.0
        %2034 = vmatprep.subr.mxu0 0.0
        %2035 = vmatpush1.msra.mxu0 0.0
        %2036 = vmatprep.subr.mxu0 0.0
        %2037 = vmatpush1.msra.mxu0 0.0
        %2038 = vmatprep.mubr.f32.mxu0 0.0
        %v2039 = vand.u32 %v1293, 4294901760
        %2040 = vmatmul.mubr.f32.gmra.mrb[0].mxu0 %v2039
        %v2041 = vpop.f32.mrb[0].mxu0
        %v2042 = vadd.f32 %v1946, %v2041
        %v2043 = vpop.f32.mrb[0].mxu0
        %v2044 = vadd.f32 %v1948, %v2043
        %2045 = vdwg.mxu0
        %v2046 = vsub.f32 1.0, %v420
        %v2047 = vxor.u32 %v2042, 2147483648
        %v2048 = vmul.f32 %v2047, 1.442695
        %v2049 = vpow.pop %v2048
        %v2050 = vadd.f32 %v2049, 1.0
        %v2051 = vrcp.pop %v2050
        %v2052 = vmul.f32 1.0, %v2051
        %2054 = vset.pattern.permute.xlu0 0
        %2055 = vperm.xlu0 %2054, %v2046
        %v2056 = vpop.permute.xlu0 %2055
        %v2058 = vmul.f32 %v2056, %v2052
        %v2059 = vmul.f32 %v2058, %v415
        %v2060 = vtanh.pop %v2042
        %2062 = vrot.lane.b32.xlu0 %v2060, 64
        %v2063 = vpop.permute.xlu0 %2062
        %v2065 = vmul.f32 %v2052, %v2063
        %2067 = vrot.lane.b32.xlu0 %v2065, 96
        %v2068 = vpop.permute.xlu0 %2067
        %v2070 = vadd.f32 %v2059, %v2068
        %v2071 = vtanh.pop %v2070
        %2073 = vrot.lane.b32.xlu0 %v2071, 64
        %v2074 = vpop.permute.xlu0 %2073
        %v2076 = vmul.f32 %v2052, %v2074
        %v2077 = vadd.f32 %v1231, %v420
        %v2078 = vmin.f32 %v2077, 1.0
        %2080 = vset.pattern.permute.xlu0 0
        %2081 = vperm.xlu0 %2080, %v2078
        %v2082 = vpop.permute.xlu0 %2081
        %v2084 = vmul.f32 %v2082, %v2070
        %v2085 = vsub.f32 1.0, %v2078
        %2087 = vset.pattern.permute.xlu0 0
        %2088 = vperm.xlu0 %2087, %v2085
        %v2089 = vpop.permute.xlu0 %2088
        %v2091 = vmul.f32 %v2089, %v415
        %v2092 = vadd.f32 %v2084, %v2091
        %v2093 = vmul.f32 %v2082, %v2076
        %v2094 = vmul.f32 %v2089, %v410
        %2096 = vrot.lane.b32.xlu0 %v2094, 64
        %v2097 = vpop.permute.xlu0 %2096
        %v2099 = vadd.f32 %v2093, %v2097
        %vm2100 = vcmp.gt.f32.partialorder %v2044, 0.0
        %v2101 = vsel %vm2100, 1, 0
        %v2102 = vcvt.s32.f32 %v2101
        %v2103 = vmul.f32 %v1211, %v2099
        %v2104 = vmul.f32 %v1218, %v410
        %2106 = vrot.lane.b32.xlu0 %v2104, 64
        %v2107 = vpop.permute.xlu0 %2106
        %v2109 = vadd.f32 %v2103, %v2107
        %v2110 = vmul.f32 %v1211, %v2092
        %v2111 = vmul.f32 %v1218, %v415
        %v2112 = vadd.f32 %v2110, %v2111
        %v2113 = vmul.f32 %v407, %v2102
        %v2114 = vmul.f32 %v1214, %v420
        %v2115 = vadd.f32 %v2113, %v2114
        %2117 = vrot.lane.b32.xlu0 %v2109, 96
        %v2118 = vpop.permute.xlu0 %2117
        %v2120 = vsel %vm435, %v412, %v2118
        %v2121 = vld [vmem:[%s6] sm:$0xff]
        %v2122 = vld [vmem:[%s6 + $0x8] sm:$0xff]
        %v2123 = vld [vmem:[%s6 + $0x10] sm:$0xff]
        %v2124 = vld [vmem:[%s6 + $0x18] sm:$0xff]
        %v2125 = vld [vmem:[%s6 + $0x20] sm:$0xff]
        %v2126 = vld [vmem:[%s6 + $0x28] sm:$0xff]
        %v2127 = vld [vmem:[%s6 + $0x30] sm:$0xff]
        %v2128 = vld [vmem:[%s6 + $0x38] sm:$0xff]
        %v2129 = vld [vmem:[%s7] sm:$0x1]
        %v2131 = vlaneseq
        %v2132 = vshrl.u32 %v2131, 7
        %v2133 = vsub.s32 0, %v2132
        %v2134 = vrot.slane %v2129, %v2133
        %v2137 = vsel %vm1253, %v2120, 0
        %2139 = vmatprep.subr.mxu0 0.0
        %v2140 = vand.u32 %v2121, 4294901760
        %2141 = vmatpush1.msra.mxu0 %v2140
        %2142 = vmatprep.subr.mxu0 0.0
        %v2143 = vand.u32 %v2122, 4294901760
        %2144 = vmatpush1.msra.mxu0 %v2143
        %2145 = vmatprep.subr.mxu0 0.0
        %v2146 = vand.u32 %v2123, 4294901760
        %2147 = vmatpush1.msra.mxu0 %v2146
        %2148 = vmatprep.subr.mxu0 0.0
        %v2149 = vand.u32 %v2124, 4294901760
        %2150 = vmatpush1.msra.mxu0 %v2149
        %2151 = vmatprep.subr.mxu0 0.0
        %v2152 = vand.u32 %v2125, 4294901760
        %2153 = vmatpush1.msra.mxu0 %v2152
        %2154 = vmatprep.subr.mxu0 0.0
        %v2155 = vand.u32 %v2126, 4294901760
        %2156 = vmatpush1.msra.mxu0 %v2155
        %2157 = vmatprep.subr.mxu0 0.0
        %v2158 = vand.u32 %v2127, 4294901760
        %2159 = vmatpush1.msra.mxu0 %v2158
        %2160 = vmatprep.subr.mxu0 0.0
        %v2161 = vand.u32 %v2128, 4294901760
        %2162 = vmatpush1.msra.mxu0 %v2161
        %2163 = vmatprep.subr.mxu0 0.0
        %2164 = vmatpush1.msra.mxu0 0.0
        %2165 = vmatprep.subr.mxu0 0.0
        %2166 = vmatpush1.msra.mxu0 0.0
        %2167 = vmatprep.subr.mxu0 0.0
        %2168 = vmatpush1.msra.mxu0 0.0
        %2169 = vmatprep.subr.mxu0 0.0
        %2170 = vmatpush1.msra.mxu0 0.0
        %2171 = vmatprep.subr.mxu0 0.0
        %2172 = vmatpush1.msra.mxu0 0.0
        %2173 = vmatprep.subr.mxu0 0.0
        %2174 = vmatpush1.msra.mxu0 0.0
        %2175 = vmatprep.subr.mxu0 0.0
        %2176 = vmatpush1.msra.mxu0 0.0
        %2177 = vmatprep.subr.mxu0 0.0
        %2178 = vmatpush1.msra.mxu0 0.0
        %2179 = vmatprep.subr.mxu0 0.0
        %2180 = vmatpush1.msra.mxu0 0.0
        %2181 = vmatprep.subr.mxu0 0.0
        %2182 = vmatpush1.msra.mxu0 0.0
        %2183 = vmatprep.subr.mxu0 0.0
        %2184 = vmatpush1.msra.mxu0 0.0
        %2185 = vmatprep.subr.mxu0 0.0
        %2186 = vmatpush1.msra.mxu0 0.0
        %2187 = vmatprep.subr.mxu0 0.0
        %2188 = vmatpush1.msra.mxu0 0.0
        %2189 = vmatprep.subr.mxu0 0.0
        %2190 = vmatpush1.msra.mxu0 0.0
        %2191 = vmatprep.subr.mxu0 0.0
        %2192 = vmatpush1.msra.mxu0 0.0
        %2193 = vmatprep.subr.mxu0 0.0
        %2194 = vmatpush1.msra.mxu0 0.0
        %2195 = vmatprep.subr.mxu0 0.0
        %2196 = vmatpush1.msra.mxu0 0.0
        %2197 = vmatprep.subr.mxu0 0.0
        %2198 = vmatpush1.msra.mxu0 0.0
        %2199 = vmatprep.subr.mxu0 0.0
        %2200 = vmatpush1.msra.mxu0 0.0
        %2201 = vmatprep.subr.mxu0 0.0
        %2202 = vmatpush1.msra.mxu0 0.0
        %2203 = vmatprep.subr.mxu0 0.0
        %2204 = vmatpush1.msra.mxu0 0.0
        %2205 = vmatprep.subr.mxu0 0.0
        %2206 = vmatpush1.msra.mxu0 0.0
        %2207 = vmatprep.subr.mxu0 0.0
        %2208 = vmatpush1.msra.mxu0 0.0
        %2209 = vmatprep.subr.mxu0 0.0
        %2210 = vmatpush1.msra.mxu0 0.0
        %2211 = vmatprep.mubr.f32.mxu0 0.0
        %v2212 = vand.u32 %v2137, 4294901760
        %v2213 = vsub.f32 %v2137, %v2212
        %v2214 = vand.u32 %v2213, 4294901760
        %v2215 = vsub.f32 %v2213, %v2214
        %v2216 = vand.u32 %v2215, 4294901760
        %2217 = vmatmul.mubr.f32.gmra.mrb[0].mxu0 %v2216
        %v2218 = vpop.f32.mrb[0].mxu0
        %v2219 = vadd.f32 %v2134, %v2218
        %v2220 = vpop.f32.mrb[0].mxu0
        %2221 = vdwg.mxu0
        %2222 = vmatprep.subr.mxu0 0.0
        %v2223 = vand.u32 %v2121, 4294901760
        %v2224 = vsub.f32 %v2121, %v2223
        %v2225 = vand.u32 %v2224, 4294901760
        %v2226 = vsub.f32 %v2224, %v2225
        %v2227 = vand.u32 %v2226, 4294901760
        %2228 = vmatpush1.msra.mxu0 %v2227
        %2229 = vmatprep.subr.mxu0 0.0
        %v2230 = vand.u32 %v2122, 4294901760
        %v2231 = vsub.f32 %v2122, %v2230
        %v2232 = vand.u32 %v2231, 4294901760
        %v2233 = vsub.f32 %v2231, %v2232
        %v2234 = vand.u32 %v2233, 4294901760
        %2235 = vmatpush1.msra.mxu0 %v2234
        %2236 = vmatprep.subr.mxu0 0.0
        %v2237 = vand.u32 %v2123, 4294901760
        %v2238 = vsub.f32 %v2123, %v2237
        %v2239 = vand.u32 %v2238, 4294901760
        %v2240 = vsub.f32 %v2238, %v2239
        %v2241 = vand.u32 %v2240, 4294901760
        %2242 = vmatpush1.msra.mxu0 %v2241
        %2243 = vmatprep.subr.mxu0 0.0
        %v2244 = vand.u32 %v2124, 4294901760
        %v2245 = vsub.f32 %v2124, %v2244
        %v2246 = vand.u32 %v2245, 4294901760
        %v2247 = vsub.f32 %v2245, %v2246
        %v2248 = vand.u32 %v2247, 4294901760
        %2249 = vmatpush1.msra.mxu0 %v2248
        %2250 = vmatprep.subr.mxu0 0.0
        %v2251 = vand.u32 %v2125, 4294901760
        %v2252 = vsub.f32 %v2125, %v2251
        %v2253 = vand.u32 %v2252, 4294901760
        %v2254 = vsub.f32 %v2252, %v2253
        %v2255 = vand.u32 %v2254, 4294901760
        %2256 = vmatpush1.msra.mxu0 %v2255
        %2257 = vmatprep.subr.mxu0 0.0
        %v2258 = vand.u32 %v2126, 4294901760
        %v2259 = vsub.f32 %v2126, %v2258
        %v2260 = vand.u32 %v2259, 4294901760
        %v2261 = vsub.f32 %v2259, %v2260
        %v2262 = vand.u32 %v2261, 4294901760
        %2263 = vmatpush1.msra.mxu0 %v2262
        %2264 = vmatprep.subr.mxu0 0.0
        %v2265 = vand.u32 %v2127, 4294901760
        %v2266 = vsub.f32 %v2127, %v2265
        %v2267 = vand.u32 %v2266, 4294901760
        %v2268 = vsub.f32 %v2266, %v2267
        %v2269 = vand.u32 %v2268, 4294901760
        %2270 = vmatpush1.msra.mxu0 %v2269
        %2271 = vmatprep.subr.mxu0 0.0
        %v2272 = vand.u32 %v2128, 4294901760
        %v2273 = vsub.f32 %v2128, %v2272
        %v2274 = vand.u32 %v2273, 4294901760
        %v2275 = vsub.f32 %v2273, %v2274
        %v2276 = vand.u32 %v2275, 4294901760
        %2277 = vmatpush1.msra.mxu0 %v2276
        %2278 = vmatprep.subr.mxu0 0.0
        %2279 = vmatpush1.msra.mxu0 0.0
        %2280 = vmatprep.subr.mxu0 0.0
        %2281 = vmatpush1.msra.mxu0 0.0
        %2282 = vmatprep.subr.mxu0 0.0
        %2283 = vmatpush1.msra.mxu0 0.0
        %2284 = vmatprep.subr.mxu0 0.0
        %2285 = vmatpush1.msra.mxu0 0.0
        %2286 = vmatprep.subr.mxu0 0.0
        %2287 = vmatpush1.msra.mxu0 0.0
        %2288 = vmatprep.subr.mxu0 0.0
        %2289 = vmatpush1.msra.mxu0 0.0
        %2290 = vmatprep.subr.mxu0 0.0
        %2291 = vmatpush1.msra.mxu0 0.0
        %2292 = vmatprep.subr.mxu0 0.0
        %2293 = vmatpush1.msra.mxu0 0.0
        %2294 = vmatprep.subr.mxu0 0.0
        %2295 = vmatpush1.msra.mxu0 0.0
        %2296 = vmatprep.subr.mxu0 0.0
        %2297 = vmatpush1.msra.mxu0 0.0
        %2298 = vmatprep.subr.mxu0 0.0
        %2299 = vmatpush1.msra.mxu0 0.0
        %2300 = vmatprep.subr.mxu0 0.0
        %2301 = vmatpush1.msra.mxu0 0.0
        %2302 = vmatprep.subr.mxu0 0.0
        %2303 = vmatpush1.msra.mxu0 0.0
        %2304 = vmatprep.subr.mxu0 0.0
        %2305 = vmatpush1.msra.mxu0 0.0
        %2306 = vmatprep.subr.mxu0 0.0
        %2307 = vmatpush1.msra.mxu0 0.0
        %2308 = vmatprep.subr.mxu0 0.0
        %2309 = vmatpush1.msra.mxu0 0.0
        %2310 = vmatprep.subr.mxu0 0.0
        %2311 = vmatpush1.msra.mxu0 0.0
        %2312 = vmatprep.subr.mxu0 0.0
        %2313 = vmatpush1.msra.mxu0 0.0
        %2314 = vmatprep.subr.mxu0 0.0
        %2315 = vmatpush1.msra.mxu0 0.0
        %2316 = vmatprep.subr.mxu0 0.0
        %2317 = vmatpush1.msra.mxu0 0.0
        %2318 = vmatprep.subr.mxu0 0.0
        %2319 = vmatpush1.msra.mxu0 0.0
        %2320 = vmatprep.subr.mxu0 0.0
        %2321 = vmatpush1.msra.mxu0 0.0
        %2322 = vmatprep.subr.mxu0 0.0
        %2323 = vmatpush1.msra.mxu0 0.0
        %2324 = vmatprep.subr.mxu0 0.0
        %2325 = vmatpush1.msra.mxu0 0.0
        %2326 = vmatprep.mubr.f32.mxu0 0.0
        %v2327 = vand.u32 %v2137, 4294901760
        %2328 = vmatmul.mubr.f32.gmra.mrb[0].mxu0 %v2327
        %v2329 = vpop.f32.mrb[0].mxu0
        %v2330 = vadd.f32 %v2219, %v2329
        %v2331 = vpop.f32.mrb[0].mxu0
        %2332 = vdwg.mxu0
        %2333 = vmatprep.subr.mxu0 0.0
        %v2334 = vand.u32 %v2121, 4294901760
        %v2335 = vsub.f32 %v2121, %v2334
        %2336 = vmatpush1.msra.mxu0 %v2335
        %2337 = vmatprep.subr.mxu0 0.0
        %v2338 = vand.u32 %v2122, 4294901760
        %v2339 = vsub.f32 %v2122, %v2338
        %2340 = vmatpush1.msra.mxu0 %v2339
        %2341 = vmatprep.subr.mxu0 0.0
        %v2342 = vand.u32 %v2123, 4294901760
        %v2343 = vsub.f32 %v2123, %v2342
        %2344 = vmatpush1.msra.mxu0 %v2343
        %2345 = vmatprep.subr.mxu0 0.0
        %v2346 = vand.u32 %v2124, 4294901760
        %v2347 = vsub.f32 %v2124, %v2346
        %2348 = vmatpush1.msra.mxu0 %v2347
        %2349 = vmatprep.subr.mxu0 0.0
        %v2350 = vand.u32 %v2125, 4294901760
        %v2351 = vsub.f32 %v2125, %v2350
        %2352 = vmatpush1.msra.mxu0 %v2351
        %2353 = vmatprep.subr.mxu0 0.0
        %v2354 = vand.u32 %v2126, 4294901760
        %v2355 = vsub.f32 %v2126, %v2354
        %2356 = vmatpush1.msra.mxu0 %v2355
        %2357 = vmatprep.subr.mxu0 0.0
        %v2358 = vand.u32 %v2127, 4294901760
        %v2359 = vsub.f32 %v2127, %v2358
        %2360 = vmatpush1.msra.mxu0 %v2359
        %2361 = vmatprep.subr.mxu0 0.0
        %v2362 = vand.u32 %v2128, 4294901760
        %v2363 = vsub.f32 %v2128, %v2362
        %2364 = vmatpush1.msra.mxu0 %v2363
        %2365 = vmatprep.subr.mxu0 0.0
        %2366 = vmatpush1.msra.mxu0 0.0
        %2367 = vmatprep.subr.mxu0 0.0
        %2368 = vmatpush1.msra.mxu0 0.0
        %2369 = vmatprep.subr.mxu0 0.0
        %2370 = vmatpush1.msra.mxu0 0.0
        %2371 = vmatprep.subr.mxu0 0.0
        %2372 = vmatpush1.msra.mxu0 0.0
        %2373 = vmatprep.subr.mxu0 0.0
        %2374 = vmatpush1.msra.mxu0 0.0
        %2375 = vmatprep.subr.mxu0 0.0
        %2376 = vmatpush1.msra.mxu0 0.0
        %2377 = vmatprep.subr.mxu0 0.0
        %2378 = vmatpush1.msra.mxu0 0.0
        %2379 = vmatprep.subr.mxu0 0.0
        %2380 = vmatpush1.msra.mxu0 0.0
        %2381 = vmatprep.subr.mxu0 0.0
        %2382 = vmatpush1.msra.mxu0 0.0
        %2383 = vmatprep.subr.mxu0 0.0
        %2384 = vmatpush1.msra.mxu0 0.0
        %2385 = vmatprep.subr.mxu0 0.0
        %2386 = vmatpush1.msra.mxu0 0.0
        %2387 = vmatprep.subr.mxu0 0.0
        %2388 = vmatpush1.msra.mxu0 0.0
        %2389 = vmatprep.subr.mxu0 0.0
        %2390 = vmatpush1.msra.mxu0 0.0
        %2391 = vmatprep.subr.mxu0 0.0
        %2392 = vmatpush1.msra.mxu0 0.0
        %2393 = vmatprep.subr.mxu0 0.0
        %2394 = vmatpush1.msra.mxu0 0.0
        %2395 = vmatprep.subr.mxu0 0.0
        %2396 = vmatpush1.msra.mxu0 0.0
        %2397 = vmatprep.subr.mxu0 0.0
        %2398 = vmatpush1.msra.mxu0 0.0
        %2399 = vmatprep.subr.mxu0 0.0
        %2400 = vmatpush1.msra.mxu0 0.0
        %2401 = vmatprep.subr.mxu0 0.0
        %2402 = vmatpush1.msra.mxu0 0.0
        %2403 = vmatprep.subr.mxu0 0.0
        %2404 = vmatpush1.msra.mxu0 0.0
        %2405 = vmatprep.subr.mxu0 0.0
        %2406 = vmatpush1.msra.mxu0 0.0
        %2407 = vmatprep.subr.mxu0 0.0
        %2408 = vmatpush1.msra.mxu0 0.0
        %2409 = vmatprep.subr.mxu0 0.0
        %2410 = vmatpush1.msra.mxu0 0.0
        %2411 = vmatprep.subr.mxu0 0.0
        %2412 = vmatpush1.msra.mxu0 0.0
        %2413 = vmatprep.mubr.f32.mxu0 0.0
        %v2414 = vand.u32 %v2137, 4294901760
        %v2415 = vsub.f32 %v2137, %v2414
        %2416 = vmatmul.mubr.f32.gmra.mrb[0].mxu0 %v2415
        %v2417 = vpop.f32.mrb[0].mxu0
        %v2418 = vadd.f32 %v2330, %v2417
        %v2419 = vpop.f32.mrb[0].mxu0
        %2420 = vdwg.mxu0
        %2421 = vmatprep.subr.mxu0 0.0
        %v2422 = vand.u32 %v2121, 4294901760
        %2423 = vmatpush1.msra.mxu0 %v2422
        %2424 = vmatprep.subr.mxu0 0.0
        %v2425 = vand.u32 %v2122, 4294901760
        %2426 = vmatpush1.msra.mxu0 %v2425
        %2427 = vmatprep.subr.mxu0 0.0
        %v2428 = vand.u32 %v2123, 4294901760
        %2429 = vmatpush1.msra.mxu0 %v2428
        %2430 = vmatprep.subr.mxu0 0.0
        %v2431 = vand.u32 %v2124, 4294901760
        %2432 = vmatpush1.msra.mxu0 %v2431
        %2433 = vmatprep.subr.mxu0 0.0
        %v2434 = vand.u32 %v2125, 4294901760
        %2435 = vmatpush1.msra.mxu0 %v2434
        %2436 = vmatprep.subr.mxu0 0.0
        %v2437 = vand.u32 %v2126, 4294901760
        %2438 = vmatpush1.msra.mxu0 %v2437
        %2439 = vmatprep.subr.mxu0 0.0
        %v2440 = vand.u32 %v2127, 4294901760
        %2441 = vmatpush1.msra.mxu0 %v2440
        %2442 = vmatprep.subr.mxu0 0.0
        %v2443 = vand.u32 %v2128, 4294901760
        %2444 = vmatpush1.msra.mxu0 %v2443
        %2445 = vmatprep.subr.mxu0 0.0
        %2446 = vmatpush1.msra.mxu0 0.0
        %2447 = vmatprep.subr.mxu0 0.0
        %2448 = vmatpush1.msra.mxu0 0.0
        %2449 = vmatprep.subr.mxu0 0.0
        %2450 = vmatpush1.msra.mxu0 0.0
        %2451 = vmatprep.subr.mxu0 0.0
        %2452 = vmatpush1.msra.mxu0 0.0
        %2453 = vmatprep.subr.mxu0 0.0
        %2454 = vmatpush1.msra.mxu0 0.0
        %2455 = vmatprep.subr.mxu0 0.0
        %2456 = vmatpush1.msra.mxu0 0.0
        %2457 = vmatprep.subr.mxu0 0.0
        %2458 = vmatpush1.msra.mxu0 0.0
        %2459 = vmatprep.subr.mxu0 0.0
        %2460 = vmatpush1.msra.mxu0 0.0
        %2461 = vmatprep.subr.mxu0 0.0
        %2462 = vmatpush1.msra.mxu0 0.0
        %2463 = vmatprep.subr.mxu0 0.0
        %2464 = vmatpush1.msra.mxu0 0.0
        %2465 = vmatprep.subr.mxu0 0.0
        %2466 = vmatpush1.msra.mxu0 0.0
        %2467 = vmatprep.subr.mxu0 0.0
        %2468 = vmatpush1.msra.mxu0 0.0
        %2469 = vmatprep.subr.mxu0 0.0
        %2470 = vmatpush1.msra.mxu0 0.0
        %2471 = vmatprep.subr.mxu0 0.0
        %2472 = vmatpush1.msra.mxu0 0.0
        %2473 = vmatprep.subr.mxu0 0.0
        %2474 = vmatpush1.msra.mxu0 0.0
        %2475 = vmatprep.subr.mxu0 0.0
        %2476 = vmatpush1.msra.mxu0 0.0
        %2477 = vmatprep.subr.mxu0 0.0
        %2478 = vmatpush1.msra.mxu0 0.0
        %2479 = vmatprep.subr.mxu0 0.0
        %2480 = vmatpush1.msra.mxu0 0.0
        %2481 = vmatprep.subr.mxu0 0.0
        %2482 = vmatpush1.msra.mxu0 0.0
        %2483 = vmatprep.subr.mxu0 0.0
        %2484 = vmatpush1.msra.mxu0 0.0
        %2485 = vmatprep.subr.mxu0 0.0
        %2486 = vmatpush1.msra.mxu0 0.0
        %2487 = vmatprep.subr.mxu0 0.0
        %2488 = vmatpush1.msra.mxu0 0.0
        %2489 = vmatprep.subr.mxu0 0.0
        %2490 = vmatpush1.msra.mxu0 0.0
        %2491 = vmatprep.subr.mxu0 0.0
        %2492 = vmatpush1.msra.mxu0 0.0
        %2493 = vmatprep.mubr.f32.mxu0 0.0
        %v2494 = vand.u32 %v2137, 4294901760
        %v2495 = vsub.f32 %v2137, %v2494
        %v2496 = vand.u32 %v2495, 4294901760
        %2497 = vmatmul.mubr.f32.gmra.mrb[0].mxu0 %v2496
        %v2498 = vpop.f32.mrb[0].mxu0
        %v2499 = vadd.f32 %v2418, %v2498
        %v2500 = vpop.f32.mrb[0].mxu0
        %2501 = vdwg.mxu0
        %2502 = vmatprep.subr.mxu0 0.0
        %v2503 = vand.u32 %v2121, 4294901760
        %v2504 = vsub.f32 %v2121, %v2503
        %v2505 = vand.u32 %v2504, 4294901760
        %2506 = vmatpush1.msra.mxu0 %v2505
        %2507 = vmatprep.subr.mxu0 0.0
        %v2508 = vand.u32 %v2122, 4294901760
        %v2509 = vsub.f32 %v2122, %v2508
        %v2510 = vand.u32 %v2509, 4294901760
        %2511 = vmatpush1.msra.mxu0 %v2510
        %2512 = vmatprep.subr.mxu0 0.0
        %v2513 = vand.u32 %v2123, 4294901760
        %v2514 = vsub.f32 %v2123, %v2513
        %v2515 = vand.u32 %v2514, 4294901760
        %2516 = vmatpush1.msra.mxu0 %v2515
        %2517 = vmatprep.subr.mxu0 0.0
        %v2518 = vand.u32 %v2124, 4294901760
        %v2519 = vsub.f32 %v2124, %v2518
        %v2520 = vand.u32 %v2519, 4294901760
        %2521 = vmatpush1.msra.mxu0 %v2520
        %2522 = vmatprep.subr.mxu0 0.0
        %v2523 = vand.u32 %v2125, 4294901760
        %v2524 = vsub.f32 %v2125, %v2523
        %v2525 = vand.u32 %v2524, 4294901760
        %2526 = vmatpush1.msra.mxu0 %v2525
        %2527 = vmatprep.subr.mxu0 0.0
        %v2528 = vand.u32 %v2126, 4294901760
        %v2529 = vsub.f32 %v2126, %v2528
        %v2530 = vand.u32 %v2529, 4294901760
        %2531 = vmatpush1.msra.mxu0 %v2530
        %2532 = vmatprep.subr.mxu0 0.0
        %v2533 = vand.u32 %v2127, 4294901760
        %v2534 = vsub.f32 %v2127, %v2533
        %v2535 = vand.u32 %v2534, 4294901760
        %2536 = vmatpush1.msra.mxu0 %v2535
        %2537 = vmatprep.subr.mxu0 0.0
        %v2538 = vand.u32 %v2128, 4294901760
        %v2539 = vsub.f32 %v2128, %v2538
        %v2540 = vand.u32 %v2539, 4294901760
        %2541 = vmatpush1.msra.mxu0 %v2540
        %2542 = vmatprep.subr.mxu0 0.0
        %2543 = vmatpush1.msra.mxu0 0.0
        %2544 = vmatprep.subr.mxu0 0.0
        %2545 = vmatpush1.msra.mxu0 0.0
        %2546 = vmatprep.subr.mxu0 0.0
        %2547 = vmatpush1.msra.mxu0 0.0
        %2548 = vmatprep.subr.mxu0 0.0
        %2549 = vmatpush1.msra.mxu0 0.0
        %2550 = vmatprep.subr.mxu0 0.0
        %2551 = vmatpush1.msra.mxu0 0.0
        %2552 = vmatprep.subr.mxu0 0.0
        %2553 = vmatpush1.msra.mxu0 0.0
        %2554 = vmatprep.subr.mxu0 0.0
        %2555 = vmatpush1.msra.mxu0 0.0
        %2556 = vmatprep.subr.mxu0 0.0
        %2557 = vmatpush1.msra.mxu0 0.0
        %2558 = vmatprep.subr.mxu0 0.0
        %2559 = vmatpush1.msra.mxu0 0.0
        %2560 = vmatprep.subr.mxu0 0.0
        %2561 = vmatpush1.msra.mxu0 0.0
        %2562 = vmatprep.subr.mxu0 0.0
        %2563 = vmatpush1.msra.mxu0 0.0
        %2564 = vmatprep.subr.mxu0 0.0
        %2565 = vmatpush1.msra.mxu0 0.0
        %2566 = vmatprep.subr.mxu0 0.0
        %2567 = vmatpush1.msra.mxu0 0.0
        %2568 = vmatprep.subr.mxu0 0.0
        %2569 = vmatpush1.msra.mxu0 0.0
        %2570 = vmatprep.subr.mxu0 0.0
        %2571 = vmatpush1.msra.mxu0 0.0
        %2572 = vmatprep.subr.mxu0 0.0
        %2573 = vmatpush1.msra.mxu0 0.0
        %2574 = vmatprep.subr.mxu0 0.0
        %2575 = vmatpush1.msra.mxu0 0.0
        %2576 = vmatprep.subr.mxu0 0.0
        %2577 = vmatpush1.msra.mxu0 0.0
        %2578 = vmatprep.subr.mxu0 0.0
        %2579 = vmatpush1.msra.mxu0 0.0
        %2580 = vmatprep.subr.mxu0 0.0
        %2581 = vmatpush1.msra.mxu0 0.0
        %2582 = vmatprep.subr.mxu0 0.0
        %2583 = vmatpush1.msra.mxu0 0.0
        %2584 = vmatprep.subr.mxu0 0.0
        %2585 = vmatpush1.msra.mxu0 0.0
        %2586 = vmatprep.subr.mxu0 0.0
        %2587 = vmatpush1.msra.mxu0 0.0
        %2588 = vmatprep.subr.mxu0 0.0
        %2589 = vmatpush1.msra.mxu0 0.0
        %2590 = vmatprep.mubr.f32.mxu0 0.0
        %v2591 = vand.u32 %v2137, 4294901760
        %2592 = vmatmul.mubr.f32.gmra.mrb[0].mxu0 %v2591
        %v2593 = vpop.f32.mrb[0].mxu0
        %v2594 = vadd.f32 %v2499, %v2593
        %v2595 = vpop.f32.mrb[0].mxu0
        %2596 = vdwg.mxu0
        %2597 = vmatprep.subr.mxu0 0.0
        %v2598 = vand.u32 %v2121, 4294901760
        %2599 = vmatpush1.msra.mxu0 %v2598
        %2600 = vmatprep.subr.mxu0 0.0
        %v2601 = vand.u32 %v2122, 4294901760
        %2602 = vmatpush1.msra.mxu0 %v2601
        %2603 = vmatprep.subr.mxu0 0.0
        %v2604 = vand.u32 %v2123, 4294901760
        %2605 = vmatpush1.msra.mxu0 %v2604
        %2606 = vmatprep.subr.mxu0 0.0
        %v2607 = vand.u32 %v2124, 4294901760
        %2608 = vmatpush1.msra.mxu0 %v2607
        %2609 = vmatprep.subr.mxu0 0.0
        %v2610 = vand.u32 %v2125, 4294901760
        %2611 = vmatpush1.msra.mxu0 %v2610
        %2612 = vmatprep.subr.mxu0 0.0
        %v2613 = vand.u32 %v2126, 4294901760
        %2614 = vmatpush1.msra.mxu0 %v2613
        %2615 = vmatprep.subr.mxu0 0.0
        %v2616 = vand.u32 %v2127, 4294901760
        %2617 = vmatpush1.msra.mxu0 %v2616
        %2618 = vmatprep.subr.mxu0 0.0
        %v2619 = vand.u32 %v2128, 4294901760
        %2620 = vmatpush1.msra.mxu0 %v2619
        %2621 = vmatprep.subr.mxu0 0.0
        %2622 = vmatpush1.msra.mxu0 0.0
        %2623 = vmatprep.subr.mxu0 0.0
        %2624 = vmatpush1.msra.mxu0 0.0
        %2625 = vmatprep.subr.mxu0 0.0
        %2626 = vmatpush1.msra.mxu0 0.0
        %2627 = vmatprep.subr.mxu0 0.0
        %2628 = vmatpush1.msra.mxu0 0.0
        %2629 = vmatprep.subr.mxu0 0.0
        %2630 = vmatpush1.msra.mxu0 0.0
        %2631 = vmatprep.subr.mxu0 0.0
        %2632 = vmatpush1.msra.mxu0 0.0
        %2633 = vmatprep.subr.mxu0 0.0
        %2634 = vmatpush1.msra.mxu0 0.0
        %2635 = vmatprep.subr.mxu0 0.0
        %2636 = vmatpush1.msra.mxu0 0.0
        %2637 = vmatprep.subr.mxu0 0.0
        %2638 = vmatpush1.msra.mxu0 0.0
        %2639 = vmatprep.subr.mxu0 0.0
        %2640 = vmatpush1.msra.mxu0 0.0
        %2641 = vmatprep.subr.mxu0 0.0
        %2642 = vmatpush1.msra.mxu0 0.0
        %2643 = vmatprep.subr.mxu0 0.0
        %2644 = vmatpush1.msra.mxu0 0.0
        %2645 = vmatprep.subr.mxu0 0.0
        %2646 = vmatpush1.msra.mxu0 0.0
        %2647 = vmatprep.subr.mxu0 0.0
        %2648 = vmatpush1.msra.mxu0 0.0
        %2649 = vmatprep.subr.mxu0 0.0
        %2650 = vmatpush1.msra.mxu0 0.0
        %2651 = vmatprep.subr.mxu0 0.0
        %2652 = vmatpush1.msra.mxu0 0.0
        %2653 = vmatprep.subr.mxu0 0.0
        %2654 = vmatpush1.msra.mxu0 0.0
        %2655 = vmatprep.subr.mxu0 0.0
        %2656 = vmatpush1.msra.mxu0 0.0
        %2657 = vmatprep.subr.mxu0 0.0
        %2658 = vmatpush1.msra.mxu0 0.0
        %2659 = vmatprep.subr.mxu0 0.0
        %2660 = vmatpush1.msra.mxu0 0.0
        %2661 = vmatprep.subr.mxu0 0.0
        %2662 = vmatpush1.msra.mxu0 0.0
        %2663 = vmatprep.subr.mxu0 0.0
        %2664 = vmatpush1.msra.mxu0 0.0
        %2665 = vmatprep.subr.mxu0 0.0
        %2666 = vmatpush1.msra.mxu0 0.0
        %2667 = vmatprep.subr.mxu0 0.0
        %2668 = vmatpush1.msra.mxu0 0.0
        %2669 = vmatprep.mubr.f32.mxu0 0.0
        %v2670 = vand.u32 %v2137, 4294901760
        %2671 = vmatmul.mubr.f32.gmra.mrb[0].mxu0 %v2670
        %v2672 = vpop.f32.mrb[0].mxu0
        %v2673 = vadd.f32 %v2594, %v2672
        %v2674 = vpop.f32.mrb[0].mxu0
        %2675 = vdwg.mxu0
        %v2676 = vxor.u32 %v2673, 2147483648
        %v2677 = vmul.f32 %v2676, 1.442695
        %v2678 = vpow.pop %v2677
        %v2679 = vadd.f32 %v2678, 1.0
        %v2680 = vrcp.pop %v2679
        %v2681 = vmul.f32 1.0, %v2680
        %v2682 = vmul.f32 %v2681, %v417
        %v2683 = vtanh.pop %v2673
        %2685 = vrot.lane.b32.xlu0 %v2683, 64
        %v2686 = vpop.permute.xlu0 %2685
        %v2688 = vmul.f32 %v2681, %v2686
        %2690 = vrot.lane.b32.xlu0 %v2688, 96
        %v2691 = vpop.permute.xlu0 %2690
        %v2693 = vadd.f32 %v2682, %v2691
        %v2694 = vtanh.pop %v2693
        %2696 = vrot.lane.b32.xlu0 %v2694, 64
        %v2697 = vpop.permute.xlu0 %2696
        %v2699 = vmul.f32 %v2681, %v2697
        %2701 = vset.pattern.permute.xlu0 0
        %2702 = vperm.xlu0 %2701, %v2115
        %v2703 = vpop.permute.xlu0 %2702
        %v2705 = vmul.f32 %v2703, %v2693
        %v2706 = vsub.f32 1.0, %v2115
        %2708 = vset.pattern.permute.xlu0 0
        %2709 = vperm.xlu0 %2708, %v2706
        %v2710 = vpop.permute.xlu0 %2709
        %v2712 = vmul.f32 %v2710, %v417
        %v2713 = vadd.f32 %v2705, %v2712
        %v2714 = vmul.f32 %v2703, %v2699
        %v2715 = vmul.f32 %v2710, %v412
        %2717 = vrot.lane.b32.xlu0 %v2715, 64
        %v2718 = vpop.permute.xlu0 %2717
        %v2720 = vadd.f32 %v2714, %v2718
        %v2721 = vmul.f32 %v1211, %v2720
        %v2722 = vmul.f32 %v1218, %v412
        %2724 = vrot.lane.b32.xlu0 %v2722, 64
        %v2725 = vpop.permute.xlu0 %2724
        %v2727 = vadd.f32 %v2721, %v2725
        %v2728 = vmul.f32 %v1211, %v2713
        %v2729 = vmul.f32 %v1218, %v417
        %v2730 = vadd.f32 %v2728, %v2729
        %2732 = vrot.lane.b32.xlu0 %v1225, 64
        %v2733 = vpop.permute.xlu0 %2732
        %2735 = vst.msk [vmem:[#allocation4] sm:$0xff] %vm435, %v2733
        %2736 = vrot.lane.b32.xlu0 %v2109, 64
        %v2737 = vpop.permute.xlu0 %2736
        %2739 = vst.msk [vmem:[%s409] sm:$0xff] %vm435, %v2737
        %2741 = vrot.lane.b32.xlu0 %v2727, 64
        %v2742 = vpop.permute.xlu0 %2741
        %2744 = vst.msk [vmem:[%s411] sm:$0xff] %vm435, %v2742
        %2745 = vst.msk [vmem:[#allocation6] sm:$0xff] %vm435, %v1228
        %2746 = vst.msk [vmem:[%s414] sm:$0xff] %vm435, %v2112
        %2747 = vst.msk [vmem:[%s416] sm:$0xff] %vm435, %v2730
        %vm2748 = vcmask 7168
        %2749 = vst.msk [vmem:[%s11] sm:$0xff] %vm2748, %v1231
        %2750 = vst.msk [vmem:[%s419] sm:$0xff] %vm2748, %v2115
        %2751 = vrot.lane.b32.xlu0 %v2727, 32
        %v2752 = vpop.permute.xlu0 %2751
        %v2754 = vsel %vm435, %v2733, %v2118
        %v2755 = vsel %vm1253, %v2754, %v2727
        %v2756 = vsel %vm1291, %v2755, %v2752
        %2757 = vst [vmem:[%s377] sm:$0xff] %v2756
        %s2758 = sand.u32 %s213, 1
        %s2759 = scalar_lea.sflag [#allocation3], %s2758
        %s2760 = sand.u32 %s213, 1
        %s2761 = smul.addr %s2760, 8
        %s2762 = scalar_lea.vmem [#allocation2], %s2761
        // Predicated region
        $region57: #{tpu_custom_call.1} parent=51 // pred_check
          %p2763 = pneg %p223
        $region58: #{tpu_custom_call.1} parent=51 // pred_check_branch
          %2765 = sbr.rel (%p2763) target = $region60
        $region59: #{tpu_custom_call.1} parent=51 // pred_region
          %s2767 = ssub.s32 128, 128
          %2768 = vsyncadd %s2759, %s2767
          %s2769 = smul.addr %s27, 128
          %s2770 = scalar_lea.hbm %s8, %s2769
          %s2772 = sshll.u32 %s2762, 4
          %s2773 = int_to_ptr.vmem [resolvable:$true] %s2772
          %2775 = dma.vmem_to_hbm [thread:$0]  %s2773, 128, %s2770, %s2759
        $region60: #{tpu_custom_call.1} parent=51 // pred_fallthru
          _
        // Predicated region
        $region61: #{tpu_custom_call.1} parent=51 // pred_check
          %p2776 = pneg %p244
        $region62: #{tpu_custom_call.1} parent=51 // pred_check_branch
          %2778 = sbr.rel (%p2776) target = $region64
        $region63: #{tpu_custom_call.1} parent=51 // pred_region
          %s2780 = ssub.s32 384, 384
          %2781 = vsyncadd [#allocation5], %s2780
          %s2782 = sshll.u32 [#allocation4], 4
          %s2783 = int_to_ptr.vmem [resolvable:$true] %s2782
          %2788 = dma.vmem_to_hbm [thread:$0]  %s2783, 384, %s9, [#allocation5], 128, 128, 8
        $region64: #{tpu_custom_call.1} parent=51 // pred_fallthru
          _
        // Predicated region
        $region65: #{tpu_custom_call.1} parent=51 // pred_check
          %p2789 = pneg %p265
        $region66: #{tpu_custom_call.1} parent=51 // pred_check_branch
          %2791 = sbr.rel (%p2789) target = $region68
        $region67: #{tpu_custom_call.1} parent=51 // pred_region
          %s2793 = ssub.s32 384, 384
          %2794 = vsyncadd [#allocation5], %s2793
          %s2795 = sshll.u32 [#allocation6], 4
          %s2796 = int_to_ptr.vmem [resolvable:$true] %s2795
          %2801 = dma.vmem_to_hbm [thread:$0]  %s2796, 384, %s10, [#allocation5], 128, 128, 8
        $region68: #{tpu_custom_call.1} parent=51 // pred_fallthru
          _
        // Predicated region
        $region69: #{tpu_custom_call.1} parent=51 // pred_check
          %p2802 = pneg %p286
        $region70: #{tpu_custom_call.1} parent=51 // pred_check_branch
          %2804 = sbr.rel (%p2802) target = $region72
        $region71: #{tpu_custom_call.1} parent=51 // pred_region
          _
        $region72: #{tpu_custom_call.1} parent=51 // pred_fallthru
          _
        // Predicated region
        $region73: #{tpu_custom_call.1} parent=51 // pred_check
          %p2805 = pneg %p244
        $region74: #{tpu_custom_call.1} parent=51 // pred_check_branch
          %2807 = sbr.rel (%p2805) target = $region76
        $region75: #{tpu_custom_call.1} parent=51 // pred_region
          %2808 = dma.done [#allocation5], 384
        $region76: #{tpu_custom_call.1} parent=51 // pred_fallthru
          _
        // Predicated region
        $region77: #{tpu_custom_call.1} parent=51 // pred_check
          %p2809 = pneg %p265
        $region78: #{tpu_custom_call.1} parent=51 // pred_check_branch
          %2811 = sbr.rel (%p2809) target = $region80
        $region79: #{tpu_custom_call.1} parent=51 // pred_region
          %2812 = dma.done [#allocation5], 384
        $region80: #{tpu_custom_call.1} parent=51 // pred_fallthru
          _
        // Predicated region
        $region81: #{tpu_custom_call.1} parent=51 // pred_check
          %p2813 = pneg %p286
        $region82: #{tpu_custom_call.1} parent=51 // pred_check_branch
          %2815 = sbr.rel (%p2813) target = $region84
        $region83: #{tpu_custom_call.1} parent=51 // pred_region
          _
        $region84: #{tpu_custom_call.1} parent=51 // pred_fallthru
          _
      $region52: #{tpu_custom_call.1} parent=5 // pred_fallthru
        _
      %p2816 = scmp.le.s32.totalorder 2, %s22
      // Predicated region
      $region85: #{tpu_custom_call.1} parent=5 // pred_check
        %p2817 = pneg %p2816
      $region86: #{tpu_custom_call.1} parent=5 // pred_check_branch
        %2819 = sbr.rel (%p2817) target = $region88
      $region87: #{tpu_custom_call.1} parent=5 // pred_region
        %s2820 = ssub.s32 %s22, 2
        // Predicated region
        $region89: #{tpu_custom_call.1} parent=87 // pred_check
          %p2821 = pneg %p229
        $region90: #{tpu_custom_call.1} parent=87 // pred_check_branch
          %2823 = sbr.rel (%p2821) target = $region92
        $region91: #{tpu_custom_call.1} parent=87 // pred_region
          %s2824 = sand.u32 %s214, 1
          %s2825 = scalar_lea.sflag [#allocation3], %s2824
          %s2826 = sand.u32 %s214, 1
          %s2827 = smul.addr %s2826, 8
          %s2828 = scalar_lea.vmem [#allocation2], %s2827
          %2829 = dma.done %s2825, 128
        $region92: #{tpu_custom_call.1} parent=87 // pred_fallthru
          _
      $region88: #{tpu_custom_call.1} parent=5 // pred_fallthru
        _
    $region6: #{tpu_custom_call.1} parent=1 // loop_footer
      %s26 = sadd.s32 1, %s22
    $region7: #{tpu_custom_call.1} parent=1 // loop_footer_branch
      %21 = sbr.rel target = $region3
    $region8: #{tpu_custom_call.1} parent=1 // loop_exit
      _
    %2830 = vsyncpa [#allocation3], 1
    %s2831 = scalar_lea.sflag [#allocation3], 1
    %2832 = vsyncpa %s2831, 1
    %2833 = vsyncpa [#allocation5], 1

</llo_original>
